<compile_context>
chip_gen: v5e
topology: v5e:2x2
jax: 0.10.0
libtpu: 0.0.40
codegen_flags: <defaults>
</compile_context>

<pallas_src>
import functools

import jax
import jax.numpy as jnp
from jax.experimental import pallas as pl
from jax.experimental.pallas import tpu as pltpu


def _round_up(x, m):
    return ((x + m - 1) // m) * m


def _pick_row_tile(m, candidates=(2048, 1024, 512, 256, 128, 64, 32, 16, 8)):
    # Largest tile that divides M while still giving >= 2 grid steps, so the
    # software pipeline and the megacore "parallel" axis stay alive.
    for c in candidates:
        if m % c == 0 and m // c >= 2:
            return c
    return m


# ---------------------------------------------------------------------------
# Pass 1: conv1 (3x3 via im2col patches) + bias + ReLU
#         -> conv_mid (1x1) + folded BatchNorm + ReLU
# One fused kernel, tiled over the M = N*H*W pixel rows.
# ---------------------------------------------------------------------------
def _conv1_mid_kernel(p_ref, w1_ref, b1_ref, wm_ref, sc_ref, sh_ref, o_ref):
    # (tile_m, K1p) bf16 @ (K1p, 512) bf16 -> f32 accumulation
    acc1 = jnp.dot(p_ref[...], w1_ref[...], preferred_element_type=jnp.float32)
    acc1 = jnp.maximum(acc1 + b1_ref[...], 0.0)
    # (tile_m, 512) bf16 @ (512, 128) bf16 -> f32, then folded BN + ReLU.
    acc2 = jnp.dot(acc1.astype(jnp.bfloat16), wm_ref[...],
                   preferred_element_type=jnp.float32)
    out = jnp.maximum(acc2 * sc_ref[...] + sh_ref[...], 0.0)
    o_ref[...] = out.astype(o_ref.dtype)


def fused_conv1_mid(p1p, w1p, b1, wm, scale, shift):
    M, K1p = p1p.shape
    _, C1 = w1p.shape
    _, Cmid = wm.shape
    tm = _pick_row_tile(M)
    grid = (M // tm,)

    b1r = b1.reshape(1, C1).astype(jnp.float32)
    sc = scale.reshape(1, Cmid).astype(jnp.float32)
    sh = shift.reshape(1, Cmid).astype(jnp.float32)

    cost = pl.CostEstimate(
        flops=2 * M * (K1p * C1 + C1 * Cmid),
        transcendentals=0,
        bytes_accessed=(M * K1p * 2 + K1p * C1 * 2 + C1 * Cmid * 2
                        + C1 * 4 + 2 * Cmid * 4 + M * Cmid * 4),
    )
    return pl.pallas_call(
        _conv1_mid_kernel,
        out_shape=jax.ShapeDtypeStruct((M, Cmid), jnp.float32),
        grid=grid,
        in_specs=[
            pl.BlockSpec((tm, K1p), lambda i: (i, 0)),
            pl.BlockSpec((K1p, C1), lambda i: (0, 0)),
            pl.BlockSpec((1, C1), lambda i: (0, 0)),
            pl.BlockSpec((C1, Cmid), lambda i: (0, 0)),
            pl.BlockSpec((1, Cmid), lambda i: (0, 0)),
            pl.BlockSpec((1, Cmid), lambda i: (0, 0)),
        ],
        out_specs=pl.BlockSpec((tm, Cmid), lambda i: (i, 0)),
        compiler_params=pltpu.CompilerParams(
            dimension_semantics=("parallel",),
            vmem_limit_bytes=32 * 1024 * 1024),
        cost_estimate=cost,
    )(p1p, w1p, b1r, wm, sc, sh)


# ---------------------------------------------------------------------------
# Pass 2: conv2 (3x3, 9 in-kernel shifted taps, no im2col) + bias
#         + spatial softmax + channel-mean pool + interior mask
# One fused kernel, gridded over the batch; Cout is padded to 128 lanes.
# ---------------------------------------------------------------------------
def _conv2_softmax_pool_kernel(x_ref, w2_ref, b2_ref, cpw_ref, mask_ref,
                               soft_ref, gm_ref, *, H, W, C):
    # out2[h, w, :] = sum_{dh,dw} x_pad[h+dh, w+dw, :] @ w2[dh*3+dw]
    acc = None
    for t in range(9):
        dh, dw = divmod(t, 3)
        tap = x_ref[0, dh:dh + H, dw:dw + W, :]                 # (H, W, C) f32
        tap2d = tap.reshape(H * W, C).astype(jnp.bfloat16)      # (HW, C)
        contrib = jnp.dot(tap2d, w2_ref[t],
                          preferred_element_type=jnp.float32)   # (HW, Cp)
        acc = contrib if acc is None else acc + contrib
    logits = acc + b2_ref[...]                                  # (HW, Cp)

    # softmax over the flattened spatial axis (rows), per channel (column).
    m = jnp.max(logits, axis=0, keepdims=True)
    e = jnp.exp(logits - m)
    s = jnp.sum(e, axis=0, keepdims=True)
    soft = e / s
    soft_ref[0] = soft.astype(soft_ref.dtype)

    # ChannelPool (mean over the REAL channels only) + interior border mask.
    # TODO(synk): ChannelPool is not defined in the source file; assumed to be
    #             a channel-mean pool producing (N, 1, H, W).
    gm = jnp.sum(soft * cpw_ref[...], axis=1, keepdims=True)    # (HW, 1)
    gm_ref[0] = (gm * mask_ref[...]).astype(gm_ref.dtype)


def fused_conv2_softmax_pool(xm_pad, w2p, b2p, cpool_w, smask):
    N, Hp2, Wp2, C = xm_pad.shape
    H, W = Hp2 - 2, Wp2 - 2
    HW = H * W
    Cp = w2p.shape[-1]

    kernel = functools.partial(_conv2_softmax_pool_kernel, H=H, W=W, C=C)
    cost = pl.CostEstimate(
        flops=2 * N * HW * 9 * C * Cp + 8 * N * HW * Cp,
        transcendentals=N * HW * Cp,
        bytes_accessed=(N * Hp2 * Wp2 * C * 4 + 9 * C * Cp * 2
                        + N * HW * Cp * 4 + N * HW * 4),
    )
    return pl.pallas_call(
        kernel,
        out_shape=(jax.ShapeDtypeStruct((N, HW, Cp), jnp.float32),
                   jax.ShapeDtypeStruct((N, HW, 1), jnp.float32)),
        grid=(N,),
        in_specs=[
            pl.BlockSpec((1, Hp2, Wp2, C), lambda b: (b, 0, 0, 0)),
            pl.BlockSpec((9, C, Cp), lambda b: (0, 0, 0)),
            pl.BlockSpec((1, Cp), lambda b: (0, 0)),
            pl.BlockSpec((1, Cp), lambda b: (0, 0)),
            pl.BlockSpec((HW, 1), lambda b: (0, 0)),
        ],
        out_specs=(pl.BlockSpec((1, HW, Cp), lambda b: (b, 0, 0)),
                   pl.BlockSpec((1, HW, 1), lambda b: (b, 0, 0))),
        compiler_params=pltpu.CompilerParams(
            dimension_semantics=("parallel",),
            vmem_limit_bytes=32 * 1024 * 1024),
        cost_estimate=cost,
    )(xm_pad, w2p, b2p, cpool_w, smask)


# ---------------------------------------------------------------------------
# Glue: im2col for the 3x3/stride-1/pad-1 conv1 only (Cin is tiny, so the 9x
# patch inflation is negligible; the 128-channel conv2 input is handled with
# in-kernel tap accumulation instead of im2col).
# ---------------------------------------------------------------------------
def im2col_3x3(x_nhwc):
    n, h, w, c = x_nhwc.shape
    xp = jnp.pad(x_nhwc, ((0, 0), (1, 1), (1, 1), (0, 0)))
    cols = [xp[:, dh:dh + h, dw:dw + w, :] for dh in range(3) for dw in range(3)]
    patches = jnp.concatenate(cols, axis=-1)       # (N, H, W, 9*C)
    return patches.reshape(n * h * w, 9 * c)


# ---------------------------------------------------------------------------
# Attention forward
# ---------------------------------------------------------------------------
def attention_forward(x_nchw, params):
    n, _, h, w = x_nchw.shape
    c_mid = params["wm"].shape[1]          # 128
    c_out = params["w2"].shape[-1]         # real output channels
    eps = 1e-5

    x = jnp.transpose(x_nchw, (0, 2, 3, 1)).astype(jnp.float32)   # NHWC

    # ---- pass 1: relu(bn1(conv_mid(relu(conv1_(x))))) --------------------
    p1 = im2col_3x3(x)                                   # (M, 9*Cin) f32
    k1 = p1.shape[1]
    k1p = _round_up(k1, 128)                             # lane-aligned K
    p1p = jnp.pad(p1, ((0, 0), (0, k1p - k1))).astype(jnp.bfloat16)
    w1p = jnp.pad(params["w1"], ((0, k1p - k1), (0, 0))).astype(jnp.bfloat16)

    # Fold BatchNorm (eval mode) and the conv_mid bias into one scale/shift.
    scale = params["gamma"] * jax.lax.rsqrt(params["var"] + eps)
    shift = params["beta"] + (params["bm"] - params["mean"]) * scale

    out1_2 = fused_conv1_mid(p1p, w1p, params["b1"],
                             params["wm"].astype(jnp.bfloat16), scale, shift)

    # ---- pass 2: conv2_ + spatial softmax + ChannelPool + border mask ----
    xm_pad = jnp.pad(out1_2.reshape(n, h, w, c_mid),
                     ((0, 0), (1, 1), (1, 1), (0, 0)))   # halo for the 3x3 taps

    c_out_p = _round_up(c_out, 128)                      # lane-dense output
    w2p = jnp.pad(params["w2"],
                  ((0, 0), (0, 0), (0, c_out_p - c_out))).astype(jnp.bfloat16)
    b2p = jnp.pad(params["b2"], ((0, c_out_p - c_out),)
                  ).reshape(1, c_out_p).astype(jnp.float32)

    # Channel-pool weights (mean over the REAL channels) and interior mask,
    # built once at trace time and passed in as tiny constant inputs.
    cpool_w = jnp.where(jnp.arange(c_out_p) < c_out, 1.0 / c_out, 0.0
                        ).reshape(1, c_out_p).astype(jnp.float32)
    hi = jnp.arange(h)[:, None]
    wi = jnp.arange(w)[None, :]
    interior = (hi >= 1) & (hi <= h - 2) & (wi >= 1) & (wi <= w - 2)
    smask = interior.astype(jnp.float32).reshape(h * w, 1)

    soft_p, gm = fused_conv2_softmax_pool(xm_pad, w2p, b2p, cpool_w, smask)

    out2 = jnp.transpose(soft_p[:, :, :c_out].reshape(n, h, w, c_out),
                         (0, 3, 1, 2))                   # (N, Cout, H, W)
    global_map = gm.reshape(n, 1, h, w)
    return out2, global_map


# ---------------------------------------------------------------------------
# Deterministic synthetic parameters
# ---------------------------------------------------------------------------
def init_params(key, in_channel, out_channel):
    ks = jax.random.split(key, 8)
    # conv1 weights stored as (kh*kw*Cin, 512), matching the im2col ordering
    # (dh, dw, cin).
    w1 = (jax.random.normal(ks[0], (3, 3, in_channel, 512), jnp.float32) * 0.1
          ).reshape(9 * in_channel, 512)
    b1 = jax.random.normal(ks[1], (512,), jnp.float32) * 0.01
    wm = jax.random.normal(ks[2], (512, 128), jnp.float32) * 0.05   # 1x1 conv
    bm = jax.random.normal(ks[3], (128,), jnp.float32) * 0.01
    # conv2 weights stored per tap: (9, Cmid, Cout), tap index = dh*3 + dw.
    w2 = (jax.random.normal(ks[4], (3, 3, 128, out_channel), jnp.float32) * 0.05
          ).reshape(9, 128, out_channel)
    b2 = jax.random.normal(ks[5], (out_channel,), jnp.float32) * 0.01
    # BatchNorm2d(128) in eval mode
    gamma = jnp.ones((128,), jnp.float32)
    beta = jnp.zeros((128,), jnp.float32)
    mean = jax.random.normal(ks[6], (128,), jnp.float32) * 0.01
    var = jnp.ones((128,), jnp.float32) + jax.random.uniform(ks[7], (128,)) * 0.1
    return dict(w1=w1, b1=b1, wm=wm, bm=bm, w2=w2, b2=b2,
                gamma=gamma, beta=beta, mean=mean, var=var)


if __name__ == "__main__":
    in_channel, out_channel = 4, 4
    n, h, w = 2, 16, 16

    key = jax.random.PRNGKey(0)
    kx, kp = jax.random.split(key)
    x = jax.random.normal(kx, (n, in_channel, h, w), jnp.float32)   # NCHW
    params = init_params(kp, in_channel, out_channel)

    out2, global_map = jax.jit(attention_forward)(x, params)
    jax.block_until_ready((out2, global_map))

    assert out2.shape == (n, out_channel, h, w)
    assert global_map.shape == (n, 1, h, w)
    # softmax over the flattened spatial dim sums to 1 per (n, c)
    assert jnp.allclose(out2.reshape(n, out_channel, -1).sum(-1), 1.0, atol=1e-4)
    # the interior mask zeroes the border of global_map
    assert float(jnp.abs(global_map[:, :, 0, :]).max()) == 0.0
    assert float(jnp.abs(global_map[:, :, :, -1]).max()) == 0.0

    print("KERNEL_OK")
</pallas_src>

<mosaic_0001>
module attributes {stable_mosaic.version = 11 : i64} {
  func.func @_conv1_mid_kernel(%arg0: i32, %arg1: memref<256x128xbf16, #tpu.memory_space<vmem>>, %arg2: memref<128x512xbf16, #tpu.memory_space<vmem>>, %arg3: memref<1x512xf32, #tpu.memory_space<vmem>>, %arg4: memref<512x128xbf16, #tpu.memory_space<vmem>>, %arg5: memref<1x128xf32, #tpu.memory_space<vmem>>, %arg6: memref<1x128xf32, #tpu.memory_space<vmem>>, %arg7: memref<256x128xf32, #tpu.memory_space<vmem>>) attributes {dimension_semantics = [#tpu.dimension_semantics<parallel>], iteration_bounds = array<i64: 2>, scalar_prefetch = 0 : i64, scratch_operands = 0 : i64, tpu.core_type = #tpu.core_type<tc>, window_params = [{transform_indices = @transform_0, window_bounds = array<i64: 256, 128>}, {pipeline_mode = #tpu.pipeline_mode<synchronous>, transform_indices = @transform_1, window_bounds = array<i64: 128, 512>}, {pipeline_mode = #tpu.pipeline_mode<synchronous>, transform_indices = @transform_2, window_bounds = array<i64: 1, 512>}, {pipeline_mode = #tpu.pipeline_mode<synchronous>, transform_indices = @transform_3, window_bounds = array<i64: 512, 128>}, {pipeline_mode = #tpu.pipeline_mode<synchronous>, transform_indices = @transform_4, window_bounds = array<i64: 1, 128>}, {pipeline_mode = #tpu.pipeline_mode<synchronous>, transform_indices = @transform_5, window_bounds = array<i64: 1, 128>}, {transform_indices = @transform_6, window_bounds = array<i64: 256, 128>}]} {
    %c0 = arith.constant 0 : index
    %c0_0 = arith.constant 0 : index
    %0 = vector.load %arg1[%c0, %c0_0] : memref<256x128xbf16, #tpu.memory_space<vmem>>, vector<256x128xbf16>
    %c0_1 = arith.constant 0 : index
    %c0_2 = arith.constant 0 : index
    %1 = vector.load %arg2[%c0_1, %c0_2] : memref<128x512xbf16, #tpu.memory_space<vmem>>, vector<128x512xbf16>
    %cst = arith.constant dense<0.000000e+00> : vector<256x512xf32>
    %2 = tpu.matmul %0, %1, %cst {dimension_numbers = #tpu.dot_dimension_numbers<[1], [0], [0], [1], [0, 0, 1, 1], [], []>} : vector<256x128xbf16>, vector<128x512xbf16>, vector<256x512xf32> -> vector<256x512xf32>
    %c0_3 = arith.constant 0 : index
    %c0_4 = arith.constant 0 : index
    %3 = vector.load %arg3[%c0_3, %c0_4] : memref<1x512xf32, #tpu.memory_space<vmem>>, vector<1x512xf32>
    %4 = vector.broadcast %3 : vector<1x512xf32> to vector<256x512xf32>
    %5 = arith.addf %2, %4 : vector<256x512xf32>
    %cst_5 = arith.constant 0.000000e+00 : f32
    %6 = vector.broadcast %cst_5 : f32 to vector<256x512xf32>
    %7 = arith.maximumf %5, %6 : vector<256x512xf32>
    %8 = arith.truncf %7 : vector<256x512xf32> to vector<256x512xbf16>
    %c0_6 = arith.constant 0 : index
    %c0_7 = arith.constant 0 : index
    %9 = vector.load %arg4[%c0_6, %c0_7] : memref<512x128xbf16, #tpu.memory_space<vmem>>, vector<512x128xbf16>
    %cst_8 = arith.constant dense<0.000000e+00> : vector<256x128xf32>
    %10 = tpu.matmul %8, %9, %cst_8 {dimension_numbers = #tpu.dot_dimension_numbers<[1], [0], [0], [1], [0, 0, 1, 1], [], []>} : vector<256x512xbf16>, vector<512x128xbf16>, vector<256x128xf32> -> vector<256x128xf32>
    %c0_9 = arith.constant 0 : index
    %c0_10 = arith.constant 0 : index
    %11 = vector.load %arg5[%c0_9, %c0_10] : memref<1x128xf32, #tpu.memory_space<vmem>>, vector<1x128xf32>
    %12 = vector.broadcast %11 : vector<1x128xf32> to vector<256x128xf32>
    %13 = arith.mulf %10, %12 : vector<256x128xf32>
    %c0_11 = arith.constant 0 : index
    %c0_12 = arith.constant 0 : index
    %14 = vector.load %arg6[%c0_11, %c0_12] : memref<1x128xf32, #tpu.memory_space<vmem>>, vector<1x128xf32>
    %15 = vector.broadcast %14 : vector<1x128xf32> to vector<256x128xf32>
    %16 = arith.addf %13, %15 : vector<256x128xf32>
    %cst_13 = arith.constant 0.000000e+00 : f32
    %17 = vector.broadcast %cst_13 : f32 to vector<256x128xf32>
    %18 = arith.maximumf %16, %17 : vector<256x128xf32>
    %c0_14 = arith.constant 0 : index
    %c0_15 = arith.constant 0 : index
    %19 = vector.load %arg7[%c0_14, %c0_15] : memref<256x128xf32, #tpu.memory_space<vmem>>, vector<256x128xf32>
    tpu.vector_store %arg7[%c0_14, %c0_15], %18 {strides = array<i32>} : memref<256x128xf32, #tpu.memory_space<vmem>>, vector<256x128xf32>,
    return
  }
  func.func @transform_0(%arg0: i32) -> (i32, i32) {
    %c0_i32 = arith.constant 0 : i32
    %c0_i32_0 = arith.constant 0 : i32
    return %arg0, %c0_i32 : i32, i32
  }
  func.func @transform_1(%arg0: i32) -> (i32, i32) {
    %c0_i32 = arith.constant 0 : i32
    %c0_i32_0 = arith.constant 0 : i32
    %c0_i32_1 = arith.constant 0 : i32
    return %c0_i32, %c0_i32_0 : i32, i32
  }
  func.func @transform_2(%arg0: i32) -> (i32, i32) {
    %c0_i32 = arith.constant 0 : i32
    %c0_i32_0 = arith.constant 0 : i32
    %c0_i32_1 = arith.constant 0 : i32
    return %c0_i32, %c0_i32_0 : i32, i32
  }
  func.func @transform_3(%arg0: i32) -> (i32, i32) {
    %c0_i32 = arith.constant 0 : i32
    %c0_i32_0 = arith.constant 0 : i32
    %c0_i32_1 = arith.constant 0 : i32
    return %c0_i32, %c0_i32_0 : i32, i32
  }
  func.func @transform_4(%arg0: i32) -> (i32, i32) {
    %c0_i32 = arith.constant 0 : i32
    %c0_i32_0 = arith.constant 0 : i32
    %c0_i32_1 = arith.constant 0 : i32
    return %c0_i32, %c0_i32_0 : i32, i32
  }
  func.func @transform_5(%arg0: i32) -> (i32, i32) {
    %c0_i32 = arith.constant 0 : i32
    %c0_i32_0 = arith.constant 0 : i32
    %c0_i32_1 = arith.constant 0 : i32
    return %c0_i32, %c0_i32_0 : i32, i32
  }
  func.func @transform_6(%arg0: i32) -> (i32, i32) {
    %c0_i32 = arith.constant 0 : i32
    %c0_i32_0 = arith.constant 0 : i32
    return %arg0, %c0_i32 : i32, i32
  }
}

module attributes {stable_mosaic.version = 11 : i64} {
  func.func @_conv2_softmax_pool_kernel(%arg0: i32, %arg1: memref<1x18x18x128xf32, #tpu.memory_space<vmem>>, %arg2: memref<9x128x128xbf16, #tpu.memory_space<vmem>>, %arg3: memref<1x128xf32, #tpu.memory_space<vmem>>, %arg4: memref<1x128xf32, #tpu.memory_space<vmem>>, %arg5: memref<256x1xf32, #tpu.memory_space<vmem>>, %arg6: memref<1x256x128xf32, #tpu.memory_space<vmem>>, %arg7: memref<1x256x1xf32, #tpu.memory_space<vmem>>) attributes {dimension_semantics = [#tpu.dimension_semantics<parallel>], iteration_bounds = array<i64: 2>, scalar_prefetch = 0 : i64, scratch_operands = 0 : i64, tpu.core_type = #tpu.core_type<tc>, window_params = [{transform_indices = @transform_0, window_bounds = array<i64: 1, 18, 18, 128>}, {pipeline_mode = #tpu.pipeline_mode<synchronous>, transform_indices = @transform_1, window_bounds = array<i64: 9, 128, 128>}, {pipeline_mode = #tpu.pipeline_mode<synchronous>, transform_indices = @transform_2, window_bounds = array<i64: 1, 128>}, {pipeline_mode = #tpu.pipeline_mode<synchronous>, transform_indices = @transform_3, window_bounds = array<i64: 1, 128>}, {pipeline_mode = #tpu.pipeline_mode<synchronous>, transform_indices = @transform_4, window_bounds = array<i64: 256, 1>}, {transform_indices = @transform_5, window_bounds = array<i64: 1, 256, 128>}, {transform_indices = @transform_6, window_bounds = array<i64: 1, 256, 1>}]} {
    %c0 = arith.constant 0 : index
    %c0_0 = arith.constant 0 : index
    %c0_1 = arith.constant 0 : index
    %c0_2 = arith.constant 0 : index
    %0 = vector.load %arg1[%c0, %c0_0, %c0_1, %c0_2] : memref<1x18x18x128xf32, #tpu.memory_space<vmem>>, vector<1x16x16x128xf32>
    %1 = vector.shape_cast %0 : vector<1x16x16x128xf32> to vector<16x16x128xf32>
    %2 = vector.shape_cast %1 : vector<16x16x128xf32> to vector<256x128xf32>
    %3 = arith.truncf %2 : vector<256x128xf32> to vector<256x128xbf16>
    %c0_3 = arith.constant 0 : index
    %c0_4 = arith.constant 0 : index
    %c0_5 = arith.constant 0 : index
    %4 = vector.load %arg2[%c0_3, %c0_4, %c0_5] : memref<9x128x128xbf16, #tpu.memory_space<vmem>>, vector<1x128x128xbf16>
    %5 = vector.shape_cast %4 : vector<1x128x128xbf16> to vector<128x128xbf16>
    %cst = arith.constant dense<0.000000e+00> : vector<256x128xf32>
    %6 = tpu.matmul %3, %5, %cst {dimension_numbers = #tpu.dot_dimension_numbers<[1], [0], [0], [1], [0, 0, 1, 1], [], []>} : vector<256x128xbf16>, vector<128x128xbf16>, vector<256x128xf32> -> vector<256x128xf32>
    %c0_6 = arith.constant 0 : index
    %c0_7 = arith.constant 0 : index
    %c1 = arith.constant 1 : index
    %c0_8 = arith.constant 0 : index
    %7 = vector.load %arg1[%c0_6, %c0_7, %c1, %c0_8] : memref<1x18x18x128xf32, #tpu.memory_space<vmem>>, vector<1x16x16x128xf32>
    %8 = vector.shape_cast %7 : vector<1x16x16x128xf32> to vector<16x16x128xf32>
    %9 = vector.shape_cast %8 : vector<16x16x128xf32> to vector<256x128xf32>
    %10 = arith.truncf %9 : vector<256x128xf32> to vector<256x128xbf16>
    %c1_9 = arith.constant 1 : index
    %c0_10 = arith.constant 0 : index
    %c0_11 = arith.constant 0 : index
    %11 = vector.load %arg2[%c1_9, %c0_10, %c0_11] : memref<9x128x128xbf16, #tpu.memory_space<vmem>>, vector<1x128x128xbf16>
    %12 = vector.shape_cast %11 : vector<1x128x128xbf16> to vector<128x128xbf16>
    %cst_12 = arith.constant dense<0.000000e+00> : vector<256x128xf32>
    %13 = tpu.matmul %10, %12, %cst_12 {dimension_numbers = #tpu.dot_dimension_numbers<[1], [0], [0], [1], [0, 0, 1, 1], [], []>} : vector<256x128xbf16>, vector<128x128xbf16>, vector<256x128xf32> -> vector<256x128xf32>
    %14 = arith.addf %6, %13 : vector<256x128xf32>
    %c0_13 = arith.constant 0 : index
    %c0_14 = arith.constant 0 : index
    %c2 = arith.constant 2 : index
    %c0_15 = arith.constant 0 : index
    %15 = vector.load %arg1[%c0_13, %c0_14, %c2, %c0_15] : memref<1x18x18x128xf32, #tpu.memory_space<vmem>>, vector<1x16x16x128xf32>
    %16 = vector.shape_cast %15 : vector<1x16x16x128xf32> to vector<16x16x128xf32>
    %17 = vector.shape_cast %16 : vector<16x16x128xf32> to vector<256x128xf32>
    %18 = arith.truncf %17 : vector<256x128xf32> to vector<256x128xbf16>
    %c2_16 = arith.constant 2 : index
    %c0_17 = arith.constant 0 : index
    %c0_18 = arith.constant 0 : index
    %19 = vector.load %arg2[%c2_16, %c0_17, %c0_18] : memref<9x128x128xbf16, #tpu.memory_space<vmem>>, vector<1x128x128xbf16>
    %20 = vector.shape_cast %19 : vector<1x128x128xbf16> to vector<128x128xbf16>
    %cst_19 = arith.constant dense<0.000000e+00> : vector<256x128xf32>
    %21 = tpu.matmul %18, %20, %cst_19 {dimension_numbers = #tpu.dot_dimension_numbers<[1], [0], [0], [1], [0, 0, 1, 1], [], []>} : vector<256x128xbf16>, vector<128x128xbf16>, vector<256x128xf32> -> vector<256x128xf32>
    %22 = arith.addf %14, %21 : vector<256x128xf32>
    %c0_20 = arith.constant 0 : index
    %c1_21 = arith.constant 1 : index
    %c0_22 = arith.constant 0 : index
    %c0_23 = arith.constant 0 : index
    %23 = vector.load %arg1[%c0_20, %c1_21, %c0_22, %c0_23] : memref<1x18x18x128xf32, #tpu.memory_space<vmem>>, vector<1x16x16x128xf32>
    %24 = vector.shape_cast %23 : vector<1x16x16x128xf32> to vector<16x16x128xf32>
    %25 = vector.shape_cast %24 : vector<16x16x128xf32> to vector<256x128xf32>
    %26 = arith.truncf %25 : vector<256x128xf32> to vector<256x128xbf16>
    %c3 = arith.constant 3 : index
    %c0_24 = arith.constant 0 : index
    %c0_25 = arith.constant 0 : index
    %27 = vector.load %arg2[%c3, %c0_24, %c0_25] : memref<9x128x128xbf16, #tpu.memory_space<vmem>>, vector<1x128x128xbf16>
    %28 = vector.shape_cast %27 : vector<1x128x128xbf16> to vector<128x128xbf16>
    %cst_26 = arith.constant dense<0.000000e+00> : vector<256x128xf32>
    %29 = tpu.matmul %26, %28, %cst_26 {dimension_numbers = #tpu.dot_dimension_numbers<[1], [0], [0], [1], [0, 0, 1, 1], [], []>} : vector<256x128xbf16>, vector<128x128xbf16>, vector<256x128xf32> -> vector<256x128xf32>
    %30 = arith.addf %22, %29 : vector<256x128xf32>
    %c0_27 = arith.constant 0 : index
    %c1_28 = arith.constant 1 : index
    %c1_29 = arith.constant 1 : index
    %c0_30 = arith.constant 0 : index
    %31 = vector.load %arg1[%c0_27, %c1_28, %c1_29, %c0_30] : memref<1x18x18x128xf32, #tpu.memory_space<vmem>>, vector<1x16x16x128xf32>
    %32 = vector.shape_cast %31 : vector<1x16x16x128xf32> to vector<16x16x128xf32>
    %33 = vector.shape_cast %32 : vector<16x16x128xf32> to vector<256x128xf32>
    %34 = arith.truncf %33 : vector<256x128xf32> to vector<256x128xbf16>
    %c4 = arith.constant 4 : index
    %c0_31 = arith.constant 0 : index
    %c0_32 = arith.constant 0 : index
    %35 = vector.load %arg2[%c4, %c0_31, %c0_32] : memref<9x128x128xbf16, #tpu.memory_space<vmem>>, vector<1x128x128xbf16>
    %36 = vector.shape_cast %35 : vector<1x128x128xbf16> to vector<128x128xbf16>
    %cst_33 = arith.constant dense<0.000000e+00> : vector<256x128xf32>
    %37 = tpu.matmul %34, %36, %cst_33 {dimension_numbers = #tpu.dot_dimension_numbers<[1], [0], [0], [1], [0, 0, 1, 1], [], []>} : vector<256x128xbf16>, vector<128x128xbf16>, vector<256x128xf32> -> vector<256x128xf32>
    %38 = arith.addf %30, %37 : vector<256x128xf32>
    %c0_34 = arith.constant 0 : index
    %c1_35 = arith.constant 1 : index
    %c2_36 = arith.constant 2 : index
    %c0_37 = arith.constant 0 : index
    %39 = vector.load %arg1[%c0_34, %c1_35, %c2_36, %c0_37] : memref<1x18x18x128xf32, #tpu.memory_space<vmem>>, vector<1x16x16x128xf32>
    %40 = vector.shape_cast %39 : vector<1x16x16x128xf32> to vector<16x16x128xf32>
    %41 = vector.shape_cast %40 : vector<16x16x128xf32> to vector<256x128xf32>
    %42 = arith.truncf %41 : vector<256x128xf32> to vector<256x128xbf16>
    %c5 = arith.constant 5 : index
    %c0_38 = arith.constant 0 : index
    %c0_39 = arith.constant 0 : index
    %43 = vector.load %arg2[%c5, %c0_38, %c0_39] : memref<9x128x128xbf16, #tpu.memory_space<vmem>>, vector<1x128x128xbf16>
    %44 = vector.shape_cast %43 : vector<1x128x128xbf16> to vector<128x128xbf16>
    %cst_40 = arith.constant dense<0.000000e+00> : vector<256x128xf32>
    %45 = tpu.matmul %42, %44, %cst_40 {dimension_numbers = #tpu.dot_dimension_numbers<[1], [0], [0], [1], [0, 0, 1, 1], [], []>} : vector<256x128xbf16>, vector<128x128xbf16>, vector<256x128xf32> -> vector<256x128xf32>
    %46 = arith.addf %38, %45 : vector<256x128xf32>
    %c0_41 = arith.constant 0 : index
    %c2_42 = arith.constant 2 : index
    %c0_43 = arith.constant 0 : index
    %c0_44 = arith.constant 0 : index
    %47 = vector.load %arg1[%c0_41, %c2_42, %c0_43, %c0_44] : memref<1x18x18x128xf32, #tpu.memory_space<vmem>>, vector<1x16x16x128xf32>
    %48 = vector.shape_cast %47 : vector<1x16x16x128xf32> to vector<16x16x128xf32>
    %49 = vector.shape_cast %48 : vector<16x16x128xf32> to vector<256x128xf32>
    %50 = arith.truncf %49 : vector<256x128xf32> to vector<256x128xbf16>
    %c6 = arith.constant 6 : index
    %c0_45 = arith.constant 0 : index
    %c0_46 = arith.constant 0 : index
    %51 = vector.load %arg2[%c6, %c0_45, %c0_46] : memref<9x128x128xbf16, #tpu.memory_space<vmem>>, vector<1x128x128xbf16>
    %52 = vector.shape_cast %51 : vector<1x128x128xbf16> to vector<128x128xbf16>
    %cst_47 = arith.constant dense<0.000000e+00> : vector<256x128xf32>
    %53 = tpu.matmul %50, %52, %cst_47 {dimension_numbers = #tpu.dot_dimension_numbers<[1], [0], [0], [1], [0, 0, 1, 1], [], []>} : vector<256x128xbf16>, vector<128x128xbf16>, vector<256x128xf32> -> vector<256x128xf32>
    %54 = arith.addf %46, %53 : vector<256x128xf32>
    %c0_48 = arith.constant 0 : index
    %c2_49 = arith.constant 2 : index
    %c1_50 = arith.constant 1 : index
    %c0_51 = arith.constant 0 : index
    %55 = vector.load %arg1[%c0_48, %c2_49, %c1_50, %c0_51] : memref<1x18x18x128xf32, #tpu.memory_space<vmem>>, vector<1x16x16x128xf32>
    %56 = vector.shape_cast %55 : vector<1x16x16x128xf32> to vector<16x16x128xf32>
    %57 = vector.shape_cast %56 : vector<16x16x128xf32> to vector<256x128xf32>
    %58 = arith.truncf %57 : vector<256x128xf32> to vector<256x128xbf16>
    %c7 = arith.constant 7 : index
    %c0_52 = arith.constant 0 : index
    %c0_53 = arith.constant 0 : index
    %59 = vector.load %arg2[%c7, %c0_52, %c0_53] : memref<9x128x128xbf16, #tpu.memory_space<vmem>>, vector<1x128x128xbf16>
    %60 = vector.shape_cast %59 : vector<1x128x128xbf16> to vector<128x128xbf16>
    %cst_54 = arith.constant dense<0.000000e+00> : vector<256x128xf32>
    %61 = tpu.matmul %58, %60, %cst_54 {dimension_numbers = #tpu.dot_dimension_numbers<[1], [0], [0], [1], [0, 0, 1, 1], [], []>} : vector<256x128xbf16>, vector<128x128xbf16>, vector<256x128xf32> -> vector<256x128xf32>
    %62 = arith.addf %54, %61 : vector<256x128xf32>
    %c0_55 = arith.constant 0 : index
    %c2_56 = arith.constant 2 : index
    %c2_57 = arith.constant 2 : index
    %c0_58 = arith.constant 0 : index
    %63 = vector.load %arg1[%c0_55, %c2_56, %c2_57, %c0_58] : memref<1x18x18x128xf32, #tpu.memory_space<vmem>>, vector<1x16x16x128xf32>
    %64 = vector.shape_cast %63 : vector<1x16x16x128xf32> to vector<16x16x128xf32>
    %65 = vector.shape_cast %64 : vector<16x16x128xf32> to vector<256x128xf32>
    %66 = arith.truncf %65 : vector<256x128xf32> to vector<256x128xbf16>
    %c8 = arith.constant 8 : index
    %c0_59 = arith.constant 0 : index
    %c0_60 = arith.constant 0 : index
    %67 = vector.load %arg2[%c8, %c0_59, %c0_60] : memref<9x128x128xbf16, #tpu.memory_space<vmem>>, vector<1x128x128xbf16>
    %68 = vector.shape_cast %67 : vector<1x128x128xbf16> to vector<128x128xbf16>
    %cst_61 = arith.constant dense<0.000000e+00> : vector<256x128xf32>
    %69 = tpu.matmul %66, %68, %cst_61 {dimension_numbers = #tpu.dot_dimension_numbers<[1], [0], [0], [1], [0, 0, 1, 1], [], []>} : vector<256x128xbf16>, vector<128x128xbf16>, vector<256x128xf32> -> vector<256x128xf32>
    %70 = arith.addf %62, %69 : vector<256x128xf32>
    %c0_62 = arith.constant 0 : index
    %c0_63 = arith.constant 0 : index
    %71 = vector.load %arg3[%c0_62, %c0_63] : memref<1x128xf32, #tpu.memory_space<vmem>>, vector<1x128xf32>
    %72 = vector.broadcast %71 : vector<1x128xf32> to vector<256x128xf32>
    %73 = arith.addf %70, %72 : vector<256x128xf32>
    %cst_64 = arith.constant dense<0xFF800000> : vector<128xf32>
    %74 = vector.multi_reduction <maximumf>, %73, %cst_64 [0] : vector<256x128xf32> to vector<128xf32>
    %75 = vector.shape_cast %74 : vector<128xf32> to vector<1x128xf32>
    %76 = vector.broadcast %75 : vector<1x128xf32> to vector<256x128xf32>
    %77 = arith.subf %73, %76 : vector<256x128xf32>
    %78 = math.exp %77 : vector<256x128xf32>
    %cst_65 = arith.constant dense<0.000000e+00> : vector<128xf32>
    %79 = vector.multi_reduction <add>, %78, %cst_65 [0] : vector<256x128xf32> to vector<128xf32>
    %80 = vector.shape_cast %79 : vector<128xf32> to vector<1x128xf32>
    %81 = vector.broadcast %80 : vector<1x128xf32> to vector<256x128xf32>
    %82 = arith.divf %78, %81 : vector<256x128xf32>
    %c0_66 = arith.constant 0 : index
    %c0_67 = arith.constant 0 : index
    %c0_68 = arith.constant 0 : index
    %83 = vector.load %arg6[%c0_66, %c0_67, %c0_68] : memref<1x256x128xf32, #tpu.memory_space<vmem>>, vector<1x256x128xf32>
    %84 = vector.shape_cast %83 : vector<1x256x128xf32> to vector<256x128xf32>
    %85 = vector.shape_cast %82 : vector<256x128xf32> to vector<1x256x128xf32>
    tpu.vector_store %arg6[%c0_66, %c0_67, %c0_68], %85 {strides = array<i32>} : memref<1x256x128xf32, #tpu.memory_space<vmem>>, vector<1x256x128xf32>,
    %c0_69 = arith.constant 0 : index
    %c0_70 = arith.constant 0 : index
    %86 = vector.load %arg4[%c0_69, %c0_70] : memref<1x128xf32, #tpu.memory_space<vmem>>, vector<1x128xf32>
    %87 = vector.broadcast %86 : vector<1x128xf32> to vector<256x128xf32>
    %88 = arith.mulf %82, %87 : vector<256x128xf32>
    %cst_71 = arith.constant dense<0.000000e+00> : vector<256xf32>
    %89 = vector.multi_reduction <add>, %88, %cst_71 [1] : vector<256x128xf32> to vector<256xf32>
    %90 = vector.shape_cast %89 : vector<256xf32> to vector<256x1xf32>
    %c0_72 = arith.constant 0 : index
    %c0_73 = arith.constant 0 : index
    %91 = vector.load %arg5[%c0_72, %c0_73] : memref<256x1xf32, #tpu.memory_space<vmem>>, vector<256x1xf32>
    %92 = arith.mulf %90, %91 : vector<256x1xf32>
    %c0_74 = arith.constant 0 : index
    %c0_75 = arith.constant 0 : index
    %c0_76 = arith.constant 0 : index
    %93 = vector.load %arg7[%c0_74, %c0_75, %c0_76] : memref<1x256x1xf32, #tpu.memory_space<vmem>>, vector<1x256x1xf32>
    %94 = vector.shape_cast %93 : vector<1x256x1xf32> to vector<256x1xf32>
    %95 = vector.shape_cast %92 : vector<256x1xf32> to vector<1x256x1xf32>
    tpu.vector_store %arg7[%c0_74, %c0_75, %c0_76], %95 {strides = array<i32>} : memref<1x256x1xf32, #tpu.memory_space<vmem>>, vector<1x256x1xf32>,
    return
  }
  func.func @transform_0(%arg0: i32) -> (i32, i32, i32, i32) {
    %c0_i32 = arith.constant 0 : i32
    %c0_i32_0 = arith.constant 0 : i32
    %c0_i32_1 = arith.constant 0 : i32
    %c0_i32_2 = arith.constant 0 : i32
    return %arg0, %c0_i32, %c0_i32_0, %c0_i32_1 : i32, i32, i32, i32
  }
  func.func @transform_1(%arg0: i32) -> (i32, i32, i32) {
    %c0_i32 = arith.constant 0 : i32
    %c0_i32_0 = arith.constant 0 : i32
    %c0_i32_1 = arith.constant 0 : i32
    %c0_i32_2 = arith.constant 0 : i32
    return %c0_i32, %c0_i32_0, %c0_i32_1 : i32, i32, i32
  }
  func.func @transform_2(%arg0: i32) -> (i32, i32) {
    %c0_i32 = arith.constant 0 : i32
    %c0_i32_0 = arith.constant 0 : i32
    %c0_i32_1 = arith.constant 0 : i32
    return %c0_i32, %c0_i32_0 : i32, i32
  }
  func.func @transform_3(%arg0: i32) -> (i32, i32) {
    %c0_i32 = arith.constant 0 : i32
    %c0_i32_0 = arith.constant 0 : i32
    %c0_i32_1 = arith.constant 0 : i32
    return %c0_i32, %c0_i32_0 : i32, i32
  }
  func.func @transform_4(%arg0: i32) -> (i32, i32) {
    %c0_i32 = arith.constant 0 : i32
    %c0_i32_0 = arith.constant 0 : i32
    %c0_i32_1 = arith.constant 0 : i32
    return %c0_i32, %c0_i32_0 : i32, i32
  }
  func.func @transform_5(%arg0: i32) -> (i32, i32, i32) {
    %c0_i32 = arith.constant 0 : i32
    %c0_i32_0 = arith.constant 0 : i32
    %c0_i32_1 = arith.constant 0 : i32
    return %arg0, %c0_i32, %c0_i32_0 : i32, i32, i32
  }
  func.func @transform_6(%arg0: i32) -> (i32, i32, i32) {
    %c0_i32 = arith.constant 0 : i32
    %c0_i32_0 = arith.constant 0 : i32
    %c0_i32_1 = arith.constant 0 : i32
    return %arg0, %c0_i32, %c0_i32_0 : i32, i32, i32
  }
}

</mosaic_0001>

<llo_original>
// kernel: attention_forward.2
$region0: #{attention_forward.2}
  #allocation0 [shape = 'u32[]', space=smem, size = 0x4, offset = 0x4, fixed_abs, tag = 'smem constant byte address 0x4 - core index']
  #allocation1 [shape = 'u32[72,128]{1,0:T(1,128)}', space=vmem, size = 0x9000, scoped, tag = 'internal scratch']
  %s0 = inlined_call_operand.vmem [shape: bf16[512,128], index: 0, kind: input, shape index: {}]
  %s1 = inlined_call_operand.vmem [shape: bf16[128,512], index: 1, kind: input, shape index: {}]
  %s2 = inlined_call_operand.vmem [shape: f32[1,512], index: 2, kind: input, shape index: {}]
  %s3 = inlined_call_operand.vmem [shape: bf16[512,128], index: 3, kind: input, shape index: {}]
  %s4 = inlined_call_operand.vmem [shape: f32[1,128], index: 4, kind: input, shape index: {}]
  %s5 = inlined_call_operand.vmem [shape: f32[1,128], index: 5, kind: input, shape index: {}]
  %s6 = inlined_call_operand.vmem [shape: f32[512,128], index: 6, kind: output, shape index: {}]
  %s7 = sld [smem:[#allocation0]]
  $region57: #{attention_forward.2} parent=0
    _
  %s9 = ssub.s32 1, %s7
  %s10 = scalar_select 0, %s9, %s7
  loop: start=0, step=1, limit=4
  $region2: #{attention_forward.2} parent=0 // loop_pre_header
    _
  $region3: #{attention_forward.2} parent=0 // loop_header
    %s12 = sphi 0, %s16
    %p13 = scmp.ge.s32.totalorder %s12, 4
    %s22 = sphi 0, %s24
    %s25 = sphi 0, %s22
    %s26 = sphi 0, %s25
    %s42 = sphi 0, %s26
    %s46 = sphi 0, %s46
    %s48 = sphi 0, %s46
    %s49 = sphi 0, %s48
    %s63 = sphi 0, %s49
    %s67 = sphi 0, %s67
    %s69 = sphi 0, %s67
    %s70 = sphi 0, %s69
    %s84 = sphi 0, %s70
    %s88 = sphi 0, %s88
    %s90 = sphi 0, %s88
    %s91 = sphi 0, %s90
    %s105 = sphi 0, %s91
    %s109 = sphi 0, %s109
    %s111 = sphi 0, %s109
    %s112 = sphi 0, %s111
    %s126 = sphi 0, %s112
    %s130 = sphi 0, %s130
    %s132 = sphi 0, %s130
    %s133 = sphi 0, %s132
    %s147 = sphi 0, %s133
    %s153 = sphi 0, %s155
    %s156 = sphi 0, %s153
    %s157 = sphi 0, %s156
    %s173 = sphi 0, %s157
  $region4: #{attention_forward.2} parent=0 // loop_header_branch
    %15 = sbr.rel (%p13) target = $region8
  $region5: #{attention_forward.2} parent=0 // loop_body
    %s17 = ssub.s32 %s12, 1
    %s18 = ssub.s32 %s12, 2
    %s19 = sadd.s32 %s12, 1
    %s20 = ssub.s32 %s12, %s19
    %p21 = scmp.eq.s32.totalorder %s20, 0
    %s23 = sadd.s32 %s22, 1
    %s24 = scalar_select %p21, %s22, %s23
    %p27 = pneg %p21
    %p28 = scmp.eq.s32.totalorder %s12, 1
    %p29 = por %p27, %p28
    %p30 = scmp.ne.s32.totalorder %s22, %s25
    %p31 = scmp.eq.s32.totalorder %s12, 0
    %p32 = por %p30, %p31
    %p33 = scmp.ne.s32.totalorder %s22, %s25
    %p34 = scmp.eq.s32.totalorder %s17, 1
    %p35 = por %p33, %p34
    %p36 = scmp.ne.s32.totalorder %s25, %s26
    %p37 = scmp.eq.s32.totalorder %s17, 0
    %p38 = por %p36, %p37
    %p39 = scmp.ne.s32.totalorder %s25, %s26
    %p40 = scmp.eq.s32.totalorder %s18, 1
    %p41 = por %p39, %p40
    %p43 = scmp.ne.s32.totalorder %s26, %s42
    %p44 = scmp.eq.s32.totalorder %s18, 0
    %p45 = por %p43, %p44
    %s47 = sadd.s32 %s46, 1
    %p50 = scmp.eq.s32.totalorder %s12, 1
    %p51 = scmp.ne.s32.totalorder %s46, %s48
    %p52 = scmp.eq.s32.totalorder %s12, 0
    %p53 = por %p51, %p52
    %p54 = scmp.ne.s32.totalorder %s46, %s48
    %p55 = scmp.eq.s32.totalorder %s17, 1
    %p56 = por %p54, %p55
    %p57 = scmp.ne.s32.totalorder %s48, %s49
    %p58 = scmp.eq.s32.totalorder %s17, 0
    %p59 = por %p57, %p58
    %p60 = scmp.ne.s32.totalorder %s48, %s49
    %p61 = scmp.eq.s32.totalorder %s18, 1
    %p62 = por %p60, %p61
    %p64 = scmp.ne.s32.totalorder %s49, %s63
    %p65 = scmp.eq.s32.totalorder %s18, 0
    %p66 = por %p64, %p65
    %s68 = sadd.s32 %s67, 1
    %p71 = scmp.eq.s32.totalorder %s12, 1
    %p72 = scmp.ne.s32.totalorder %s67, %s69
    %p73 = scmp.eq.s32.totalorder %s12, 0
    %p74 = por %p72, %p73
    %p75 = scmp.ne.s32.totalorder %s67, %s69
    %p76 = scmp.eq.s32.totalorder %s17, 1
    %p77 = por %p75, %p76
    %p78 = scmp.ne.s32.totalorder %s69, %s70
    %p79 = scmp.eq.s32.totalorder %s17, 0
    %p80 = por %p78, %p79
    %p81 = scmp.ne.s32.totalorder %s69, %s70
    %p82 = scmp.eq.s32.totalorder %s18, 1
    %p83 = por %p81, %p82
    %p85 = scmp.ne.s32.totalorder %s70, %s84
    %p86 = scmp.eq.s32.totalorder %s18, 0
    %p87 = por %p85, %p86
    %s89 = sadd.s32 %s88, 1
    %p92 = scmp.eq.s32.totalorder %s12, 1
    %p93 = scmp.ne.s32.totalorder %s88, %s90
    %p94 = scmp.eq.s32.totalorder %s12, 0
    %p95 = por %p93, %p94
    %p96 = scmp.ne.s32.totalorder %s88, %s90
    %p97 = scmp.eq.s32.totalorder %s17, 1
    %p98 = por %p96, %p97
    %p99 = scmp.ne.s32.totalorder %s90, %s91
    %p100 = scmp.eq.s32.totalorder %s17, 0
    %p101 = por %p99, %p100
    %p102 = scmp.ne.s32.totalorder %s90, %s91
    %p103 = scmp.eq.s32.totalorder %s18, 1
    %p104 = por %p102, %p103
    %p106 = scmp.ne.s32.totalorder %s91, %s105
    %p107 = scmp.eq.s32.totalorder %s18, 0
    %p108 = por %p106, %p107
    %s110 = sadd.s32 %s109, 1
    %p113 = scmp.eq.s32.totalorder %s12, 1
    %p114 = scmp.ne.s32.totalorder %s109, %s111
    %p115 = scmp.eq.s32.totalorder %s12, 0
    %p116 = por %p114, %p115
    %p117 = scmp.ne.s32.totalorder %s109, %s111
    %p118 = scmp.eq.s32.totalorder %s17, 1
    %p119 = por %p117, %p118
    %p120 = scmp.ne.s32.totalorder %s111, %s112
    %p121 = scmp.eq.s32.totalorder %s17, 0
    %p122 = por %p120, %p121
    %p123 = scmp.ne.s32.totalorder %s111, %s112
    %p124 = scmp.eq.s32.totalorder %s18, 1
    %p125 = por %p123, %p124
    %p127 = scmp.ne.s32.totalorder %s112, %s126
    %p128 = scmp.eq.s32.totalorder %s18, 0
    %p129 = por %p127, %p128
    %s131 = sadd.s32 %s130, 1
    %p134 = scmp.eq.s32.totalorder %s12, 1
    %p135 = scmp.ne.s32.totalorder %s130, %s132
    %p136 = scmp.eq.s32.totalorder %s12, 0
    %p137 = por %p135, %p136
    %p138 = scmp.ne.s32.totalorder %s130, %s132
    %p139 = scmp.eq.s32.totalorder %s17, 1
    %p140 = por %p138, %p139
    %p141 = scmp.ne.s32.totalorder %s132, %s133
    %p142 = scmp.eq.s32.totalorder %s17, 0
    %p143 = por %p141, %p142
    %p144 = scmp.ne.s32.totalorder %s132, %s133
    %p145 = scmp.eq.s32.totalorder %s18, 1
    %p146 = por %p144, %p145
    %p148 = scmp.ne.s32.totalorder %s133, %s147
    %p149 = scmp.eq.s32.totalorder %s18, 0
    %p150 = por %p148, %p149
    %s151 = ssub.s32 %s12, %s19
    %p152 = scmp.eq.s32.totalorder %s151, 0
    %s154 = sadd.s32 %s153, 1
    %s155 = scalar_select %p152, %s153, %s154
    %p158 = pneg %p152
    %p159 = scmp.eq.s32.totalorder %s12, 1
    %p160 = por %p158, %p159
    %p161 = scmp.ne.s32.totalorder %s153, %s156
    %p162 = scmp.eq.s32.totalorder %s12, 0
    %p163 = por %p161, %p162
    %p164 = scmp.ne.s32.totalorder %s153, %s156
    %p165 = scmp.eq.s32.totalorder %s17, 1
    %p166 = por %p164, %p165
    %p167 = scmp.ne.s32.totalorder %s156, %s157
    %p168 = scmp.eq.s32.totalorder %s17, 0
    %p169 = por %p167, %p168
    %p170 = scmp.ne.s32.totalorder %s156, %s157
    %p171 = scmp.eq.s32.totalorder %s18, 1
    %p172 = por %p170, %p171
    %p174 = scmp.ne.s32.totalorder %s157, %s173
    %p175 = scmp.eq.s32.totalorder %s18, 0
    %p176 = por %p174, %p175
    %p177 = scmp.le.s32.totalorder 1, %s12
    %p178 = scmp.lt.s32.totalorder %s12, 3
    %p179 = pnand %p177, %p178
    %p180 = pneg %p179
    // Predicated region
    $region9: #{attention_forward.2} parent=5 // pred_check
      _
    $region10: #{attention_forward.2} parent=5 // pred_check_branch
      %182 = sbr.rel (%p179) target = $region12
    $region11: #{attention_forward.2} parent=5 // pred_region
      %s183 = ssub.s32 %s12, 1
      // Predicated region
      $region13: #{attention_forward.2} parent=11 // pred_check
        %p184 = pneg %p59
      $region14: #{attention_forward.2} parent=11 // pred_check_branch
        %186 = sbr.rel (%p184) target = $region16
      $region15: #{attention_forward.2} parent=11 // pred_region
        _
      $region16: #{attention_forward.2} parent=11 // pred_fallthru
        _
      // Predicated region
      $region17: #{attention_forward.2} parent=11 // pred_check
        %p187 = pneg %p80
      $region18: #{attention_forward.2} parent=11 // pred_check_branch
        %189 = sbr.rel (%p187) target = $region20
      $region19: #{attention_forward.2} parent=11 // pred_region
        _
      $region20: #{attention_forward.2} parent=11 // pred_fallthru
        _
      // Predicated region
      $region21: #{attention_forward.2} parent=11 // pred_check
        %p190 = pneg %p101
      $region22: #{attention_forward.2} parent=11 // pred_check_branch
        %192 = sbr.rel (%p190) target = $region24
      $region23: #{attention_forward.2} parent=11 // pred_region
        _
      $region24: #{attention_forward.2} parent=11 // pred_fallthru
        _
      // Predicated region
      $region25: #{attention_forward.2} parent=11 // pred_check
        %p193 = pneg %p122
      $region26: #{attention_forward.2} parent=11 // pred_check_branch
        %195 = sbr.rel (%p193) target = $region28
      $region27: #{attention_forward.2} parent=11 // pred_region
        _
      $region28: #{attention_forward.2} parent=11 // pred_fallthru
        _
      // Predicated region
      $region29: #{attention_forward.2} parent=11 // pred_check
        %p196 = pneg %p143
      $region30: #{attention_forward.2} parent=11 // pred_check_branch
        %198 = sbr.rel (%p196) target = $region32
      $region31: #{attention_forward.2} parent=11 // pred_region
        _
      $region32: #{attention_forward.2} parent=11 // pred_fallthru
        _
    $region12: #{attention_forward.2} parent=5 // pred_fallthru
      _
    %p199 = scmp.lt.s32.totalorder %s12, 2
    // Predicated region
    $region33: #{attention_forward.2} parent=5 // pred_check
      %p200 = pneg %p199
    $region34: #{attention_forward.2} parent=5 // pred_check_branch
      %202 = sbr.rel (%p200) target = $region36
    $region35: #{attention_forward.2} parent=5 // pred_region
      // Predicated region
      $region37: #{attention_forward.2} parent=35 // pred_check
        %p203 = pneg %p32
      $region38: #{attention_forward.2} parent=35 // pred_check_branch
        %205 = sbr.rel (%p203) target = $region40
      $region39: #{attention_forward.2} parent=35 // pred_region
        %s206 = smul.u32 32, %s12
        %p207 = scmp.lt.s32.totalorder %s206, 63
        %s208 = scalar_select %p207, %s206, 63
        %s209 = smul.addr %s208, 4
        %s210 = scalar_lea.vmem %s0, %s209
        %s211 = smul.u32 32, %s12
      $region40: #{attention_forward.2} parent=35 // pred_fallthru
        _
    $region36: #{attention_forward.2} parent=5 // pred_fallthru
      _
    %p212 = scmp.le.s32.totalorder 1, %s12
    %p213 = scmp.lt.s32.totalorder %s12, 3
    %p214 = pnand %p212, %p213
    %p215 = pneg %p214
    // Predicated region
    $region41: #{attention_forward.2} parent=5 // pred_check
      _
    $region42: #{attention_forward.2} parent=5 // pred_check_branch
      %217 = sbr.rel (%p214) target = $region44
    $region43: #{attention_forward.2} parent=5 // pred_region
      %s218 = ssub.s32 %s12, 1
      %s219 = smul.u32 32, %s17
      %p220 = scmp.lt.s32.totalorder %s219, 63
      %s221 = scalar_select %p220, %s219, 63
      %s222 = smul.addr %s221, 4
      %s223 = scalar_lea.vmem %s0, %s222
      %p224 = pneg %p38
      %p225 = pneg %p35
      %p226 = pneg %p59
      %p227 = pneg %p56
      %p228 = pneg %p80
      %p229 = pneg %p77
      %p230 = pneg %p101
      %p231 = pneg %p98
      %p232 = pneg %p122
      %p233 = pneg %p119
      %p234 = pneg %p143
      %p235 = pneg %p140
      %p236 = pneg %p169
      %p237 = pneg %p166
      %s238 = smul.u32 32, %s17
      %p239 = scmp.lt.s32.totalorder %s238, 63
      %s240 = scalar_select %p239, %s238, 63
      %s241 = smul.addr %s240, 8
      %s242 = scalar_lea.vmem %s6, %s241
      %s243 = smul.u32 32, %s17
      %p244 = scmp.lt.s32.totalorder %s243, 63
      %s245 = scalar_select %p244, %s243, 63
      %s246 = smul.addr %s245, 4
      %s247 = scalar_lea.vmem %s0, %s246
      %s248 = smul.u32 32, %s17
      %s249 = smul.u32 32, %s17
      %p250 = scmp.lt.s32.totalorder %s249, 63
      %s251 = scalar_select %p250, %s249, 63
      %s252 = smul.addr %s251, 8
      %s253 = scalar_lea.vmem %s6, %s252
      %s254 = smul.u32 32, %s17
      %v255 = vld [vmem:[%s247] sm:$0xf]
      %v256 = vld [vmem:[%s247 + $0x4] sm:$0xf]
      %v257 = vld [vmem:[%s247 + $0x8] sm:$0xf]
      %v258 = vld [vmem:[%s247 + $0xc] sm:$0xf]
      %v259 = vld [vmem:[%s247 + $0x10] sm:$0xf]
      %v260 = vld [vmem:[%s247 + $0x14] sm:$0xf]
      %v261 = vld [vmem:[%s247 + $0x18] sm:$0xf]
      %v262 = vld [vmem:[%s247 + $0x1c] sm:$0xf]
      %v263 = vld [vmem:[%s247 + $0x20] sm:$0xf]
      %v264 = vld [vmem:[%s247 + $0x24] sm:$0xf]
      %v265 = vld [vmem:[%s247 + $0x28] sm:$0xf]
      %v266 = vld [vmem:[%s247 + $0x2c] sm:$0xf]
      %v267 = vld [vmem:[%s247 + $0x30] sm:$0xf]
      %v268 = vld [vmem:[%s247 + $0x34] sm:$0xf]
      %v269 = vld [vmem:[%s247 + $0x38] sm:$0xf]
      %v270 = vld [vmem:[%s247 + $0x3c] sm:$0xf]
      %v271 = vld [vmem:[%s247 + $0x40] sm:$0xf]
      %v272 = vld [vmem:[%s247 + $0x44] sm:$0xf]
      %v273 = vld [vmem:[%s247 + $0x48] sm:$0xf]
      %v274 = vld [vmem:[%s247 + $0x4c] sm:$0xf]
      %v275 = vld [vmem:[%s247 + $0x50] sm:$0xf]
      %v276 = vld [vmem:[%s247 + $0x54] sm:$0xf]
      %v277 = vld [vmem:[%s247 + $0x58] sm:$0xf]
      %v278 = vld [vmem:[%s247 + $0x5c] sm:$0xf]
      %v279 = vld [vmem:[%s247 + $0x60] sm:$0xf]
      %v280 = vld [vmem:[%s247 + $0x64] sm:$0xf]
      %v281 = vld [vmem:[%s247 + $0x68] sm:$0xf]
      %v282 = vld [vmem:[%s247 + $0x6c] sm:$0xf]
      %v283 = vld [vmem:[%s247 + $0x70] sm:$0xf]
      %v284 = vld [vmem:[%s247 + $0x74] sm:$0xf]
      %v285 = vld [vmem:[%s247 + $0x78] sm:$0xf]
      %v286 = vld [vmem:[%s247 + $0x7c] sm:$0xf]
      %v287 = vld [vmem:[%s1] sm:$0xff]
      %v288 = vld [vmem:[%s1 + $0x8] sm:$0xff]
      %v289 = vld [vmem:[%s1 + $0x10] sm:$0xff]
      %v290 = vld [vmem:[%s1 + $0x18] sm:$0xff]
      %v291 = vld [vmem:[%s1 + $0x20] sm:$0xff]
      %v292 = vld [vmem:[%s1 + $0x28] sm:$0xff]
      %v293 = vld [vmem:[%s1 + $0x30] sm:$0xff]
      %v294 = vld [vmem:[%s1 + $0x38] sm:$0xff]
      %v295 = vld [vmem:[%s1 + $0x40] sm:$0xff]
      %v296 = vld [vmem:[%s1 + $0x48] sm:$0xff]
      %v297 = vld [vmem:[%s1 + $0x50] sm:$0xff]
      %v298 = vld [vmem:[%s1 + $0x58] sm:$0xff]
      %v299 = vld [vmem:[%s1 + $0x60] sm:$0xff]
      %v300 = vld [vmem:[%s1 + $0x68] sm:$0xff]
      %v301 = vld [vmem:[%s1 + $0x70] sm:$0xff]
      %v302 = vld [vmem:[%s1 + $0x78] sm:$0xff]
      %v303 = vld [vmem:[%s1 + $0x80] sm:$0xff]
      %v304 = vld [vmem:[%s1 + $0x88] sm:$0xff]
      %v305 = vld [vmem:[%s1 + $0x90] sm:$0xff]
      %v306 = vld [vmem:[%s1 + $0x98] sm:$0xff]
      %v307 = vld [vmem:[%s1 + $0xa0] sm:$0xff]
      %v308 = vld [vmem:[%s1 + $0xa8] sm:$0xff]
      %v309 = vld [vmem:[%s1 + $0xb0] sm:$0xff]
      %v310 = vld [vmem:[%s1 + $0xb8] sm:$0xff]
      %v311 = vld [vmem:[%s1 + $0xc0] sm:$0xff]
      %v312 = vld [vmem:[%s1 + $0xc8] sm:$0xff]
      %v313 = vld [vmem:[%s1 + $0xd0] sm:$0xff]
      %v314 = vld [vmem:[%s1 + $0xd8] sm:$0xff]
      %v315 = vld [vmem:[%s1 + $0xe0] sm:$0xff]
      %v316 = vld [vmem:[%s1 + $0xe8] sm:$0xff]
      %v317 = vld [vmem:[%s1 + $0xf0] sm:$0xff]
      %v318 = vld [vmem:[%s1 + $0xf8] sm:$0xff]
      %v319 = vld [vmem:[%s2] sm:$0xf]
      %v321 = vperm.slane %v319, 0
      %v322 = vperm.slane %v319, 1
      %v323 = vperm.slane %v319, 2
      %v324 = vperm.slane %v319, 3
      %v361 = vunpack.c.l.b16 %v255
      %v362 = vunpack.c.l.b16 %v256
      %v363 = vunpack.c.l.b16 %v257
      %v364 = vunpack.c.l.b16 %v258
      %v365 = vunpack.c.l.b16 %v259
      %v366 = vunpack.c.l.b16 %v260
      %v367 = vunpack.c.l.b16 %v261
      %v368 = vunpack.c.l.b16 %v262
      %v369 = vunpack.c.l.b16 %v263
      %v370 = vunpack.c.l.b16 %v264
      %v371 = vunpack.c.l.b16 %v265
      %v372 = vunpack.c.l.b16 %v266
      %v373 = vunpack.c.l.b16 %v267
      %v374 = vunpack.c.l.b16 %v268
      %v375 = vunpack.c.l.b16 %v269
      %v376 = vunpack.c.l.b16 %v270
      %v377 = vunpack.c.l.b16 %v271
      %v378 = vunpack.c.l.b16 %v272
      %v379 = vunpack.c.l.b16 %v273
      %v380 = vunpack.c.l.b16 %v274
      %v381 = vunpack.c.l.b16 %v275
      %v382 = vunpack.c.l.b16 %v276
      %v383 = vunpack.c.l.b16 %v277
      %v384 = vunpack.c.l.b16 %v278
      %v385 = vunpack.c.l.b16 %v279
      %v386 = vunpack.c.l.b16 %v280
      %v387 = vunpack.c.l.b16 %v281
      %v388 = vunpack.c.l.b16 %v282
      %v389 = vunpack.c.l.b16 %v283
      %v390 = vunpack.c.l.b16 %v284
      %v391 = vunpack.c.l.b16 %v285
      %v392 = vunpack.c.l.b16 %v286
      %v393 = vpack.c.b16 %v362, %v361
      %v394 = vpack.c.b16 %v364, %v363
      %v395 = vpack.c.b16 %v366, %v365
      %v396 = vpack.c.b16 %v368, %v367
      %v397 = vpack.c.b16 %v370, %v369
      %v398 = vpack.c.b16 %v372, %v371
      %v399 = vpack.c.b16 %v374, %v373
      %v400 = vpack.c.b16 %v376, %v375
      %v401 = vpack.c.b16 %v378, %v377
      %v402 = vpack.c.b16 %v380, %v379
      %v403 = vpack.c.b16 %v382, %v381
      %v404 = vpack.c.b16 %v384, %v383
      %v405 = vpack.c.b16 %v386, %v385
      %v406 = vpack.c.b16 %v388, %v387
      %v407 = vpack.c.b16 %v390, %v389
      %v408 = vpack.c.b16 %v392, %v391
      %v457 = vunpack.c.l.b16 %v287
      %v458 = vunpack.c.h.b16 %v287
      %v459 = vunpack.c.l.b16 %v288
      %v460 = vunpack.c.h.b16 %v288
      %v461 = vunpack.c.l.b16 %v289
      %v462 = vunpack.c.h.b16 %v289
      %v463 = vunpack.c.l.b16 %v290
      %v464 = vunpack.c.h.b16 %v290
      %v465 = vunpack.c.l.b16 %v291
      %v466 = vunpack.c.h.b16 %v291
      %v467 = vunpack.c.l.b16 %v292
      %v468 = vunpack.c.h.b16 %v292
      %v469 = vunpack.c.l.b16 %v293
      %v470 = vunpack.c.h.b16 %v293
      %v471 = vunpack.c.l.b16 %v294
      %v472 = vunpack.c.h.b16 %v294
      %v473 = vunpack.c.l.b16 %v295
      %v474 = vunpack.c.h.b16 %v295
      %v475 = vunpack.c.l.b16 %v296
      %v476 = vunpack.c.h.b16 %v296
      %v477 = vunpack.c.l.b16 %v297
      %v478 = vunpack.c.h.b16 %v297
      %v479 = vunpack.c.l.b16 %v298
      %v480 = vunpack.c.h.b16 %v298
      %v481 = vunpack.c.l.b16 %v299
      %v482 = vunpack.c.h.b16 %v299
      %v483 = vunpack.c.l.b16 %v300
      %v484 = vunpack.c.h.b16 %v300
      %v485 = vunpack.c.l.b16 %v301
      %v486 = vunpack.c.h.b16 %v301
      %v487 = vunpack.c.l.b16 %v302
      %v488 = vunpack.c.h.b16 %v302
      %v489 = vunpack.c.l.b16 %v303
      %v490 = vunpack.c.h.b16 %v303
      %v491 = vunpack.c.l.b16 %v304
      %v492 = vunpack.c.h.b16 %v304
      %v493 = vunpack.c.l.b16 %v305
      %v494 = vunpack.c.h.b16 %v305
      %v495 = vunpack.c.l.b16 %v306
      %v496 = vunpack.c.h.b16 %v306
      %v497 = vunpack.c.l.b16 %v307
      %v498 = vunpack.c.h.b16 %v307
      %v499 = vunpack.c.l.b16 %v308
      %v500 = vunpack.c.h.b16 %v308
      %v501 = vunpack.c.l.b16 %v309
      %v502 = vunpack.c.h.b16 %v309
      %v503 = vunpack.c.l.b16 %v310
      %v504 = vunpack.c.h.b16 %v310
      %v505 = vunpack.c.l.b16 %v311
      %v506 = vunpack.c.h.b16 %v311
      %v507 = vunpack.c.l.b16 %v312
      %v508 = vunpack.c.h.b16 %v312
      %v509 = vunpack.c.l.b16 %v313
      %v510 = vunpack.c.h.b16 %v313
      %v511 = vunpack.c.l.b16 %v314
      %v512 = vunpack.c.h.b16 %v314
      %v513 = vunpack.c.l.b16 %v315
      %v514 = vunpack.c.h.b16 %v315
      %v515 = vunpack.c.l.b16 %v316
      %v516 = vunpack.c.h.b16 %v316
      %v517 = vunpack.c.l.b16 %v317
      %v518 = vunpack.c.h.b16 %v317
      %v519 = vunpack.c.l.b16 %v318
      %v520 = vunpack.c.h.b16 %v318
      %v521 = vpack.c.b16 %v461, %v457
      %v522 = vpack.c.b16 %v462, %v458
      %v523 = vpack.c.b16 %v463, %v459
      %v524 = vpack.c.b16 %v464, %v460
      %v525 = vpack.c.b16 %v469, %v465
      %v526 = vpack.c.b16 %v470, %v466
      %v527 = vpack.c.b16 %v471, %v467
      %v528 = vpack.c.b16 %v472, %v468
      %v529 = vpack.c.b16 %v477, %v473
      %v530 = vpack.c.b16 %v478, %v474
      %v531 = vpack.c.b16 %v479, %v475
      %v532 = vpack.c.b16 %v480, %v476
      %v533 = vpack.c.b16 %v485, %v481
      %v534 = vpack.c.b16 %v486, %v482
      %v535 = vpack.c.b16 %v487, %v483
      %v536 = vpack.c.b16 %v488, %v484
      %v537 = vpack.c.b16 %v493, %v489
      %v538 = vpack.c.b16 %v494, %v490
      %v539 = vpack.c.b16 %v495, %v491
      %v540 = vpack.c.b16 %v496, %v492
      %v541 = vpack.c.b16 %v501, %v497
      %v542 = vpack.c.b16 %v502, %v498
      %v543 = vpack.c.b16 %v503, %v499
      %v544 = vpack.c.b16 %v504, %v500
      %v545 = vpack.c.b16 %v509, %v505
      %v546 = vpack.c.b16 %v510, %v506
      %v547 = vpack.c.b16 %v511, %v507
      %v548 = vpack.c.b16 %v512, %v508
      %v549 = vpack.c.b16 %v517, %v513
      %v550 = vpack.c.b16 %v518, %v514
      %v551 = vpack.c.b16 %v519, %v515
      %v552 = vpack.c.b16 %v520, %v516
      %585 = vmatpush.bf16.msra.mxu0 %v549
      %586 = vmatpush.bf16.msra.mxu0 %v545
      %587 = vmatpush.bf16.msra.mxu0 %v541
      %588 = vmatpush.bf16.msra.mxu0 %v537
      %589 = vmatpush.bf16.msra.mxu0 %v533
      %590 = vmatpush.bf16.msra.mxu0 %v529
      %591 = vmatpush.bf16.msra.mxu0 %v525
      %592 = vmatpush.bf16.msra.mxu0 %v521
      %593 = vmatmul.bf16.gmra.mxu0 %v393
      %v594 = vpop.f32.mrf.mxu0
      %v595 = vadd.f32 %v321, %v594
      %v596 = vpop.f32.mrf.mxu0
      %v597 = vadd.f32 %v321, %v596
      %598 = vmatmul.bf16.gmra.mxu0 %v394
      %v599 = vpop.f32.mrf.mxu0
      %v600 = vadd.f32 %v321, %v599
      %v601 = vpop.f32.mrf.mxu0
      %v602 = vadd.f32 %v321, %v601
      %603 = vmatmul.bf16.gmra.mxu0 %v395
      %v604 = vpop.f32.mrf.mxu0
      %v605 = vadd.f32 %v321, %v604
      %v606 = vpop.f32.mrf.mxu0
      %v607 = vadd.f32 %v321, %v606
      %608 = vmatmul.bf16.gmra.mxu0 %v396
      %v609 = vpop.f32.mrf.mxu0
      %v610 = vadd.f32 %v321, %v609
      %v611 = vpop.f32.mrf.mxu0
      %v612 = vadd.f32 %v321, %v611
      %613 = vmatmul.bf16.gmra.mxu0 %v397
      %v614 = vpop.f32.mrf.mxu0
      %v615 = vadd.f32 %v321, %v614
      %v616 = vpop.f32.mrf.mxu0
      %v617 = vadd.f32 %v321, %v616
      %618 = vmatmul.bf16.gmra.mxu0 %v398
      %v619 = vpop.f32.mrf.mxu0
      %v620 = vadd.f32 %v321, %v619
      %v621 = vpop.f32.mrf.mxu0
      %v622 = vadd.f32 %v321, %v621
      %623 = vmatmul.bf16.gmra.mxu0 %v399
      %v624 = vpop.f32.mrf.mxu0
      %v625 = vadd.f32 %v321, %v624
      %v626 = vpop.f32.mrf.mxu0
      %v627 = vadd.f32 %v321, %v626
      %628 = vmatmul.bf16.gmra.mxu0 %v400
      %v629 = vpop.f32.mrf.mxu0
      %v630 = vadd.f32 %v321, %v629
      %v631 = vpop.f32.mrf.mxu0
      %v632 = vadd.f32 %v321, %v631
      %633 = vmatmul.bf16.gmra.mxu0 %v401
      %v634 = vpop.f32.mrf.mxu0
      %v635 = vadd.f32 %v321, %v634
      %v636 = vpop.f32.mrf.mxu0
      %v637 = vadd.f32 %v321, %v636
      %638 = vmatmul.bf16.gmra.mxu0 %v402
      %v639 = vpop.f32.mrf.mxu0
      %v640 = vadd.f32 %v321, %v639
      %v641 = vpop.f32.mrf.mxu0
      %v642 = vadd.f32 %v321, %v641
      %643 = vmatmul.bf16.gmra.mxu0 %v403
      %v644 = vpop.f32.mrf.mxu0
      %v645 = vadd.f32 %v321, %v644
      %v646 = vpop.f32.mrf.mxu0
      %v647 = vadd.f32 %v321, %v646
      %648 = vmatmul.bf16.gmra.mxu0 %v404
      %v649 = vpop.f32.mrf.mxu0
      %v650 = vadd.f32 %v321, %v649
      %v651 = vpop.f32.mrf.mxu0
      %v652 = vadd.f32 %v321, %v651
      %653 = vmatmul.bf16.gmra.mxu0 %v405
      %v654 = vpop.f32.mrf.mxu0
      %v655 = vadd.f32 %v321, %v654
      %v656 = vpop.f32.mrf.mxu0
      %v657 = vadd.f32 %v321, %v656
      %658 = vmatmul.bf16.gmra.mxu0 %v406
      %v659 = vpop.f32.mrf.mxu0
      %v660 = vadd.f32 %v321, %v659
      %v661 = vpop.f32.mrf.mxu0
      %v662 = vadd.f32 %v321, %v661
      %663 = vmatmul.bf16.gmra.mxu0 %v407
      %v664 = vpop.f32.mrf.mxu0
      %v665 = vadd.f32 %v321, %v664
      %v666 = vpop.f32.mrf.mxu0
      %v667 = vadd.f32 %v321, %v666
      %668 = vmatmul.bf16.gmra.mxu0 %v408
      %v669 = vpop.f32.mrf.mxu0
      %v670 = vadd.f32 %v321, %v669
      %v671 = vpop.f32.mrf.mxu0
      %v672 = vadd.f32 %v321, %v671
      %673 = vdwg.mxu0
      %674 = vmatpush.bf16.msra.mxu0 %v550
      %675 = vmatpush.bf16.msra.mxu0 %v546
      %676 = vmatpush.bf16.msra.mxu0 %v542
      %677 = vmatpush.bf16.msra.mxu0 %v538
      %678 = vmatpush.bf16.msra.mxu0 %v534
      %679 = vmatpush.bf16.msra.mxu0 %v530
      %680 = vmatpush.bf16.msra.mxu0 %v526
      %681 = vmatpush.bf16.msra.mxu0 %v522
      %682 = vmatmul.bf16.gmra.mxu0 %v393
      %v683 = vpop.f32.mrf.mxu0
      %v684 = vadd.f32 %v322, %v683
      %v685 = vpop.f32.mrf.mxu0
      %v686 = vadd.f32 %v322, %v685
      %687 = vmatmul.bf16.gmra.mxu0 %v394
      %v688 = vpop.f32.mrf.mxu0
      %v689 = vadd.f32 %v322, %v688
      %v690 = vpop.f32.mrf.mxu0
      %v691 = vadd.f32 %v322, %v690
      %692 = vmatmul.bf16.gmra.mxu0 %v395
      %v693 = vpop.f32.mrf.mxu0
      %v694 = vadd.f32 %v322, %v693
      %v695 = vpop.f32.mrf.mxu0
      %v696 = vadd.f32 %v322, %v695
      %697 = vmatmul.bf16.gmra.mxu0 %v396
      %v698 = vpop.f32.mrf.mxu0
      %v699 = vadd.f32 %v322, %v698
      %v700 = vpop.f32.mrf.mxu0
      %v701 = vadd.f32 %v322, %v700
      %702 = vmatmul.bf16.gmra.mxu0 %v397
      %v703 = vpop.f32.mrf.mxu0
      %v704 = vadd.f32 %v322, %v703
      %v705 = vpop.f32.mrf.mxu0
      %v706 = vadd.f32 %v322, %v705
      %707 = vmatmul.bf16.gmra.mxu0 %v398
      %v708 = vpop.f32.mrf.mxu0
      %v709 = vadd.f32 %v322, %v708
      %v710 = vpop.f32.mrf.mxu0
      %v711 = vadd.f32 %v322, %v710
      %712 = vmatmul.bf16.gmra.mxu0 %v399
      %v713 = vpop.f32.mrf.mxu0
      %v714 = vadd.f32 %v322, %v713
      %v715 = vpop.f32.mrf.mxu0
      %v716 = vadd.f32 %v322, %v715
      %717 = vmatmul.bf16.gmra.mxu0 %v400
      %v718 = vpop.f32.mrf.mxu0
      %v719 = vadd.f32 %v322, %v718
      %v720 = vpop.f32.mrf.mxu0
      %v721 = vadd.f32 %v322, %v720
      %722 = vmatmul.bf16.gmra.mxu0 %v401
      %v723 = vpop.f32.mrf.mxu0
      %v724 = vadd.f32 %v322, %v723
      %v725 = vpop.f32.mrf.mxu0
      %v726 = vadd.f32 %v322, %v725
      %727 = vmatmul.bf16.gmra.mxu0 %v402
      %v728 = vpop.f32.mrf.mxu0
      %v729 = vadd.f32 %v322, %v728
      %v730 = vpop.f32.mrf.mxu0
      %v731 = vadd.f32 %v322, %v730
      %732 = vmatmul.bf16.gmra.mxu0 %v403
      %v733 = vpop.f32.mrf.mxu0
      %v734 = vadd.f32 %v322, %v733
      %v735 = vpop.f32.mrf.mxu0
      %v736 = vadd.f32 %v322, %v735
      %737 = vmatmul.bf16.gmra.mxu0 %v404
      %v738 = vpop.f32.mrf.mxu0
      %v739 = vadd.f32 %v322, %v738
      %v740 = vpop.f32.mrf.mxu0
      %v741 = vadd.f32 %v322, %v740
      %742 = vmatmul.bf16.gmra.mxu0 %v405
      %v743 = vpop.f32.mrf.mxu0
      %v744 = vadd.f32 %v322, %v743
      %v745 = vpop.f32.mrf.mxu0
      %v746 = vadd.f32 %v322, %v745
      %747 = vmatmul.bf16.gmra.mxu0 %v406
      %v748 = vpop.f32.mrf.mxu0
      %v749 = vadd.f32 %v322, %v748
      %v750 = vpop.f32.mrf.mxu0
      %v751 = vadd.f32 %v322, %v750
      %752 = vmatmul.bf16.gmra.mxu0 %v407
      %v753 = vpop.f32.mrf.mxu0
      %v754 = vadd.f32 %v322, %v753
      %v755 = vpop.f32.mrf.mxu0
      %v756 = vadd.f32 %v322, %v755
      %757 = vmatmul.bf16.gmra.mxu0 %v408
      %v758 = vpop.f32.mrf.mxu0
      %v759 = vadd.f32 %v322, %v758
      %v760 = vpop.f32.mrf.mxu0
      %v761 = vadd.f32 %v322, %v760
      %762 = vdwg.mxu0
      %763 = vmatpush.bf16.msra.mxu0 %v551
      %764 = vmatpush.bf16.msra.mxu0 %v547
      %765 = vmatpush.bf16.msra.mxu0 %v543
      %766 = vmatpush.bf16.msra.mxu0 %v539
      %767 = vmatpush.bf16.msra.mxu0 %v535
      %768 = vmatpush.bf16.msra.mxu0 %v531
      %769 = vmatpush.bf16.msra.mxu0 %v527
      %770 = vmatpush.bf16.msra.mxu0 %v523
      %771 = vmatmul.bf16.gmra.mxu0 %v393
      %v772 = vpop.f32.mrf.mxu0
      %v773 = vadd.f32 %v323, %v772
      %v774 = vpop.f32.mrf.mxu0
      %v775 = vadd.f32 %v323, %v774
      %776 = vmatmul.bf16.gmra.mxu0 %v394
      %v777 = vpop.f32.mrf.mxu0
      %v778 = vadd.f32 %v323, %v777
      %v779 = vpop.f32.mrf.mxu0
      %v780 = vadd.f32 %v323, %v779
      %781 = vmatmul.bf16.gmra.mxu0 %v395
      %v782 = vpop.f32.mrf.mxu0
      %v783 = vadd.f32 %v323, %v782
      %v784 = vpop.f32.mrf.mxu0
      %v785 = vadd.f32 %v323, %v784
      %786 = vmatmul.bf16.gmra.mxu0 %v396
      %v787 = vpop.f32.mrf.mxu0
      %v788 = vadd.f32 %v323, %v787
      %v789 = vpop.f32.mrf.mxu0
      %v790 = vadd.f32 %v323, %v789
      %791 = vmatmul.bf16.gmra.mxu0 %v397
      %v792 = vpop.f32.mrf.mxu0
      %v793 = vadd.f32 %v323, %v792
      %v794 = vpop.f32.mrf.mxu0
      %v795 = vadd.f32 %v323, %v794
      %796 = vmatmul.bf16.gmra.mxu0 %v398
      %v797 = vpop.f32.mrf.mxu0
      %v798 = vadd.f32 %v323, %v797
      %v799 = vpop.f32.mrf.mxu0
      %v800 = vadd.f32 %v323, %v799
      %801 = vmatmul.bf16.gmra.mxu0 %v399
      %v802 = vpop.f32.mrf.mxu0
      %v803 = vadd.f32 %v323, %v802
      %v804 = vpop.f32.mrf.mxu0
      %v805 = vadd.f32 %v323, %v804
      %806 = vmatmul.bf16.gmra.mxu0 %v400
      %v807 = vpop.f32.mrf.mxu0
      %v808 = vadd.f32 %v323, %v807
      %v809 = vpop.f32.mrf.mxu0
      %v810 = vadd.f32 %v323, %v809
      %811 = vmatmul.bf16.gmra.mxu0 %v401
      %v812 = vpop.f32.mrf.mxu0
      %v813 = vadd.f32 %v323, %v812
      %v814 = vpop.f32.mrf.mxu0
      %v815 = vadd.f32 %v323, %v814
      %816 = vmatmul.bf16.gmra.mxu0 %v402
      %v817 = vpop.f32.mrf.mxu0
      %v818 = vadd.f32 %v323, %v817
      %v819 = vpop.f32.mrf.mxu0
      %v820 = vadd.f32 %v323, %v819
      %821 = vmatmul.bf16.gmra.mxu0 %v403
      %v822 = vpop.f32.mrf.mxu0
      %v823 = vadd.f32 %v323, %v822
      %v824 = vpop.f32.mrf.mxu0
      %v825 = vadd.f32 %v323, %v824
      %826 = vmatmul.bf16.gmra.mxu0 %v404
      %v827 = vpop.f32.mrf.mxu0
      %v828 = vadd.f32 %v323, %v827
      %v829 = vpop.f32.mrf.mxu0
      %v830 = vadd.f32 %v323, %v829
      %831 = vmatmul.bf16.gmra.mxu0 %v405
      %v832 = vpop.f32.mrf.mxu0
      %v833 = vadd.f32 %v323, %v832
      %v834 = vpop.f32.mrf.mxu0
      %v835 = vadd.f32 %v323, %v834
      %836 = vmatmul.bf16.gmra.mxu0 %v406
      %v837 = vpop.f32.mrf.mxu0
      %v838 = vadd.f32 %v323, %v837
      %v839 = vpop.f32.mrf.mxu0
      %v840 = vadd.f32 %v323, %v839
      %841 = vmatmul.bf16.gmra.mxu0 %v407
      %v842 = vpop.f32.mrf.mxu0
      %v843 = vadd.f32 %v323, %v842
      %v844 = vpop.f32.mrf.mxu0
      %v845 = vadd.f32 %v323, %v844
      %846 = vmatmul.bf16.gmra.mxu0 %v408
      %v847 = vpop.f32.mrf.mxu0
      %v848 = vadd.f32 %v323, %v847
      %v849 = vpop.f32.mrf.mxu0
      %v850 = vadd.f32 %v323, %v849
      %851 = vdwg.mxu0
      %852 = vmatpush.bf16.msra.mxu0 %v552
      %853 = vmatpush.bf16.msra.mxu0 %v548
      %854 = vmatpush.bf16.msra.mxu0 %v544
      %855 = vmatpush.bf16.msra.mxu0 %v540
      %856 = vmatpush.bf16.msra.mxu0 %v536
      %857 = vmatpush.bf16.msra.mxu0 %v532
      %858 = vmatpush.bf16.msra.mxu0 %v528
      %859 = vmatpush.bf16.msra.mxu0 %v524
      %860 = vmatmul.bf16.gmra.mxu0 %v393
      %v861 = vpop.f32.mrf.mxu0
      %v862 = vadd.f32 %v324, %v861
      %v863 = vpop.f32.mrf.mxu0
      %v864 = vadd.f32 %v324, %v863
      %865 = vmatmul.bf16.gmra.mxu0 %v394
      %v866 = vpop.f32.mrf.mxu0
      %v867 = vadd.f32 %v324, %v866
      %v868 = vpop.f32.mrf.mxu0
      %v869 = vadd.f32 %v324, %v868
      %870 = vmatmul.bf16.gmra.mxu0 %v395
      %v871 = vpop.f32.mrf.mxu0
      %v872 = vadd.f32 %v324, %v871
      %v873 = vpop.f32.mrf.mxu0
      %v874 = vadd.f32 %v324, %v873
      %875 = vmatmul.bf16.gmra.mxu0 %v396
      %v876 = vpop.f32.mrf.mxu0
      %v877 = vadd.f32 %v324, %v876
      %v878 = vpop.f32.mrf.mxu0
      %v879 = vadd.f32 %v324, %v878
      %880 = vmatmul.bf16.gmra.mxu0 %v397
      %v881 = vpop.f32.mrf.mxu0
      %v882 = vadd.f32 %v324, %v881
      %v883 = vpop.f32.mrf.mxu0
      %v884 = vadd.f32 %v324, %v883
      %885 = vmatmul.bf16.gmra.mxu0 %v398
      %v886 = vpop.f32.mrf.mxu0
      %v887 = vadd.f32 %v324, %v886
      %v888 = vpop.f32.mrf.mxu0
      %v889 = vadd.f32 %v324, %v888
      %890 = vmatmul.bf16.gmra.mxu0 %v399
      %v891 = vpop.f32.mrf.mxu0
      %v892 = vadd.f32 %v324, %v891
      %v893 = vpop.f32.mrf.mxu0
      %v894 = vadd.f32 %v324, %v893
      %895 = vmatmul.bf16.gmra.mxu0 %v400
      %v896 = vpop.f32.mrf.mxu0
      %v897 = vadd.f32 %v324, %v896
      %v898 = vpop.f32.mrf.mxu0
      %v899 = vadd.f32 %v324, %v898
      %900 = vmatmul.bf16.gmra.mxu0 %v401
      %v901 = vpop.f32.mrf.mxu0
      %v902 = vadd.f32 %v324, %v901
      %v903 = vpop.f32.mrf.mxu0
      %v904 = vadd.f32 %v324, %v903
      %905 = vmatmul.bf16.gmra.mxu0 %v402
      %v906 = vpop.f32.mrf.mxu0
      %v907 = vadd.f32 %v324, %v906
      %v908 = vpop.f32.mrf.mxu0
      %v909 = vadd.f32 %v324, %v908
      %910 = vmatmul.bf16.gmra.mxu0 %v403
      %v911 = vpop.f32.mrf.mxu0
      %v912 = vadd.f32 %v324, %v911
      %v913 = vpop.f32.mrf.mxu0
      %v914 = vadd.f32 %v324, %v913
      %915 = vmatmul.bf16.gmra.mxu0 %v404
      %v916 = vpop.f32.mrf.mxu0
      %v917 = vadd.f32 %v324, %v916
      %v918 = vpop.f32.mrf.mxu0
      %v919 = vadd.f32 %v324, %v918
      %920 = vmatmul.bf16.gmra.mxu0 %v405
      %v921 = vpop.f32.mrf.mxu0
      %v922 = vadd.f32 %v324, %v921
      %v923 = vpop.f32.mrf.mxu0
      %v924 = vadd.f32 %v324, %v923
      %925 = vmatmul.bf16.gmra.mxu0 %v406
      %v926 = vpop.f32.mrf.mxu0
      %v927 = vadd.f32 %v324, %v926
      %v928 = vpop.f32.mrf.mxu0
      %v929 = vadd.f32 %v324, %v928
      %930 = vmatmul.bf16.gmra.mxu0 %v407
      %v931 = vpop.f32.mrf.mxu0
      %v932 = vadd.f32 %v324, %v931
      %v933 = vpop.f32.mrf.mxu0
      %v934 = vadd.f32 %v324, %v933
      %935 = vmatmul.bf16.gmra.mxu0 %v408
      %v936 = vpop.f32.mrf.mxu0
      %v937 = vadd.f32 %v324, %v936
      %v938 = vpop.f32.mrf.mxu0
      %v939 = vadd.f32 %v324, %v938
      %940 = vdwg.mxu0
      %v941 = vmax.f32 %v595, 0.0
      %v942 = vmax.f32 %v684, 0.0
      %v943 = vmax.f32 %v773, 0.0
      %v944 = vmax.f32 %v862, 0.0
      %v945 = vmax.f32 %v597, 0.0
      %v946 = vmax.f32 %v686, 0.0
      %v947 = vmax.f32 %v775, 0.0
      %v948 = vmax.f32 %v864, 0.0
      %v949 = vmax.f32 %v600, 0.0
      %v950 = vmax.f32 %v689, 0.0
      %v951 = vmax.f32 %v778, 0.0
      %v952 = vmax.f32 %v867, 0.0
      %v953 = vmax.f32 %v602, 0.0
      %v954 = vmax.f32 %v691, 0.0
      %v955 = vmax.f32 %v780, 0.0
      %v956 = vmax.f32 %v869, 0.0
      %v957 = vmax.f32 %v605, 0.0
      %v958 = vmax.f32 %v694, 0.0
      %v959 = vmax.f32 %v783, 0.0
      %v960 = vmax.f32 %v872, 0.0
      %v961 = vmax.f32 %v607, 0.0
      %v962 = vmax.f32 %v696, 0.0
      %v963 = vmax.f32 %v785, 0.0
      %v964 = vmax.f32 %v874, 0.0
      %v965 = vmax.f32 %v610, 0.0
      %v966 = vmax.f32 %v699, 0.0
      %v967 = vmax.f32 %v788, 0.0
      %v968 = vmax.f32 %v877, 0.0
      %v969 = vmax.f32 %v612, 0.0
      %v970 = vmax.f32 %v701, 0.0
      %v971 = vmax.f32 %v790, 0.0
      %v972 = vmax.f32 %v879, 0.0
      %v973 = vmax.f32 %v615, 0.0
      %v974 = vmax.f32 %v704, 0.0
      %v975 = vmax.f32 %v793, 0.0
      %v976 = vmax.f32 %v882, 0.0
      %v977 = vmax.f32 %v617, 0.0
      %v978 = vmax.f32 %v706, 0.0
      %v979 = vmax.f32 %v795, 0.0
      %v980 = vmax.f32 %v884, 0.0
      %v981 = vmax.f32 %v620, 0.0
      %v982 = vmax.f32 %v709, 0.0
      %v983 = vmax.f32 %v798, 0.0
      %v984 = vmax.f32 %v887, 0.0
      %v985 = vmax.f32 %v622, 0.0
      %v986 = vmax.f32 %v711, 0.0
      %v987 = vmax.f32 %v800, 0.0
      %v988 = vmax.f32 %v889, 0.0
      %v989 = vmax.f32 %v625, 0.0
      %v990 = vmax.f32 %v714, 0.0
      %v991 = vmax.f32 %v803, 0.0
      %v992 = vmax.f32 %v892, 0.0
      %v993 = vmax.f32 %v627, 0.0
      %v994 = vmax.f32 %v716, 0.0
      %v995 = vmax.f32 %v805, 0.0
      %v996 = vmax.f32 %v894, 0.0
      %v997 = vmax.f32 %v630, 0.0
      %v998 = vmax.f32 %v719, 0.0
      %v999 = vmax.f32 %v808, 0.0
      %v1000 = vmax.f32 %v897, 0.0
      %v1001 = vmax.f32 %v632, 0.0
      %v1002 = vmax.f32 %v721, 0.0
      %v1003 = vmax.f32 %v810, 0.0
      %v1004 = vmax.f32 %v899, 0.0
      %v1005 = vmax.f32 %v635, 0.0
      %v1006 = vmax.f32 %v724, 0.0
      %v1007 = vmax.f32 %v813, 0.0
      %v1008 = vmax.f32 %v902, 0.0
      %v1009 = vmax.f32 %v637, 0.0
      %v1010 = vmax.f32 %v726, 0.0
      %v1011 = vmax.f32 %v815, 0.0
      %v1012 = vmax.f32 %v904, 0.0
      %v1013 = vmax.f32 %v640, 0.0
      %v1014 = vmax.f32 %v729, 0.0
      %v1015 = vmax.f32 %v818, 0.0
      %v1016 = vmax.f32 %v907, 0.0
      %v1017 = vmax.f32 %v642, 0.0
      %v1018 = vmax.f32 %v731, 0.0
      %v1019 = vmax.f32 %v820, 0.0
      %v1020 = vmax.f32 %v909, 0.0
      %v1021 = vmax.f32 %v645, 0.0
      %v1022 = vmax.f32 %v734, 0.0
      %v1023 = vmax.f32 %v823, 0.0
      %v1024 = vmax.f32 %v912, 0.0
      %v1025 = vmax.f32 %v647, 0.0
      %v1026 = vmax.f32 %v736, 0.0
      %v1027 = vmax.f32 %v825, 0.0
      %v1028 = vmax.f32 %v914, 0.0
      %v1029 = vmax.f32 %v650, 0.0
      %v1030 = vmax.f32 %v739, 0.0
      %v1031 = vmax.f32 %v828, 0.0
      %v1032 = vmax.f32 %v917, 0.0
      %v1033 = vmax.f32 %v652, 0.0
      %v1034 = vmax.f32 %v741, 0.0
      %v1035 = vmax.f32 %v830, 0.0
      %v1036 = vmax.f32 %v919, 0.0
      %v1037 = vmax.f32 %v655, 0.0
      %v1038 = vmax.f32 %v744, 0.0
      %v1039 = vmax.f32 %v833, 0.0
      %v1040 = vmax.f32 %v922, 0.0
      %v1041 = vmax.f32 %v657, 0.0
      %v1042 = vmax.f32 %v746, 0.0
      %v1043 = vmax.f32 %v835, 0.0
      %v1044 = vmax.f32 %v924, 0.0
      %v1045 = vmax.f32 %v660, 0.0
      %v1046 = vmax.f32 %v749, 0.0
      %v1047 = vmax.f32 %v838, 0.0
      %v1048 = vmax.f32 %v927, 0.0
      %v1049 = vmax.f32 %v662, 0.0
      %v1050 = vmax.f32 %v751, 0.0
      %v1051 = vmax.f32 %v840, 0.0
      %v1052 = vmax.f32 %v929, 0.0
      %v1053 = vmax.f32 %v665, 0.0
      %v1054 = vmax.f32 %v754, 0.0
      %v1055 = vmax.f32 %v843, 0.0
      %v1056 = vmax.f32 %v932, 0.0
      %v1057 = vmax.f32 %v667, 0.0
      %v1058 = vmax.f32 %v756, 0.0
      %v1059 = vmax.f32 %v845, 0.0
      %v1060 = vmax.f32 %v934, 0.0
      %v1061 = vmax.f32 %v670, 0.0
      %v1062 = vmax.f32 %v759, 0.0
      %v1063 = vmax.f32 %v848, 0.0
      %v1064 = vmax.f32 %v937, 0.0
      %v1065 = vmax.f32 %v672, 0.0
      %v1066 = vmax.f32 %v761, 0.0
      %v1067 = vmax.f32 %v850, 0.0
      %v1068 = vmax.f32 %v939, 0.0
      %v1069 = vpack.c.bf16 %v945, %v941
      %v1070 = vpack.c.bf16 %v946, %v942
      %v1071 = vpack.c.bf16 %v947, %v943
      %v1072 = vpack.c.bf16 %v948, %v944
      %v1073 = vpack.c.bf16 %v953, %v949
      %v1074 = vpack.c.bf16 %v954, %v950
      %v1075 = vpack.c.bf16 %v955, %v951
      %v1076 = vpack.c.bf16 %v956, %v952
      %v1077 = vpack.c.bf16 %v961, %v957
      %v1078 = vpack.c.bf16 %v962, %v958
      %v1079 = vpack.c.bf16 %v963, %v959
      %v1080 = vpack.c.bf16 %v964, %v960
      %v1081 = vpack.c.bf16 %v969, %v965
      %v1082 = vpack.c.bf16 %v970, %v966
      %v1083 = vpack.c.bf16 %v971, %v967
      %v1084 = vpack.c.bf16 %v972, %v968
      %v1085 = vpack.c.bf16 %v977, %v973
      %v1086 = vpack.c.bf16 %v978, %v974
      %v1087 = vpack.c.bf16 %v979, %v975
      %v1088 = vpack.c.bf16 %v980, %v976
      %v1089 = vpack.c.bf16 %v985, %v981
      %v1090 = vpack.c.bf16 %v986, %v982
      %v1091 = vpack.c.bf16 %v987, %v983
      %v1092 = vpack.c.bf16 %v988, %v984
      %v1093 = vpack.c.bf16 %v993, %v989
      %v1094 = vpack.c.bf16 %v994, %v990
      %v1095 = vpack.c.bf16 %v995, %v991
      %v1096 = vpack.c.bf16 %v996, %v992
      %v1097 = vpack.c.bf16 %v1001, %v997
      %v1098 = vpack.c.bf16 %v1002, %v998
      %v1099 = vpack.c.bf16 %v1003, %v999
      %v1100 = vpack.c.bf16 %v1004, %v1000
      %v1101 = vpack.c.bf16 %v1009, %v1005
      %v1102 = vpack.c.bf16 %v1010, %v1006
      %v1103 = vpack.c.bf16 %v1011, %v1007
      %v1104 = vpack.c.bf16 %v1012, %v1008
      %v1105 = vpack.c.bf16 %v1017, %v1013
      %v1106 = vpack.c.bf16 %v1018, %v1014
      %v1107 = vpack.c.bf16 %v1019, %v1015
      %v1108 = vpack.c.bf16 %v1020, %v1016
      %v1109 = vpack.c.bf16 %v1025, %v1021
      %v1110 = vpack.c.bf16 %v1026, %v1022
      %v1111 = vpack.c.bf16 %v1027, %v1023
      %v1112 = vpack.c.bf16 %v1028, %v1024
      %v1113 = vpack.c.bf16 %v1033, %v1029
      %v1114 = vpack.c.bf16 %v1034, %v1030
      %v1115 = vpack.c.bf16 %v1035, %v1031
      %v1116 = vpack.c.bf16 %v1036, %v1032
      %v1117 = vpack.c.bf16 %v1041, %v1037
      %v1118 = vpack.c.bf16 %v1042, %v1038
      %v1119 = vpack.c.bf16 %v1043, %v1039
      %v1120 = vpack.c.bf16 %v1044, %v1040
      %v1121 = vpack.c.bf16 %v1049, %v1045
      %v1122 = vpack.c.bf16 %v1050, %v1046
      %v1123 = vpack.c.bf16 %v1051, %v1047
      %v1124 = vpack.c.bf16 %v1052, %v1048
      %v1125 = vpack.c.bf16 %v1057, %v1053
      %v1126 = vpack.c.bf16 %v1058, %v1054
      %v1127 = vpack.c.bf16 %v1059, %v1055
      %v1128 = vpack.c.bf16 %v1060, %v1056
      %v1129 = vpack.c.bf16 %v1065, %v1061
      %v1130 = vpack.c.bf16 %v1066, %v1062
      %v1131 = vpack.c.bf16 %v1067, %v1063
      %v1132 = vpack.c.bf16 %v1068, %v1064
      %v1133 = vld [vmem:[%s3] sm:$0xf]
      %v1134 = vld [vmem:[%s3 + $0x4] sm:$0xf]
      %v1135 = vld [vmem:[%s3 + $0x8] sm:$0xf]
      %v1136 = vld [vmem:[%s3 + $0xc] sm:$0xf]
      %v1137 = vld [vmem:[%s3 + $0x10] sm:$0xf]
      %v1138 = vld [vmem:[%s3 + $0x14] sm:$0xf]
      %v1139 = vld [vmem:[%s3 + $0x18] sm:$0xf]
      %v1140 = vld [vmem:[%s3 + $0x1c] sm:$0xf]
      %v1141 = vld [vmem:[%s3 + $0x20] sm:$0xf]
      %v1142 = vld [vmem:[%s3 + $0x24] sm:$0xf]
      %v1143 = vld [vmem:[%s3 + $0x28] sm:$0xf]
      %v1144 = vld [vmem:[%s3 + $0x2c] sm:$0xf]
      %v1145 = vld [vmem:[%s3 + $0x30] sm:$0xf]
      %v1146 = vld [vmem:[%s3 + $0x34] sm:$0xf]
      %v1147 = vld [vmem:[%s3 + $0x38] sm:$0xf]
      %v1148 = vld [vmem:[%s3 + $0x3c] sm:$0xf]
      %v1149 = vld [vmem:[%s3 + $0x40] sm:$0xf]
      %v1150 = vld [vmem:[%s3 + $0x44] sm:$0xf]
      %v1151 = vld [vmem:[%s3 + $0x48] sm:$0xf]
      %v1152 = vld [vmem:[%s3 + $0x4c] sm:$0xf]
      %v1153 = vld [vmem:[%s3 + $0x50] sm:$0xf]
      %v1154 = vld [vmem:[%s3 + $0x54] sm:$0xf]
      %v1155 = vld [vmem:[%s3 + $0x58] sm:$0xf]
      %v1156 = vld [vmem:[%s3 + $0x5c] sm:$0xf]
      %v1157 = vld [vmem:[%s3 + $0x60] sm:$0xf]
      %v1158 = vld [vmem:[%s3 + $0x64] sm:$0xf]
      %v1159 = vld [vmem:[%s3 + $0x68] sm:$0xf]
      %v1160 = vld [vmem:[%s3 + $0x6c] sm:$0xf]
      %v1161 = vld [vmem:[%s3 + $0x70] sm:$0xf]
      %v1162 = vld [vmem:[%s3 + $0x74] sm:$0xf]
      %v1163 = vld [vmem:[%s3 + $0x78] sm:$0xf]
      %v1164 = vld [vmem:[%s3 + $0x7c] sm:$0xf]
      %v1165 = vld [vmem:[%s3 + $0x80] sm:$0xf]
      %v1166 = vld [vmem:[%s3 + $0x84] sm:$0xf]
      %v1167 = vld [vmem:[%s3 + $0x88] sm:$0xf]
      %v1168 = vld [vmem:[%s3 + $0x8c] sm:$0xf]
      %v1169 = vld [vmem:[%s3 + $0x90] sm:$0xf]
      %v1170 = vld [vmem:[%s3 + $0x94] sm:$0xf]
      %v1171 = vld [vmem:[%s3 + $0x98] sm:$0xf]
      %v1172 = vld [vmem:[%s3 + $0x9c] sm:$0xf]
      %v1173 = vld [vmem:[%s3 + $0xa0] sm:$0xf]
      %v1174 = vld [vmem:[%s3 + $0xa4] sm:$0xf]
      %v1175 = vld [vmem:[%s3 + $0xa8] sm:$0xf]
      %v1176 = vld [vmem:[%s3 + $0xac] sm:$0xf]
      %v1177 = vld [vmem:[%s3 + $0xb0] sm:$0xf]
      %v1178 = vld [vmem:[%s3 + $0xb4] sm:$0xf]
      %v1179 = vld [vmem:[%s3 + $0xb8] sm:$0xf]
      %v1180 = vld [vmem:[%s3 + $0xbc] sm:$0xf]
      %v1181 = vld [vmem:[%s3 + $0xc0] sm:$0xf]
      %v1182 = vld [vmem:[%s3 + $0xc4] sm:$0xf]
      %v1183 = vld [vmem:[%s3 + $0xc8] sm:$0xf]
      %v1184 = vld [vmem:[%s3 + $0xcc] sm:$0xf]
      %v1185 = vld [vmem:[%s3 + $0xd0] sm:$0xf]
      %v1186 = vld [vmem:[%s3 + $0xd4] sm:$0xf]
      %v1187 = vld [vmem:[%s3 + $0xd8] sm:$0xf]
      %v1188 = vld [vmem:[%s3 + $0xdc] sm:$0xf]
      %v1189 = vld [vmem:[%s3 + $0xe0] sm:$0xf]
      %v1190 = vld [vmem:[%s3 + $0xe4] sm:$0xf]
      %v1191 = vld [vmem:[%s3 + $0xe8] sm:$0xf]
      %v1192 = vld [vmem:[%s3 + $0xec] sm:$0xf]
      %v1193 = vld [vmem:[%s3 + $0xf0] sm:$0xf]
      %v1194 = vld [vmem:[%s3 + $0xf4] sm:$0xf]
      %v1195 = vld [vmem:[%s3 + $0xf8] sm:$0xf]
      %v1196 = vld [vmem:[%s3 + $0xfc] sm:$0xf]
      %v1261 = vunpack.c.l.b16 %v1133
      %v1262 = vunpack.c.l.b16 %v1134
      %v1263 = vunpack.c.l.b16 %v1135
      %v1264 = vunpack.c.l.b16 %v1136
      %v1265 = vunpack.c.l.b16 %v1137
      %v1266 = vunpack.c.l.b16 %v1138
      %v1267 = vunpack.c.l.b16 %v1139
      %v1268 = vunpack.c.l.b16 %v1140
      %v1269 = vunpack.c.l.b16 %v1141
      %v1270 = vunpack.c.l.b16 %v1142
      %v1271 = vunpack.c.l.b16 %v1143
      %v1272 = vunpack.c.l.b16 %v1144
      %v1273 = vunpack.c.l.b16 %v1145
      %v1274 = vunpack.c.l.b16 %v1146
      %v1275 = vunpack.c.l.b16 %v1147
      %v1276 = vunpack.c.l.b16 %v1148
      %v1277 = vunpack.c.l.b16 %v1149
      %v1278 = vunpack.c.l.b16 %v1150
      %v1279 = vunpack.c.l.b16 %v1151
      %v1280 = vunpack.c.l.b16 %v1152
      %v1281 = vunpack.c.l.b16 %v1153
      %v1282 = vunpack.c.l.b16 %v1154
      %v1283 = vunpack.c.l.b16 %v1155
      %v1284 = vunpack.c.l.b16 %v1156
      %v1285 = vunpack.c.l.b16 %v1157
      %v1286 = vunpack.c.l.b16 %v1158
      %v1287 = vunpack.c.l.b16 %v1159
      %v1288 = vunpack.c.l.b16 %v1160
      %v1289 = vunpack.c.l.b16 %v1161
      %v1290 = vunpack.c.l.b16 %v1162
      %v1291 = vunpack.c.l.b16 %v1163
      %v1292 = vunpack.c.l.b16 %v1164
      %v1293 = vunpack.c.l.b16 %v1165
      %v1294 = vunpack.c.l.b16 %v1166
      %v1295 = vunpack.c.l.b16 %v1167
      %v1296 = vunpack.c.l.b16 %v1168
      %v1297 = vunpack.c.l.b16 %v1169
      %v1298 = vunpack.c.l.b16 %v1170
      %v1299 = vunpack.c.l.b16 %v1171
      %v1300 = vunpack.c.l.b16 %v1172
      %v1301 = vunpack.c.l.b16 %v1173
      %v1302 = vunpack.c.l.b16 %v1174
      %v1303 = vunpack.c.l.b16 %v1175
      %v1304 = vunpack.c.l.b16 %v1176
      %v1305 = vunpack.c.l.b16 %v1177
      %v1306 = vunpack.c.l.b16 %v1178
      %v1307 = vunpack.c.l.b16 %v1179
      %v1308 = vunpack.c.l.b16 %v1180
      %v1309 = vunpack.c.l.b16 %v1181
      %v1310 = vunpack.c.l.b16 %v1182
      %v1311 = vunpack.c.l.b16 %v1183
      %v1312 = vunpack.c.l.b16 %v1184
      %v1313 = vunpack.c.l.b16 %v1185
      %v1314 = vunpack.c.l.b16 %v1186
      %v1315 = vunpack.c.l.b16 %v1187
      %v1316 = vunpack.c.l.b16 %v1188
      %v1317 = vunpack.c.l.b16 %v1189
      %v1318 = vunpack.c.l.b16 %v1190
      %v1319 = vunpack.c.l.b16 %v1191
      %v1320 = vunpack.c.l.b16 %v1192
      %v1321 = vunpack.c.l.b16 %v1193
      %v1322 = vunpack.c.l.b16 %v1194
      %v1323 = vunpack.c.l.b16 %v1195
      %v1324 = vunpack.c.l.b16 %v1196
      %v1325 = vpack.c.b16 %v1262, %v1261
      %v1326 = vpack.c.b16 %v1264, %v1263
      %v1327 = vpack.c.b16 %v1266, %v1265
      %v1328 = vpack.c.b16 %v1268, %v1267
      %v1329 = vpack.c.b16 %v1270, %v1269
      %v1330 = vpack.c.b16 %v1272, %v1271
      %v1331 = vpack.c.b16 %v1274, %v1273
      %v1332 = vpack.c.b16 %v1276, %v1275
      %v1333 = vpack.c.b16 %v1278, %v1277
      %v1334 = vpack.c.b16 %v1280, %v1279
      %v1335 = vpack.c.b16 %v1282, %v1281
      %v1336 = vpack.c.b16 %v1284, %v1283
      %v1337 = vpack.c.b16 %v1286, %v1285
      %v1338 = vpack.c.b16 %v1288, %v1287
      %v1339 = vpack.c.b16 %v1290, %v1289
      %v1340 = vpack.c.b16 %v1292, %v1291
      %v1341 = vpack.c.b16 %v1294, %v1293
      %v1342 = vpack.c.b16 %v1296, %v1295
      %v1343 = vpack.c.b16 %v1298, %v1297
      %v1344 = vpack.c.b16 %v1300, %v1299
      %v1345 = vpack.c.b16 %v1302, %v1301
      %v1346 = vpack.c.b16 %v1304, %v1303
      %v1347 = vpack.c.b16 %v1306, %v1305
      %v1348 = vpack.c.b16 %v1308, %v1307
      %v1349 = vpack.c.b16 %v1310, %v1309
      %v1350 = vpack.c.b16 %v1312, %v1311
      %v1351 = vpack.c.b16 %v1314, %v1313
      %v1352 = vpack.c.b16 %v1316, %v1315
      %v1353 = vpack.c.b16 %v1318, %v1317
      %v1354 = vpack.c.b16 %v1320, %v1319
      %v1355 = vpack.c.b16 %v1322, %v1321
      %v1356 = vpack.c.b16 %v1324, %v1323
      %1389 = vmatpush.bf16.msra.mxu0 %v1332
      %1390 = vmatpush.bf16.msra.mxu0 %v1331
      %1391 = vmatpush.bf16.msra.mxu0 %v1330
      %1392 = vmatpush.bf16.msra.mxu0 %v1329
      %1393 = vmatpush.bf16.msra.mxu0 %v1328
      %1394 = vmatpush.bf16.msra.mxu0 %v1327
      %1395 = vmatpush.bf16.msra.mxu0 %v1326
      %1396 = vmatpush.bf16.msra.mxu0 %v1325
      %1397 = vmatmul.bf16.gmra.mxu0 %v1069
      %v1398 = vpop.f32.mrf.mxu0
      %v1399 = vadd.f32 0.0, %v1398
      %v1400 = vpop.f32.mrf.mxu0
      %v1401 = vadd.f32 0.0, %v1400
      %1402 = vmatmul.bf16.gmra.mxu0 %v1073
      %v1403 = vpop.f32.mrf.mxu0
      %v1404 = vadd.f32 0.0, %v1403
      %v1405 = vpop.f32.mrf.mxu0
      %v1406 = vadd.f32 0.0, %v1405
      %1407 = vmatmul.bf16.gmra.mxu0 %v1077
      %v1408 = vpop.f32.mrf.mxu0
      %v1409 = vadd.f32 0.0, %v1408
      %v1410 = vpop.f32.mrf.mxu0
      %v1411 = vadd.f32 0.0, %v1410
      %1412 = vmatmul.bf16.gmra.mxu0 %v1081
      %v1413 = vpop.f32.mrf.mxu0
      %v1414 = vadd.f32 0.0, %v1413
      %v1415 = vpop.f32.mrf.mxu0
      %v1416 = vadd.f32 0.0, %v1415
      %1417 = vmatmul.bf16.gmra.mxu0 %v1085
      %v1418 = vpop.f32.mrf.mxu0
      %v1419 = vadd.f32 0.0, %v1418
      %v1420 = vpop.f32.mrf.mxu0
      %v1421 = vadd.f32 0.0, %v1420
      %1422 = vmatmul.bf16.gmra.mxu0 %v1089
      %v1423 = vpop.f32.mrf.mxu0
      %v1424 = vadd.f32 0.0, %v1423
      %v1425 = vpop.f32.mrf.mxu0
      %v1426 = vadd.f32 0.0, %v1425
      %1427 = vmatmul.bf16.gmra.mxu0 %v1093
      %v1428 = vpop.f32.mrf.mxu0
      %v1429 = vadd.f32 0.0, %v1428
      %v1430 = vpop.f32.mrf.mxu0
      %v1431 = vadd.f32 0.0, %v1430
      %1432 = vmatmul.bf16.gmra.mxu0 %v1097
      %v1433 = vpop.f32.mrf.mxu0
      %v1434 = vadd.f32 0.0, %v1433
      %v1435 = vpop.f32.mrf.mxu0
      %v1436 = vadd.f32 0.0, %v1435
      %1437 = vmatmul.bf16.gmra.mxu0 %v1101
      %v1438 = vpop.f32.mrf.mxu0
      %v1439 = vadd.f32 0.0, %v1438
      %v1440 = vpop.f32.mrf.mxu0
      %v1441 = vadd.f32 0.0, %v1440
      %1442 = vmatmul.bf16.gmra.mxu0 %v1105
      %v1443 = vpop.f32.mrf.mxu0
      %v1444 = vadd.f32 0.0, %v1443
      %v1445 = vpop.f32.mrf.mxu0
      %v1446 = vadd.f32 0.0, %v1445
      %1447 = vmatmul.bf16.gmra.mxu0 %v1109
      %v1448 = vpop.f32.mrf.mxu0
      %v1449 = vadd.f32 0.0, %v1448
      %v1450 = vpop.f32.mrf.mxu0
      %v1451 = vadd.f32 0.0, %v1450
      %1452 = vmatmul.bf16.gmra.mxu0 %v1113
      %v1453 = vpop.f32.mrf.mxu0
      %v1454 = vadd.f32 0.0, %v1453
      %v1455 = vpop.f32.mrf.mxu0
      %v1456 = vadd.f32 0.0, %v1455
      %1457 = vmatmul.bf16.gmra.mxu0 %v1117
      %v1458 = vpop.f32.mrf.mxu0
      %v1459 = vadd.f32 0.0, %v1458
      %v1460 = vpop.f32.mrf.mxu0
      %v1461 = vadd.f32 0.0, %v1460
      %1462 = vmatmul.bf16.gmra.mxu0 %v1121
      %v1463 = vpop.f32.mrf.mxu0
      %v1464 = vadd.f32 0.0, %v1463
      %v1465 = vpop.f32.mrf.mxu0
      %v1466 = vadd.f32 0.0, %v1465
      %1467 = vmatmul.bf16.gmra.mxu0 %v1125
      %v1468 = vpop.f32.mrf.mxu0
      %v1469 = vadd.f32 0.0, %v1468
      %v1470 = vpop.f32.mrf.mxu0
      %v1471 = vadd.f32 0.0, %v1470
      %1472 = vmatmul.bf16.gmra.mxu0 %v1129
      %v1473 = vpop.f32.mrf.mxu0
      %v1474 = vadd.f32 0.0, %v1473
      %v1475 = vpop.f32.mrf.mxu0
      %v1476 = vadd.f32 0.0, %v1475
      %1477 = vdwg.mxu0
      %1478 = vmatpush.bf16.msra.mxu0 %v1340
      %1479 = vmatpush.bf16.msra.mxu0 %v1339
      %1480 = vmatpush.bf16.msra.mxu0 %v1338
      %1481 = vmatpush.bf16.msra.mxu0 %v1337
      %1482 = vmatpush.bf16.msra.mxu0 %v1336
      %1483 = vmatpush.bf16.msra.mxu0 %v1335
      %1484 = vmatpush.bf16.msra.mxu0 %v1334
      %1485 = vmatpush.bf16.msra.mxu0 %v1333
      %1486 = vmatmul.bf16.gmra.mxu0 %v1070
      %v1487 = vpop.f32.mrf.mxu0
      %v1488 = vadd.f32 %v1399, %v1487
      %v1489 = vpop.f32.mrf.mxu0
      %v1490 = vadd.f32 %v1401, %v1489
      %1491 = vmatmul.bf16.gmra.mxu0 %v1074
      %v1492 = vpop.f32.mrf.mxu0
      %v1493 = vadd.f32 %v1404, %v1492
      %v1494 = vpop.f32.mrf.mxu0
      %v1495 = vadd.f32 %v1406, %v1494
      %1496 = vmatmul.bf16.gmra.mxu0 %v1078
      %v1497 = vpop.f32.mrf.mxu0
      %v1498 = vadd.f32 %v1409, %v1497
      %v1499 = vpop.f32.mrf.mxu0
      %v1500 = vadd.f32 %v1411, %v1499
      %1501 = vmatmul.bf16.gmra.mxu0 %v1082
      %v1502 = vpop.f32.mrf.mxu0
      %v1503 = vadd.f32 %v1414, %v1502
      %v1504 = vpop.f32.mrf.mxu0
      %v1505 = vadd.f32 %v1416, %v1504
      %1506 = vmatmul.bf16.gmra.mxu0 %v1086
      %v1507 = vpop.f32.mrf.mxu0
      %v1508 = vadd.f32 %v1419, %v1507
      %v1509 = vpop.f32.mrf.mxu0
      %v1510 = vadd.f32 %v1421, %v1509
      %1511 = vmatmul.bf16.gmra.mxu0 %v1090
      %v1512 = vpop.f32.mrf.mxu0
      %v1513 = vadd.f32 %v1424, %v1512
      %v1514 = vpop.f32.mrf.mxu0
      %v1515 = vadd.f32 %v1426, %v1514
      %1516 = vmatmul.bf16.gmra.mxu0 %v1094
      %v1517 = vpop.f32.mrf.mxu0
      %v1518 = vadd.f32 %v1429, %v1517
      %v1519 = vpop.f32.mrf.mxu0
      %v1520 = vadd.f32 %v1431, %v1519
      %1521 = vmatmul.bf16.gmra.mxu0 %v1098
      %v1522 = vpop.f32.mrf.mxu0
      %v1523 = vadd.f32 %v1434, %v1522
      %v1524 = vpop.f32.mrf.mxu0
      %v1525 = vadd.f32 %v1436, %v1524
      %1526 = vmatmul.bf16.gmra.mxu0 %v1102
      %v1527 = vpop.f32.mrf.mxu0
      %v1528 = vadd.f32 %v1439, %v1527
      %v1529 = vpop.f32.mrf.mxu0
      %v1530 = vadd.f32 %v1441, %v1529
      %1531 = vmatmul.bf16.gmra.mxu0 %v1106
      %v1532 = vpop.f32.mrf.mxu0
      %v1533 = vadd.f32 %v1444, %v1532
      %v1534 = vpop.f32.mrf.mxu0
      %v1535 = vadd.f32 %v1446, %v1534
      %1536 = vmatmul.bf16.gmra.mxu0 %v1110
      %v1537 = vpop.f32.mrf.mxu0
      %v1538 = vadd.f32 %v1449, %v1537
      %v1539 = vpop.f32.mrf.mxu0
      %v1540 = vadd.f32 %v1451, %v1539
      %1541 = vmatmul.bf16.gmra.mxu0 %v1114
      %v1542 = vpop.f32.mrf.mxu0
      %v1543 = vadd.f32 %v1454, %v1542
      %v1544 = vpop.f32.mrf.mxu0
      %v1545 = vadd.f32 %v1456, %v1544
      %1546 = vmatmul.bf16.gmra.mxu0 %v1118
      %v1547 = vpop.f32.mrf.mxu0
      %v1548 = vadd.f32 %v1459, %v1547
      %v1549 = vpop.f32.mrf.mxu0
      %v1550 = vadd.f32 %v1461, %v1549
      %1551 = vmatmul.bf16.gmra.mxu0 %v1122
      %v1552 = vpop.f32.mrf.mxu0
      %v1553 = vadd.f32 %v1464, %v1552
      %v1554 = vpop.f32.mrf.mxu0
      %v1555 = vadd.f32 %v1466, %v1554
      %1556 = vmatmul.bf16.gmra.mxu0 %v1126
      %v1557 = vpop.f32.mrf.mxu0
      %v1558 = vadd.f32 %v1469, %v1557
      %v1559 = vpop.f32.mrf.mxu0
      %v1560 = vadd.f32 %v1471, %v1559
      %1561 = vmatmul.bf16.gmra.mxu0 %v1130
      %v1562 = vpop.f32.mrf.mxu0
      %v1563 = vadd.f32 %v1474, %v1562
      %v1564 = vpop.f32.mrf.mxu0
      %v1565 = vadd.f32 %v1476, %v1564
      %1566 = vdwg.mxu0
      %1567 = vmatpush.bf16.msra.mxu0 %v1348
      %1568 = vmatpush.bf16.msra.mxu0 %v1347
      %1569 = vmatpush.bf16.msra.mxu0 %v1346
      %1570 = vmatpush.bf16.msra.mxu0 %v1345
      %1571 = vmatpush.bf16.msra.mxu0 %v1344
      %1572 = vmatpush.bf16.msra.mxu0 %v1343
      %1573 = vmatpush.bf16.msra.mxu0 %v1342
      %1574 = vmatpush.bf16.msra.mxu0 %v1341
      %1575 = vmatmul.bf16.gmra.mxu0 %v1071
      %v1576 = vpop.f32.mrf.mxu0
      %v1577 = vadd.f32 %v1488, %v1576
      %v1578 = vpop.f32.mrf.mxu0
      %v1579 = vadd.f32 %v1490, %v1578
      %1580 = vmatmul.bf16.gmra.mxu0 %v1075
      %v1581 = vpop.f32.mrf.mxu0
      %v1582 = vadd.f32 %v1493, %v1581
      %v1583 = vpop.f32.mrf.mxu0
      %v1584 = vadd.f32 %v1495, %v1583
      %1585 = vmatmul.bf16.gmra.mxu0 %v1079
      %v1586 = vpop.f32.mrf.mxu0
      %v1587 = vadd.f32 %v1498, %v1586
      %v1588 = vpop.f32.mrf.mxu0
      %v1589 = vadd.f32 %v1500, %v1588
      %1590 = vmatmul.bf16.gmra.mxu0 %v1083
      %v1591 = vpop.f32.mrf.mxu0
      %v1592 = vadd.f32 %v1503, %v1591
      %v1593 = vpop.f32.mrf.mxu0
      %v1594 = vadd.f32 %v1505, %v1593
      %1595 = vmatmul.bf16.gmra.mxu0 %v1087
      %v1596 = vpop.f32.mrf.mxu0
      %v1597 = vadd.f32 %v1508, %v1596
      %v1598 = vpop.f32.mrf.mxu0
      %v1599 = vadd.f32 %v1510, %v1598
      %1600 = vmatmul.bf16.gmra.mxu0 %v1091
      %v1601 = vpop.f32.mrf.mxu0
      %v1602 = vadd.f32 %v1513, %v1601
      %v1603 = vpop.f32.mrf.mxu0
      %v1604 = vadd.f32 %v1515, %v1603
      %1605 = vmatmul.bf16.gmra.mxu0 %v1095
      %v1606 = vpop.f32.mrf.mxu0
      %v1607 = vadd.f32 %v1518, %v1606
      %v1608 = vpop.f32.mrf.mxu0
      %v1609 = vadd.f32 %v1520, %v1608
      %1610 = vmatmul.bf16.gmra.mxu0 %v1099
      %v1611 = vpop.f32.mrf.mxu0
      %v1612 = vadd.f32 %v1523, %v1611
      %v1613 = vpop.f32.mrf.mxu0
      %v1614 = vadd.f32 %v1525, %v1613
      %1615 = vmatmul.bf16.gmra.mxu0 %v1103
      %v1616 = vpop.f32.mrf.mxu0
      %v1617 = vadd.f32 %v1528, %v1616
      %v1618 = vpop.f32.mrf.mxu0
      %v1619 = vadd.f32 %v1530, %v1618
      %1620 = vmatmul.bf16.gmra.mxu0 %v1107
      %v1621 = vpop.f32.mrf.mxu0
      %v1622 = vadd.f32 %v1533, %v1621
      %v1623 = vpop.f32.mrf.mxu0
      %v1624 = vadd.f32 %v1535, %v1623
      %1625 = vmatmul.bf16.gmra.mxu0 %v1111
      %v1626 = vpop.f32.mrf.mxu0
      %v1627 = vadd.f32 %v1538, %v1626
      %v1628 = vpop.f32.mrf.mxu0
      %v1629 = vadd.f32 %v1540, %v1628
      %1630 = vmatmul.bf16.gmra.mxu0 %v1115
      %v1631 = vpop.f32.mrf.mxu0
      %v1632 = vadd.f32 %v1543, %v1631
      %v1633 = vpop.f32.mrf.mxu0
      %v1634 = vadd.f32 %v1545, %v1633
      %1635 = vmatmul.bf16.gmra.mxu0 %v1119
      %v1636 = vpop.f32.mrf.mxu0
      %v1637 = vadd.f32 %v1548, %v1636
      %v1638 = vpop.f32.mrf.mxu0
      %v1639 = vadd.f32 %v1550, %v1638
      %1640 = vmatmul.bf16.gmra.mxu0 %v1123
      %v1641 = vpop.f32.mrf.mxu0
      %v1642 = vadd.f32 %v1553, %v1641
      %v1643 = vpop.f32.mrf.mxu0
      %v1644 = vadd.f32 %v1555, %v1643
      %1645 = vmatmul.bf16.gmra.mxu0 %v1127
      %v1646 = vpop.f32.mrf.mxu0
      %v1647 = vadd.f32 %v1558, %v1646
      %v1648 = vpop.f32.mrf.mxu0
      %v1649 = vadd.f32 %v1560, %v1648
      %1650 = vmatmul.bf16.gmra.mxu0 %v1131
      %v1651 = vpop.f32.mrf.mxu0
      %v1652 = vadd.f32 %v1563, %v1651
      %v1653 = vpop.f32.mrf.mxu0
      %v1654 = vadd.f32 %v1565, %v1653
      %1655 = vdwg.mxu0
      %1656 = vmatpush.bf16.msra.mxu0 %v1356
      %1657 = vmatpush.bf16.msra.mxu0 %v1355
      %1658 = vmatpush.bf16.msra.mxu0 %v1354
      %1659 = vmatpush.bf16.msra.mxu0 %v1353
      %1660 = vmatpush.bf16.msra.mxu0 %v1352
      %1661 = vmatpush.bf16.msra.mxu0 %v1351
      %1662 = vmatpush.bf16.msra.mxu0 %v1350
      %1663 = vmatpush.bf16.msra.mxu0 %v1349
      %1664 = vmatmul.bf16.gmra.mxu0 %v1072
      %v1665 = vpop.f32.mrf.mxu0
      %v1666 = vadd.f32 %v1577, %v1665
      %v1667 = vpop.f32.mrf.mxu0
      %v1668 = vadd.f32 %v1579, %v1667
      %1669 = vmatmul.bf16.gmra.mxu0 %v1076
      %v1670 = vpop.f32.mrf.mxu0
      %v1671 = vadd.f32 %v1582, %v1670
      %v1672 = vpop.f32.mrf.mxu0
      %v1673 = vadd.f32 %v1584, %v1672
      %1674 = vmatmul.bf16.gmra.mxu0 %v1080
      %v1675 = vpop.f32.mrf.mxu0
      %v1676 = vadd.f32 %v1587, %v1675
      %v1677 = vpop.f32.mrf.mxu0
      %v1678 = vadd.f32 %v1589, %v1677
      %1679 = vmatmul.bf16.gmra.mxu0 %v1084
      %v1680 = vpop.f32.mrf.mxu0
      %v1681 = vadd.f32 %v1592, %v1680
      %v1682 = vpop.f32.mrf.mxu0
      %v1683 = vadd.f32 %v1594, %v1682
      %1684 = vmatmul.bf16.gmra.mxu0 %v1088
      %v1685 = vpop.f32.mrf.mxu0
      %v1686 = vadd.f32 %v1597, %v1685
      %v1687 = vpop.f32.mrf.mxu0
      %v1688 = vadd.f32 %v1599, %v1687
      %1689 = vmatmul.bf16.gmra.mxu0 %v1092
      %v1690 = vpop.f32.mrf.mxu0
      %v1691 = vadd.f32 %v1602, %v1690
      %v1692 = vpop.f32.mrf.mxu0
      %v1693 = vadd.f32 %v1604, %v1692
      %1694 = vmatmul.bf16.gmra.mxu0 %v1096
      %v1695 = vpop.f32.mrf.mxu0
      %v1696 = vadd.f32 %v1607, %v1695
      %v1697 = vpop.f32.mrf.mxu0
      %v1698 = vadd.f32 %v1609, %v1697
      %1699 = vmatmul.bf16.gmra.mxu0 %v1100
      %v1700 = vpop.f32.mrf.mxu0
      %v1701 = vadd.f32 %v1612, %v1700
      %v1702 = vpop.f32.mrf.mxu0
      %v1703 = vadd.f32 %v1614, %v1702
      %1704 = vmatmul.bf16.gmra.mxu0 %v1104
      %v1705 = vpop.f32.mrf.mxu0
      %v1706 = vadd.f32 %v1617, %v1705
      %v1707 = vpop.f32.mrf.mxu0
      %v1708 = vadd.f32 %v1619, %v1707
      %1709 = vmatmul.bf16.gmra.mxu0 %v1108
      %v1710 = vpop.f32.mrf.mxu0
      %v1711 = vadd.f32 %v1622, %v1710
      %v1712 = vpop.f32.mrf.mxu0
      %v1713 = vadd.f32 %v1624, %v1712
      %1714 = vmatmul.bf16.gmra.mxu0 %v1112
      %v1715 = vpop.f32.mrf.mxu0
      %v1716 = vadd.f32 %v1627, %v1715
      %v1717 = vpop.f32.mrf.mxu0
      %v1718 = vadd.f32 %v1629, %v1717
      %1719 = vmatmul.bf16.gmra.mxu0 %v1116
      %v1720 = vpop.f32.mrf.mxu0
      %v1721 = vadd.f32 %v1632, %v1720
      %v1722 = vpop.f32.mrf.mxu0
      %v1723 = vadd.f32 %v1634, %v1722
      %1724 = vmatmul.bf16.gmra.mxu0 %v1120
      %v1725 = vpop.f32.mrf.mxu0
      %v1726 = vadd.f32 %v1637, %v1725
      %v1727 = vpop.f32.mrf.mxu0
      %v1728 = vadd.f32 %v1639, %v1727
      %1729 = vmatmul.bf16.gmra.mxu0 %v1124
      %v1730 = vpop.f32.mrf.mxu0
      %v1731 = vadd.f32 %v1642, %v1730
      %v1732 = vpop.f32.mrf.mxu0
      %v1733 = vadd.f32 %v1644, %v1732
      %1734 = vmatmul.bf16.gmra.mxu0 %v1128
      %v1735 = vpop.f32.mrf.mxu0
      %v1736 = vadd.f32 %v1647, %v1735
      %v1737 = vpop.f32.mrf.mxu0
      %v1738 = vadd.f32 %v1649, %v1737
      %1739 = vmatmul.bf16.gmra.mxu0 %v1132
      %v1740 = vpop.f32.mrf.mxu0
      %v1741 = vadd.f32 %v1652, %v1740
      %v1742 = vpop.f32.mrf.mxu0
      %v1743 = vadd.f32 %v1654, %v1742
      %1744 = vdwg.mxu0
      %v1745 = vld [vmem:[%s4] sm:$0x1]
      %v1747 = vperm.slane %v1745, 0
      %v1749 = vmul.f32 %v1666, %v1747
      %v1750 = vmul.f32 %v1668, %v1747
      %v1751 = vmul.f32 %v1671, %v1747
      %v1752 = vmul.f32 %v1673, %v1747
      %v1753 = vmul.f32 %v1676, %v1747
      %v1754 = vmul.f32 %v1678, %v1747
      %v1755 = vmul.f32 %v1681, %v1747
      %v1756 = vmul.f32 %v1683, %v1747
      %v1757 = vmul.f32 %v1686, %v1747
      %v1758 = vmul.f32 %v1688, %v1747
      %v1759 = vmul.f32 %v1691, %v1747
      %v1760 = vmul.f32 %v1693, %v1747
      %v1761 = vmul.f32 %v1696, %v1747
      %v1762 = vmul.f32 %v1698, %v1747
      %v1763 = vmul.f32 %v1701, %v1747
      %v1764 = vmul.f32 %v1703, %v1747
      %v1765 = vmul.f32 %v1706, %v1747
      %v1766 = vmul.f32 %v1708, %v1747
      %v1767 = vmul.f32 %v1711, %v1747
      %v1768 = vmul.f32 %v1713, %v1747
      %v1769 = vmul.f32 %v1716, %v1747
      %v1770 = vmul.f32 %v1718, %v1747
      %v1771 = vmul.f32 %v1721, %v1747
      %v1772 = vmul.f32 %v1723, %v1747
      %v1773 = vmul.f32 %v1726, %v1747
      %v1774 = vmul.f32 %v1728, %v1747
      %v1775 = vmul.f32 %v1731, %v1747
      %v1776 = vmul.f32 %v1733, %v1747
      %v1777 = vmul.f32 %v1736, %v1747
      %v1778 = vmul.f32 %v1738, %v1747
      %v1779 = vmul.f32 %v1741, %v1747
      %v1780 = vmul.f32 %v1743, %v1747
      %v1781 = vld [vmem:[%s5] sm:$0x1]
      %v1783 = vperm.slane %v1781, 0
      %v1785 = vadd.f32 %v1749, %v1783
      %v1786 = vadd.f32 %v1750, %v1783
      %v1787 = vadd.f32 %v1751, %v1783
      %v1788 = vadd.f32 %v1752, %v1783
      %v1789 = vadd.f32 %v1753, %v1783
      %v1790 = vadd.f32 %v1754, %v1783
      %v1791 = vadd.f32 %v1755, %v1783
      %v1792 = vadd.f32 %v1756, %v1783
      %v1793 = vadd.f32 %v1757, %v1783
      %v1794 = vadd.f32 %v1758, %v1783
      %v1795 = vadd.f32 %v1759, %v1783
      %v1796 = vadd.f32 %v1760, %v1783
      %v1797 = vadd.f32 %v1761, %v1783
      %v1798 = vadd.f32 %v1762, %v1783
      %v1799 = vadd.f32 %v1763, %v1783
      %v1800 = vadd.f32 %v1764, %v1783
      %v1801 = vadd.f32 %v1765, %v1783
      %v1802 = vadd.f32 %v1766, %v1783
      %v1803 = vadd.f32 %v1767, %v1783
      %v1804 = vadd.f32 %v1768, %v1783
      %v1805 = vadd.f32 %v1769, %v1783
      %v1806 = vadd.f32 %v1770, %v1783
      %v1807 = vadd.f32 %v1771, %v1783
      %v1808 = vadd.f32 %v1772, %v1783
      %v1809 = vadd.f32 %v1773, %v1783
      %v1810 = vadd.f32 %v1774, %v1783
      %v1811 = vadd.f32 %v1775, %v1783
      %v1812 = vadd.f32 %v1776, %v1783
      %v1813 = vadd.f32 %v1777, %v1783
      %v1814 = vadd.f32 %v1778, %v1783
      %v1815 = vadd.f32 %v1779, %v1783
      %v1816 = vadd.f32 %v1780, %v1783
      %v1817 = vmax.f32 %v1785, 0.0
      %v1818 = vmax.f32 %v1786, 0.0
      %v1819 = vmax.f32 %v1787, 0.0
      %v1820 = vmax.f32 %v1788, 0.0
      %v1821 = vmax.f32 %v1789, 0.0
      %v1822 = vmax.f32 %v1790, 0.0
      %v1823 = vmax.f32 %v1791, 0.0
      %v1824 = vmax.f32 %v1792, 0.0
      %v1825 = vmax.f32 %v1793, 0.0
      %v1826 = vmax.f32 %v1794, 0.0
      %v1827 = vmax.f32 %v1795, 0.0
      %v1828 = vmax.f32 %v1796, 0.0
      %v1829 = vmax.f32 %v1797, 0.0
      %v1830 = vmax.f32 %v1798, 0.0
      %v1831 = vmax.f32 %v1799, 0.0
      %v1832 = vmax.f32 %v1800, 0.0
      %v1833 = vmax.f32 %v1801, 0.0
      %v1834 = vmax.f32 %v1802, 0.0
      %v1835 = vmax.f32 %v1803, 0.0
      %v1836 = vmax.f32 %v1804, 0.0
      %v1837 = vmax.f32 %v1805, 0.0
      %v1838 = vmax.f32 %v1806, 0.0
      %v1839 = vmax.f32 %v1807, 0.0
      %v1840 = vmax.f32 %v1808, 0.0
      %v1841 = vmax.f32 %v1809, 0.0
      %v1842 = vmax.f32 %v1810, 0.0
      %v1843 = vmax.f32 %v1811, 0.0
      %v1844 = vmax.f32 %v1812, 0.0
      %v1845 = vmax.f32 %v1813, 0.0
      %v1846 = vmax.f32 %v1814, 0.0
      %v1847 = vmax.f32 %v1815, 0.0
      %v1848 = vmax.f32 %v1816, 0.0
      %1849 = vst [vmem:[%s253] sm:$0xff] %v1817
      %1850 = vst [vmem:[%s253 + $0x8] sm:$0xff] %v1818
      %1851 = vst [vmem:[%s253 + $0x10] sm:$0xff] %v1819
      %1852 = vst [vmem:[%s253 + $0x18] sm:$0xff] %v1820
      %1853 = vst [vmem:[%s253 + $0x20] sm:$0xff] %v1821
      %1854 = vst [vmem:[%s253 + $0x28] sm:$0xff] %v1822
      %1855 = vst [vmem:[%s253 + $0x30] sm:$0xff] %v1823
      %1856 = vst [vmem:[%s253 + $0x38] sm:$0xff] %v1824
      %1857 = vst [vmem:[%s253 + $0x40] sm:$0xff] %v1825
      %1858 = vst [vmem:[%s253 + $0x48] sm:$0xff] %v1826
      %1859 = vst [vmem:[%s253 + $0x50] sm:$0xff] %v1827
      %1860 = vst [vmem:[%s253 + $0x58] sm:$0xff] %v1828
      %1861 = vst [vmem:[%s253 + $0x60] sm:$0xff] %v1829
      %1862 = vst [vmem:[%s253 + $0x68] sm:$0xff] %v1830
      %1863 = vst [vmem:[%s253 + $0x70] sm:$0xff] %v1831
      %1864 = vst [vmem:[%s253 + $0x78] sm:$0xff] %v1832
      %1865 = vst [vmem:[%s253 + $0x80] sm:$0xff] %v1833
      %1866 = vst [vmem:[%s253 + $0x88] sm:$0xff] %v1834
      %1867 = vst [vmem:[%s253 + $0x90] sm:$0xff] %v1835
      %1868 = vst [vmem:[%s253 + $0x98] sm:$0xff] %v1836
      %1869 = vst [vmem:[%s253 + $0xa0] sm:$0xff] %v1837
      %1870 = vst [vmem:[%s253 + $0xa8] sm:$0xff] %v1838
      %1871 = vst [vmem:[%s253 + $0xb0] sm:$0xff] %v1839
      %1872 = vst [vmem:[%s253 + $0xb8] sm:$0xff] %v1840
      %1873 = vst [vmem:[%s253 + $0xc0] sm:$0xff] %v1841
      %1874 = vst [vmem:[%s253 + $0xc8] sm:$0xff] %v1842
      %1875 = vst [vmem:[%s253 + $0xd0] sm:$0xff] %v1843
      %1876 = vst [vmem:[%s253 + $0xd8] sm:$0xff] %v1844
      %1877 = vst [vmem:[%s253 + $0xe0] sm:$0xff] %v1845
      %1878 = vst [vmem:[%s253 + $0xe8] sm:$0xff] %v1846
      %1879 = vst [vmem:[%s253 + $0xf0] sm:$0xff] %v1847
      %1880 = vst [vmem:[%s253 + $0xf8] sm:$0xff] %v1848
      %s1881 = smul.u32 32, %s17
      %p1882 = scmp.lt.s32.totalorder %s1881, 63
      %s1883 = scalar_select %p1882, %s1881, 63
      %s1884 = smul.addr %s1883, 8
      %s1885 = scalar_lea.vmem %s6, %s1884
      // Predicated region
      $region45: #{attention_forward.2} parent=43 // pred_check
        %p1886 = pneg %p166
      $region46: #{attention_forward.2} parent=43 // pred_check_branch
        %1888 = sbr.rel (%p1886) target = $region48
      $region47: #{attention_forward.2} parent=43 // pred_region
        %s1889 = smul.u32 32, %s17
      $region48: #{attention_forward.2} parent=43 // pred_fallthru
        _
    $region44: #{attention_forward.2} parent=5 // pred_fallthru
      _
    %p1890 = scmp.le.s32.totalorder 2, %s12
    // Predicated region
    $region49: #{attention_forward.2} parent=5 // pred_check
      %p1891 = pneg %p1890
    $region50: #{attention_forward.2} parent=5 // pred_check_branch
      %1893 = sbr.rel (%p1891) target = $region52
    $region51: #{attention_forward.2} parent=5 // pred_region
      %s1894 = ssub.s32 %s12, 2
      // Predicated region
      $region53: #{attention_forward.2} parent=51 // pred_check
        %p1895 = pneg %p172
      $region54: #{attention_forward.2} parent=51 // pred_check_branch
        %1897 = sbr.rel (%p1895) target = $region56
      $region55: #{attention_forward.2} parent=51 // pred_region
        %s1898 = smul.u32 32, %s18
        %p1899 = scmp.lt.s32.totalorder %s1898, 63
        %s1900 = scalar_select %p1899, %s1898, 63
        %s1901 = smul.addr %s1900, 8
        %s1902 = scalar_lea.vmem %s6, %s1901
      $region56: #{attention_forward.2} parent=51 // pred_fallthru
        _
    $region52: #{attention_forward.2} parent=5 // pred_fallthru
      _
  $region6: #{attention_forward.2} parent=0 // loop_footer
    %s16 = sadd.s32 1, %s12
  $region7: #{attention_forward.2} parent=0 // loop_footer_branch
    %11 = sbr.rel target = $region3
  $region8: #{attention_forward.2} parent=0 // loop_exit
    _

// kernel: attention_forward.3
$region0: #{attention_forward.3}
  #allocation0 [shape = 'u32[]', space=smem, size = 0x4, offset = 0x4, fixed_abs, tag = 'smem constant byte address 0x4 - core index']
  #allocation1 [shape = 'u32[72,128]{1,0:T(1,128)}', space=vmem, size = 0x9000, scoped, tag = 'internal scratch']
  %s0 = inlined_call_operand.vmem [shape: f32[2,18,18,128], index: 0, kind: input, shape index: {}]
  %s1 = inlined_call_operand.vmem [shape: bf16[9,128,128], index: 1, kind: input, shape index: {}]
  %s2 = inlined_call_operand.vmem [shape: f32[1,128], index: 2, kind: input, shape index: {}]
  %s3 = inlined_call_operand.vmem [shape: f32[1,128], index: 3, kind: input, shape index: {}]
  %s4 = inlined_call_operand.vmem [shape: f32[256,1], index: 4, kind: input, shape index: {}]
  %s5 = inlined_call_operand.vmem [shape: f32[2,256,128], index: 5, kind: output, shape index: {0}]
  %s6 = inlined_call_operand.vmem [shape: f32[2,256,1], index: 6, kind: output, shape index: {1}]
  %7 = xla_tuple %s5, %s6
  %s8 = sld [smem:[#allocation0]]
  $region61: #{attention_forward.3} parent=0
    _
  %s10 = ssub.s32 1, %s8
  %s11 = scalar_select 0, %s10, %s8
  loop: start=0, step=1, limit=4
  $region2: #{attention_forward.3} parent=0 // loop_pre_header
    _
  $region3: #{attention_forward.3} parent=0 // loop_header
    %s13 = sphi 0, %s17
    %p14 = scmp.ge.s32.totalorder %s13, 4
    %s23 = sphi 0, %s25
    %s26 = sphi 0, %s23
    %s27 = sphi 0, %s26
    %s43 = sphi 0, %s27
    %s47 = sphi 0, %s47
    %s49 = sphi 0, %s47
    %s50 = sphi 0, %s49
    %s64 = sphi 0, %s50
    %s68 = sphi 0, %s68
    %s70 = sphi 0, %s68
    %s71 = sphi 0, %s70
    %s85 = sphi 0, %s71
    %s89 = sphi 0, %s89
    %s91 = sphi 0, %s89
    %s92 = sphi 0, %s91
    %s106 = sphi 0, %s92
    %s110 = sphi 0, %s110
    %s112 = sphi 0, %s110
    %s113 = sphi 0, %s112
    %s127 = sphi 0, %s113
    %s133 = sphi 0, %s135
    %s136 = sphi 0, %s133
    %s137 = sphi 0, %s136
    %s153 = sphi 0, %s137
    %s159 = sphi 0, %s161
    %s162 = sphi 0, %s159
    %s163 = sphi 0, %s162
    %s179 = sphi 0, %s163
  $region4: #{attention_forward.3} parent=0 // loop_header_branch
    %16 = sbr.rel (%p14) target = $region8
  $region5: #{attention_forward.3} parent=0 // loop_body
    %s18 = ssub.s32 %s13, 1
    %s19 = ssub.s32 %s13, 2
    %s20 = sadd.s32 %s13, 1
    %s21 = ssub.s32 %s13, %s20
    %p22 = scmp.eq.s32.totalorder %s21, 0
    %s24 = sadd.s32 %s23, 1
    %s25 = scalar_select %p22, %s23, %s24
    %p28 = pneg %p22
    %p29 = scmp.eq.s32.totalorder %s13, 1
    %p30 = por %p28, %p29
    %p31 = scmp.ne.s32.totalorder %s23, %s26
    %p32 = scmp.eq.s32.totalorder %s13, 0
    %p33 = por %p31, %p32
    %p34 = scmp.ne.s32.totalorder %s23, %s26
    %p35 = scmp.eq.s32.totalorder %s18, 1
    %p36 = por %p34, %p35
    %p37 = scmp.ne.s32.totalorder %s26, %s27
    %p38 = scmp.eq.s32.totalorder %s18, 0
    %p39 = por %p37, %p38
    %p40 = scmp.ne.s32.totalorder %s26, %s27
    %p41 = scmp.eq.s32.totalorder %s19, 1
    %p42 = por %p40, %p41
    %p44 = scmp.ne.s32.totalorder %s27, %s43
    %p45 = scmp.eq.s32.totalorder %s19, 0
    %p46 = por %p44, %p45
    %s48 = sadd.s32 %s47, 1
    %p51 = scmp.eq.s32.totalorder %s13, 1
    %p52 = scmp.ne.s32.totalorder %s47, %s49
    %p53 = scmp.eq.s32.totalorder %s13, 0
    %p54 = por %p52, %p53
    %p55 = scmp.ne.s32.totalorder %s47, %s49
    %p56 = scmp.eq.s32.totalorder %s18, 1
    %p57 = por %p55, %p56
    %p58 = scmp.ne.s32.totalorder %s49, %s50
    %p59 = scmp.eq.s32.totalorder %s18, 0
    %p60 = por %p58, %p59
    %p61 = scmp.ne.s32.totalorder %s49, %s50
    %p62 = scmp.eq.s32.totalorder %s19, 1
    %p63 = por %p61, %p62
    %p65 = scmp.ne.s32.totalorder %s50, %s64
    %p66 = scmp.eq.s32.totalorder %s19, 0
    %p67 = por %p65, %p66
    %s69 = sadd.s32 %s68, 1
    %p72 = scmp.eq.s32.totalorder %s13, 1
    %p73 = scmp.ne.s32.totalorder %s68, %s70
    %p74 = scmp.eq.s32.totalorder %s13, 0
    %p75 = por %p73, %p74
    %p76 = scmp.ne.s32.totalorder %s68, %s70
    %p77 = scmp.eq.s32.totalorder %s18, 1
    %p78 = por %p76, %p77
    %p79 = scmp.ne.s32.totalorder %s70, %s71
    %p80 = scmp.eq.s32.totalorder %s18, 0
    %p81 = por %p79, %p80
    %p82 = scmp.ne.s32.totalorder %s70, %s71
    %p83 = scmp.eq.s32.totalorder %s19, 1
    %p84 = por %p82, %p83
    %p86 = scmp.ne.s32.totalorder %s71, %s85
    %p87 = scmp.eq.s32.totalorder %s19, 0
    %p88 = por %p86, %p87
    %s90 = sadd.s32 %s89, 1
    %p93 = scmp.eq.s32.totalorder %s13, 1
    %p94 = scmp.ne.s32.totalorder %s89, %s91
    %p95 = scmp.eq.s32.totalorder %s13, 0
    %p96 = por %p94, %p95
    %p97 = scmp.ne.s32.totalorder %s89, %s91
    %p98 = scmp.eq.s32.totalorder %s18, 1
    %p99 = por %p97, %p98
    %p100 = scmp.ne.s32.totalorder %s91, %s92
    %p101 = scmp.eq.s32.totalorder %s18, 0
    %p102 = por %p100, %p101
    %p103 = scmp.ne.s32.totalorder %s91, %s92
    %p104 = scmp.eq.s32.totalorder %s19, 1
    %p105 = por %p103, %p104
    %p107 = scmp.ne.s32.totalorder %s92, %s106
    %p108 = scmp.eq.s32.totalorder %s19, 0
    %p109 = por %p107, %p108
    %s111 = sadd.s32 %s110, 1
    %p114 = scmp.eq.s32.totalorder %s13, 1
    %p115 = scmp.ne.s32.totalorder %s110, %s112
    %p116 = scmp.eq.s32.totalorder %s13, 0
    %p117 = por %p115, %p116
    %p118 = scmp.ne.s32.totalorder %s110, %s112
    %p119 = scmp.eq.s32.totalorder %s18, 1
    %p120 = por %p118, %p119
    %p121 = scmp.ne.s32.totalorder %s112, %s113
    %p122 = scmp.eq.s32.totalorder %s18, 0
    %p123 = por %p121, %p122
    %p124 = scmp.ne.s32.totalorder %s112, %s113
    %p125 = scmp.eq.s32.totalorder %s19, 1
    %p126 = por %p124, %p125
    %p128 = scmp.ne.s32.totalorder %s113, %s127
    %p129 = scmp.eq.s32.totalorder %s19, 0
    %p130 = por %p128, %p129
    %s131 = ssub.s32 %s13, %s20
    %p132 = scmp.eq.s32.totalorder %s131, 0
    %s134 = sadd.s32 %s133, 1
    %s135 = scalar_select %p132, %s133, %s134
    %p138 = pneg %p132
    %p139 = scmp.eq.s32.totalorder %s13, 1
    %p140 = por %p138, %p139
    %p141 = scmp.ne.s32.totalorder %s133, %s136
    %p142 = scmp.eq.s32.totalorder %s13, 0
    %p143 = por %p141, %p142
    %p144 = scmp.ne.s32.totalorder %s133, %s136
    %p145 = scmp.eq.s32.totalorder %s18, 1
    %p146 = por %p144, %p145
    %p147 = scmp.ne.s32.totalorder %s136, %s137
    %p148 = scmp.eq.s32.totalorder %s18, 0
    %p149 = por %p147, %p148
    %p150 = scmp.ne.s32.totalorder %s136, %s137
    %p151 = scmp.eq.s32.totalorder %s19, 1
    %p152 = por %p150, %p151
    %p154 = scmp.ne.s32.totalorder %s137, %s153
    %p155 = scmp.eq.s32.totalorder %s19, 0
    %p156 = por %p154, %p155
    %s157 = ssub.s32 %s13, %s20
    %p158 = scmp.eq.s32.totalorder %s157, 0
    %s160 = sadd.s32 %s159, 1
    %s161 = scalar_select %p158, %s159, %s160
    %p164 = pneg %p158
    %p165 = scmp.eq.s32.totalorder %s13, 1
    %p166 = por %p164, %p165
    %p167 = scmp.ne.s32.totalorder %s159, %s162
    %p168 = scmp.eq.s32.totalorder %s13, 0
    %p169 = por %p167, %p168
    %p170 = scmp.ne.s32.totalorder %s159, %s162
    %p171 = scmp.eq.s32.totalorder %s18, 1
    %p172 = por %p170, %p171
    %p173 = scmp.ne.s32.totalorder %s162, %s163
    %p174 = scmp.eq.s32.totalorder %s18, 0
    %p175 = por %p173, %p174
    %p176 = scmp.ne.s32.totalorder %s162, %s163
    %p177 = scmp.eq.s32.totalorder %s19, 1
    %p178 = por %p176, %p177
    %p180 = scmp.ne.s32.totalorder %s163, %s179
    %p181 = scmp.eq.s32.totalorder %s19, 0
    %p182 = por %p180, %p181
    %p183 = scmp.le.s32.totalorder 1, %s13
    %p184 = scmp.lt.s32.totalorder %s13, 3
    %p185 = pnand %p183, %p184
    %p186 = pneg %p185
    // Predicated region
    $region9: #{attention_forward.3} parent=5 // pred_check
      _
    $region10: #{attention_forward.3} parent=5 // pred_check_branch
      %188 = sbr.rel (%p185) target = $region12
    $region11: #{attention_forward.3} parent=5 // pred_region
      %s189 = ssub.s32 %s13, 1
      // Predicated region
      $region13: #{attention_forward.3} parent=11 // pred_check
        %p190 = pneg %p60
      $region14: #{attention_forward.3} parent=11 // pred_check_branch
        %192 = sbr.rel (%p190) target = $region16
      $region15: #{attention_forward.3} parent=11 // pred_region
        _
      $region16: #{attention_forward.3} parent=11 // pred_fallthru
        _
      // Predicated region
      $region17: #{attention_forward.3} parent=11 // pred_check
        %p193 = pneg %p81
      $region18: #{attention_forward.3} parent=11 // pred_check_branch
        %195 = sbr.rel (%p193) target = $region20
      $region19: #{attention_forward.3} parent=11 // pred_region
        _
      $region20: #{attention_forward.3} parent=11 // pred_fallthru
        _
      // Predicated region
      $region21: #{attention_forward.3} parent=11 // pred_check
        %p196 = pneg %p102
      $region22: #{attention_forward.3} parent=11 // pred_check_branch
        %198 = sbr.rel (%p196) target = $region24
      $region23: #{attention_forward.3} parent=11 // pred_region
        _
      $region24: #{attention_forward.3} parent=11 // pred_fallthru
        _
      // Predicated region
      $region25: #{attention_forward.3} parent=11 // pred_check
        %p199 = pneg %p123
      $region26: #{attention_forward.3} parent=11 // pred_check_branch
        %201 = sbr.rel (%p199) target = $region28
      $region27: #{attention_forward.3} parent=11 // pred_region
        _
      $region28: #{attention_forward.3} parent=11 // pred_fallthru
        _
    $region12: #{attention_forward.3} parent=5 // pred_fallthru
      _
    %p202 = scmp.lt.s32.totalorder %s13, 2
    // Predicated region
    $region29: #{attention_forward.3} parent=5 // pred_check
      %p203 = pneg %p202
    $region30: #{attention_forward.3} parent=5 // pred_check_branch
      %205 = sbr.rel (%p203) target = $region32
    $region31: #{attention_forward.3} parent=5 // pred_region
      // Predicated region
      $region33: #{attention_forward.3} parent=31 // pred_check
        %p206 = pneg %p33
      $region34: #{attention_forward.3} parent=31 // pred_check_branch
        %208 = sbr.rel (%p206) target = $region36
      $region35: #{attention_forward.3} parent=31 // pred_region
        %p209 = scmp.lt.s32.totalorder %s13, 1
        %s210 = scalar_select %p209, %s13, 1
        %s211 = smul.addr %s210, 54
        %s212 = smul.addr %s211, 8
        %s213 = scalar_lea.vmem %s0, %s212
      $region36: #{attention_forward.3} parent=31 // pred_fallthru
        _
    $region32: #{attention_forward.3} parent=5 // pred_fallthru
      _
    %p214 = scmp.le.s32.totalorder 1, %s13
    %p215 = scmp.lt.s32.totalorder %s13, 3
    %p216 = pnand %p214, %p215
    %p217 = pneg %p216
    // Predicated region
    $region37: #{attention_forward.3} parent=5 // pred_check
      _
    $region38: #{attention_forward.3} parent=5 // pred_check_branch
      %219 = sbr.rel (%p216) target = $region40
    $region39: #{attention_forward.3} parent=5 // pred_region
      %s220 = ssub.s32 %s13, 1
      %p221 = scmp.lt.s32.totalorder %s18, 1
      %s222 = scalar_select %p221, %s18, 1
      %s223 = smul.addr %s222, 54
      %s224 = smul.addr %s223, 8
      %s225 = scalar_lea.vmem %s0, %s224
      %p226 = pneg %p39
      %p227 = pneg %p36
      %p228 = pneg %p60
      %p229 = pneg %p57
      %p230 = pneg %p81
      %p231 = pneg %p78
      %p232 = pneg %p102
      %p233 = pneg %p99
      %p234 = pneg %p123
      %p235 = pneg %p120
      %p236 = pneg %p149
      %p237 = pneg %p146
      %p238 = scmp.lt.s32.totalorder %s18, 1
      %s239 = scalar_select %p238, %s18, 1
      %s240 = smul.addr %s239, 32
      %s241 = smul.addr %s240, 8
      %s242 = scalar_lea.vmem %s5, %s241
      %p243 = pneg %p175
      %p244 = pneg %p172
      %p245 = scmp.lt.s32.totalorder %s18, 1
      %s246 = scalar_select %p245, %s18, 1
      %s247 = smul.addr %s246, 32
      %s248 = smul.addr %s247, 8
      %s249 = scalar_lea.vmem %s6, %s248
      %p250 = scmp.lt.s32.totalorder %s18, 1
      %s251 = scalar_select %p250, %s18, 1
      %s252 = smul.addr %s251, 54
      %s253 = smul.addr %s252, 8
      %s254 = scalar_lea.vmem %s0, %s253
      %p255 = scmp.lt.s32.totalorder %s18, 1
      %s256 = scalar_select %p255, %s18, 1
      %s257 = smul.addr %s256, 32
      %s258 = smul.addr %s257, 8
      %s259 = scalar_lea.vmem %s5, %s258
      %p260 = scmp.lt.s32.totalorder %s18, 1
      %s261 = scalar_select %p260, %s18, 1
      %s262 = smul.addr %s261, 32
      %s263 = smul.addr %s262, 8
      %s264 = scalar_lea.vmem %s6, %s263
      %v265 = vld [vmem:[%s254] sm:$0xff]
      %v266 = vld [vmem:[%s254 + $0x8] sm:$0xff]
      %v267 = vld [vmem:[%s254 + $0x18] sm:$0xff]
      %v268 = vld [vmem:[%s254 + $0x20] sm:$0xff]
      %v269 = vld [vmem:[%s254 + $0x30] sm:$0xff]
      %v270 = vld [vmem:[%s254 + $0x38] sm:$0xff]
      %v271 = vld [vmem:[%s254 + $0x48] sm:$0xff]
      %v272 = vld [vmem:[%s254 + $0x50] sm:$0xff]
      %v273 = vld [vmem:[%s254 + $0x60] sm:$0xff]
      %v274 = vld [vmem:[%s254 + $0x68] sm:$0xff]
      %v275 = vld [vmem:[%s254 + $0x78] sm:$0xff]
      %v276 = vld [vmem:[%s254 + $0x80] sm:$0xff]
      %v277 = vld [vmem:[%s254 + $0x90] sm:$0xff]
      %v278 = vld [vmem:[%s254 + $0x98] sm:$0xff]
      %v279 = vld [vmem:[%s254 + $0xa8] sm:$0xff]
      %v280 = vld [vmem:[%s254 + $0xb0] sm:$0xff]
      %v281 = vld [vmem:[%s254 + $0xc0] sm:$0xff]
      %v282 = vld [vmem:[%s254 + $0xc8] sm:$0xff]
      %v283 = vld [vmem:[%s254 + $0xd8] sm:$0xff]
      %v284 = vld [vmem:[%s254 + $0xe0] sm:$0xff]
      %v285 = vld [vmem:[%s254 + $0xf0] sm:$0xff]
      %v286 = vld [vmem:[%s254 + $0xf8] sm:$0xff]
      %v287 = vld [vmem:[%s254 + $0x108] sm:$0xff]
      %v288 = vld [vmem:[%s254 + $0x110] sm:$0xff]
      %v289 = vld [vmem:[%s254 + $0x120] sm:$0xff]
      %v290 = vld [vmem:[%s254 + $0x128] sm:$0xff]
      %v291 = vld [vmem:[%s254 + $0x138] sm:$0xff]
      %v292 = vld [vmem:[%s254 + $0x140] sm:$0xff]
      %v293 = vld [vmem:[%s254 + $0x150] sm:$0xff]
      %v294 = vld [vmem:[%s254 + $0x158] sm:$0xff]
      %v295 = vld [vmem:[%s254 + $0x168] sm:$0xff]
      %v296 = vld [vmem:[%s254 + $0x170] sm:$0xff]
      %v297 = vpack.c.bf16 %v266, %v265
      %v298 = vpack.c.bf16 %v268, %v267
      %v299 = vpack.c.bf16 %v270, %v269
      %v300 = vpack.c.bf16 %v272, %v271
      %v301 = vpack.c.bf16 %v274, %v273
      %v302 = vpack.c.bf16 %v276, %v275
      %v303 = vpack.c.bf16 %v278, %v277
      %v304 = vpack.c.bf16 %v280, %v279
      %v305 = vpack.c.bf16 %v282, %v281
      %v306 = vpack.c.bf16 %v284, %v283
      %v307 = vpack.c.bf16 %v286, %v285
      %v308 = vpack.c.bf16 %v288, %v287
      %v309 = vpack.c.bf16 %v290, %v289
      %v310 = vpack.c.bf16 %v292, %v291
      %v311 = vpack.c.bf16 %v294, %v293
      %v312 = vpack.c.bf16 %v296, %v295
      %v313 = vld [vmem:[%s1] sm:$0xf]
      %v314 = vld [vmem:[%s1 + $0x4] sm:$0xf]
      %v315 = vld [vmem:[%s1 + $0x8] sm:$0xf]
      %v316 = vld [vmem:[%s1 + $0xc] sm:$0xf]
      %v317 = vld [vmem:[%s1 + $0x10] sm:$0xf]
      %v318 = vld [vmem:[%s1 + $0x14] sm:$0xf]
      %v319 = vld [vmem:[%s1 + $0x18] sm:$0xf]
      %v320 = vld [vmem:[%s1 + $0x1c] sm:$0xf]
      %v321 = vld [vmem:[%s1 + $0x20] sm:$0xf]
      %v322 = vld [vmem:[%s1 + $0x24] sm:$0xf]
      %v323 = vld [vmem:[%s1 + $0x28] sm:$0xf]
      %v324 = vld [vmem:[%s1 + $0x2c] sm:$0xf]
      %v325 = vld [vmem:[%s1 + $0x30] sm:$0xf]
      %v326 = vld [vmem:[%s1 + $0x34] sm:$0xf]
      %v327 = vld [vmem:[%s1 + $0x38] sm:$0xf]
      %v328 = vld [vmem:[%s1 + $0x3c] sm:$0xf]
      %v329 = vld [vmem:[%s254 + $0x1] sm:$0xff]
      %v330 = vld [vmem:[%s254 + $0x9] sm:$0xff]
      %v331 = vld [vmem:[%s254 + $0x19] sm:$0xff]
      %v332 = vld [vmem:[%s254 + $0x21] sm:$0xff]
      %v333 = vld [vmem:[%s254 + $0x31] sm:$0xff]
      %v334 = vld [vmem:[%s254 + $0x39] sm:$0xff]
      %v335 = vld [vmem:[%s254 + $0x49] sm:$0xff]
      %v336 = vld [vmem:[%s254 + $0x51] sm:$0xff]
      %v337 = vld [vmem:[%s254 + $0x61] sm:$0xff]
      %v338 = vld [vmem:[%s254 + $0x69] sm:$0xff]
      %v339 = vld [vmem:[%s254 + $0x79] sm:$0xff]
      %v340 = vld [vmem:[%s254 + $0x81] sm:$0xff]
      %v341 = vld [vmem:[%s254 + $0x91] sm:$0xff]
      %v342 = vld [vmem:[%s254 + $0x99] sm:$0xff]
      %v343 = vld [vmem:[%s254 + $0xa9] sm:$0xff]
      %v344 = vld [vmem:[%s254 + $0xb1] sm:$0xff]
      %v345 = vld [vmem:[%s254 + $0xc1] sm:$0xff]
      %v346 = vld [vmem:[%s254 + $0xc9] sm:$0xff]
      %v347 = vld [vmem:[%s254 + $0xd9] sm:$0xff]
      %v348 = vld [vmem:[%s254 + $0xe1] sm:$0xff]
      %v349 = vld [vmem:[%s254 + $0xf1] sm:$0xff]
      %v350 = vld [vmem:[%s254 + $0xf9] sm:$0xff]
      %v351 = vld [vmem:[%s254 + $0x109] sm:$0xff]
      %v352 = vld [vmem:[%s254 + $0x111] sm:$0xff]
      %v353 = vld [vmem:[%s254 + $0x121] sm:$0xff]
      %v354 = vld [vmem:[%s254 + $0x129] sm:$0xff]
      %v355 = vld [vmem:[%s254 + $0x139] sm:$0xff]
      %v356 = vld [vmem:[%s254 + $0x141] sm:$0xff]
      %v357 = vld [vmem:[%s254 + $0x151] sm:$0xff]
      %v358 = vld [vmem:[%s254 + $0x159] sm:$0xff]
      %v359 = vld [vmem:[%s254 + $0x169] sm:$0xff]
      %v360 = vld [vmem:[%s254 + $0x171] sm:$0xff]
      %v361 = vpack.c.bf16 %v330, %v329
      %v362 = vpack.c.bf16 %v332, %v331
      %v363 = vpack.c.bf16 %v334, %v333
      %v364 = vpack.c.bf16 %v336, %v335
      %v365 = vpack.c.bf16 %v338, %v337
      %v366 = vpack.c.bf16 %v340, %v339
      %v367 = vpack.c.bf16 %v342, %v341
      %v368 = vpack.c.bf16 %v344, %v343
      %v369 = vpack.c.bf16 %v346, %v345
      %v370 = vpack.c.bf16 %v348, %v347
      %v371 = vpack.c.bf16 %v350, %v349
      %v372 = vpack.c.bf16 %v352, %v351
      %v373 = vpack.c.bf16 %v354, %v353
      %v374 = vpack.c.bf16 %v356, %v355
      %v375 = vpack.c.bf16 %v358, %v357
      %v376 = vpack.c.bf16 %v360, %v359
      %s377 = scalar_lea.vmem %s1, 64
      %v378 = vld [vmem:[%s377] sm:$0xf]
      %v379 = vld [vmem:[%s377 + $0x4] sm:$0xf]
      %v380 = vld [vmem:[%s377 + $0x8] sm:$0xf]
      %v381 = vld [vmem:[%s377 + $0xc] sm:$0xf]
      %v382 = vld [vmem:[%s377 + $0x10] sm:$0xf]
      %v383 = vld [vmem:[%s377 + $0x14] sm:$0xf]
      %v384 = vld [vmem:[%s377 + $0x18] sm:$0xf]
      %v385 = vld [vmem:[%s377 + $0x1c] sm:$0xf]
      %v386 = vld [vmem:[%s377 + $0x20] sm:$0xf]
      %v387 = vld [vmem:[%s377 + $0x24] sm:$0xf]
      %v388 = vld [vmem:[%s377 + $0x28] sm:$0xf]
      %v389 = vld [vmem:[%s377 + $0x2c] sm:$0xf]
      %v390 = vld [vmem:[%s377 + $0x30] sm:$0xf]
      %v391 = vld [vmem:[%s377 + $0x34] sm:$0xf]
      %v392 = vld [vmem:[%s377 + $0x38] sm:$0xf]
      %v393 = vld [vmem:[%s377 + $0x3c] sm:$0xf]
      %v410 = vunpack.c.l.b16 %v378
      %v411 = vunpack.c.l.b16 %v379
      %v412 = vunpack.c.l.b16 %v380
      %v413 = vunpack.c.l.b16 %v381
      %v414 = vunpack.c.l.b16 %v382
      %v415 = vunpack.c.l.b16 %v383
      %v416 = vunpack.c.l.b16 %v384
      %v417 = vunpack.c.l.b16 %v385
      %v418 = vunpack.c.l.b16 %v386
      %v419 = vunpack.c.l.b16 %v387
      %v420 = vunpack.c.l.b16 %v388
      %v421 = vunpack.c.l.b16 %v389
      %v422 = vunpack.c.l.b16 %v390
      %v423 = vunpack.c.l.b16 %v391
      %v424 = vunpack.c.l.b16 %v392
      %v425 = vunpack.c.l.b16 %v393
      %v426 = vpack.c.b16 %v411, %v410
      %v427 = vpack.c.b16 %v413, %v412
      %v428 = vpack.c.b16 %v415, %v414
      %v429 = vpack.c.b16 %v417, %v416
      %v430 = vpack.c.b16 %v419, %v418
      %v431 = vpack.c.b16 %v421, %v420
      %v432 = vpack.c.b16 %v423, %v422
      %v433 = vpack.c.b16 %v425, %v424
      %442 = vmatpush.bf16.msra.mxu0 %v433
      %443 = vmatpush.bf16.msra.mxu0 %v432
      %444 = vmatpush.bf16.msra.mxu0 %v431
      %445 = vmatpush.bf16.msra.mxu0 %v430
      %446 = vmatpush.bf16.msra.mxu0 %v429
      %447 = vmatpush.bf16.msra.mxu0 %v428
      %448 = vmatpush.bf16.msra.mxu0 %v427
      %449 = vmatpush.bf16.msra.mxu0 %v426
      %450 = vmatmul.bf16.gmra.mxu0 %v361
      %v451 = vpop.f32.mrf.mxu0
      %v452 = vadd.f32 0.0, %v451
      %v453 = vpop.f32.mrf.mxu0
      %v454 = vadd.f32 0.0, %v453
      %455 = vmatmul.bf16.gmra.mxu0 %v362
      %v456 = vpop.f32.mrf.mxu0
      %v457 = vadd.f32 0.0, %v456
      %v458 = vpop.f32.mrf.mxu0
      %v459 = vadd.f32 0.0, %v458
      %460 = vmatmul.bf16.gmra.mxu0 %v363
      %v461 = vpop.f32.mrf.mxu0
      %v462 = vadd.f32 0.0, %v461
      %v463 = vpop.f32.mrf.mxu0
      %v464 = vadd.f32 0.0, %v463
      %465 = vmatmul.bf16.gmra.mxu0 %v364
      %v466 = vpop.f32.mrf.mxu0
      %v467 = vadd.f32 0.0, %v466
      %v468 = vpop.f32.mrf.mxu0
      %v469 = vadd.f32 0.0, %v468
      %470 = vmatmul.bf16.gmra.mxu0 %v365
      %v471 = vpop.f32.mrf.mxu0
      %v472 = vadd.f32 0.0, %v471
      %v473 = vpop.f32.mrf.mxu0
      %v474 = vadd.f32 0.0, %v473
      %475 = vmatmul.bf16.gmra.mxu0 %v366
      %v476 = vpop.f32.mrf.mxu0
      %v477 = vadd.f32 0.0, %v476
      %v478 = vpop.f32.mrf.mxu0
      %v479 = vadd.f32 0.0, %v478
      %480 = vmatmul.bf16.gmra.mxu0 %v367
      %v481 = vpop.f32.mrf.mxu0
      %v482 = vadd.f32 0.0, %v481
      %v483 = vpop.f32.mrf.mxu0
      %v484 = vadd.f32 0.0, %v483
      %485 = vmatmul.bf16.gmra.mxu0 %v368
      %v486 = vpop.f32.mrf.mxu0
      %v487 = vadd.f32 0.0, %v486
      %v488 = vpop.f32.mrf.mxu0
      %v489 = vadd.f32 0.0, %v488
      %490 = vmatmul.bf16.gmra.mxu0 %v369
      %v491 = vpop.f32.mrf.mxu0
      %v492 = vadd.f32 0.0, %v491
      %v493 = vpop.f32.mrf.mxu0
      %v494 = vadd.f32 0.0, %v493
      %495 = vmatmul.bf16.gmra.mxu0 %v370
      %v496 = vpop.f32.mrf.mxu0
      %v497 = vadd.f32 0.0, %v496
      %v498 = vpop.f32.mrf.mxu0
      %v499 = vadd.f32 0.0, %v498
      %500 = vmatmul.bf16.gmra.mxu0 %v371
      %v501 = vpop.f32.mrf.mxu0
      %v502 = vadd.f32 0.0, %v501
      %v503 = vpop.f32.mrf.mxu0
      %v504 = vadd.f32 0.0, %v503
      %505 = vmatmul.bf16.gmra.mxu0 %v372
      %v506 = vpop.f32.mrf.mxu0
      %v507 = vadd.f32 0.0, %v506
      %v508 = vpop.f32.mrf.mxu0
      %v509 = vadd.f32 0.0, %v508
      %510 = vmatmul.bf16.gmra.mxu0 %v373
      %v511 = vpop.f32.mrf.mxu0
      %v512 = vadd.f32 0.0, %v511
      %v513 = vpop.f32.mrf.mxu0
      %v514 = vadd.f32 0.0, %v513
      %515 = vmatmul.bf16.gmra.mxu0 %v374
      %v516 = vpop.f32.mrf.mxu0
      %v517 = vadd.f32 0.0, %v516
      %v518 = vpop.f32.mrf.mxu0
      %v519 = vadd.f32 0.0, %v518
      %520 = vmatmul.bf16.gmra.mxu0 %v375
      %v521 = vpop.f32.mrf.mxu0
      %v522 = vadd.f32 0.0, %v521
      %v523 = vpop.f32.mrf.mxu0
      %v524 = vadd.f32 0.0, %v523
      %525 = vmatmul.bf16.gmra.mxu0 %v376
      %v526 = vpop.f32.mrf.mxu0
      %v527 = vadd.f32 0.0, %v526
      %v528 = vpop.f32.mrf.mxu0
      %v529 = vadd.f32 0.0, %v528
      %530 = vdwg.mxu0
      %v547 = vunpack.c.l.b16 %v313
      %v548 = vunpack.c.l.b16 %v314
      %v549 = vunpack.c.l.b16 %v315
      %v550 = vunpack.c.l.b16 %v316
      %v551 = vunpack.c.l.b16 %v317
      %v552 = vunpack.c.l.b16 %v318
      %v553 = vunpack.c.l.b16 %v319
      %v554 = vunpack.c.l.b16 %v320
      %v555 = vunpack.c.l.b16 %v321
      %v556 = vunpack.c.l.b16 %v322
      %v557 = vunpack.c.l.b16 %v323
      %v558 = vunpack.c.l.b16 %v324
      %v559 = vunpack.c.l.b16 %v325
      %v560 = vunpack.c.l.b16 %v326
      %v561 = vunpack.c.l.b16 %v327
      %v562 = vunpack.c.l.b16 %v328
      %v563 = vpack.c.b16 %v548, %v547
      %v564 = vpack.c.b16 %v550, %v549
      %v565 = vpack.c.b16 %v552, %v551
      %v566 = vpack.c.b16 %v554, %v553
      %v567 = vpack.c.b16 %v556, %v555
      %v568 = vpack.c.b16 %v558, %v557
      %v569 = vpack.c.b16 %v560, %v559
      %v570 = vpack.c.b16 %v562, %v561
      %579 = vmatpush.bf16.msra.mxu0 %v570
      %580 = vmatpush.bf16.msra.mxu0 %v569
      %581 = vmatpush.bf16.msra.mxu0 %v568
      %582 = vmatpush.bf16.msra.mxu0 %v567
      %583 = vmatpush.bf16.msra.mxu0 %v566
      %584 = vmatpush.bf16.msra.mxu0 %v565
      %585 = vmatpush.bf16.msra.mxu0 %v564
      %586 = vmatpush.bf16.msra.mxu0 %v563
      %587 = vmatmul.bf16.gmra.mxu0 %v297
      %v588 = vpop.f32.mrf.mxu0
      %v589 = vadd.f32 %v452, %v588
      %v590 = vpop.f32.mrf.mxu0
      %v591 = vadd.f32 %v454, %v590
      %592 = vmatmul.bf16.gmra.mxu0 %v298
      %v593 = vpop.f32.mrf.mxu0
      %v594 = vadd.f32 %v457, %v593
      %v595 = vpop.f32.mrf.mxu0
      %v596 = vadd.f32 %v459, %v595
      %597 = vmatmul.bf16.gmra.mxu0 %v299
      %v598 = vpop.f32.mrf.mxu0
      %v599 = vadd.f32 %v462, %v598
      %v600 = vpop.f32.mrf.mxu0
      %v601 = vadd.f32 %v464, %v600
      %602 = vmatmul.bf16.gmra.mxu0 %v300
      %v603 = vpop.f32.mrf.mxu0
      %v604 = vadd.f32 %v467, %v603
      %v605 = vpop.f32.mrf.mxu0
      %v606 = vadd.f32 %v469, %v605
      %607 = vmatmul.bf16.gmra.mxu0 %v301
      %v608 = vpop.f32.mrf.mxu0
      %v609 = vadd.f32 %v472, %v608
      %v610 = vpop.f32.mrf.mxu0
      %v611 = vadd.f32 %v474, %v610
      %612 = vmatmul.bf16.gmra.mxu0 %v302
      %v613 = vpop.f32.mrf.mxu0
      %v614 = vadd.f32 %v477, %v613
      %v615 = vpop.f32.mrf.mxu0
      %v616 = vadd.f32 %v479, %v615
      %617 = vmatmul.bf16.gmra.mxu0 %v303
      %v618 = vpop.f32.mrf.mxu0
      %v619 = vadd.f32 %v482, %v618
      %v620 = vpop.f32.mrf.mxu0
      %v621 = vadd.f32 %v484, %v620
      %622 = vmatmul.bf16.gmra.mxu0 %v304
      %v623 = vpop.f32.mrf.mxu0
      %v624 = vadd.f32 %v487, %v623
      %v625 = vpop.f32.mrf.mxu0
      %v626 = vadd.f32 %v489, %v625
      %627 = vmatmul.bf16.gmra.mxu0 %v305
      %v628 = vpop.f32.mrf.mxu0
      %v629 = vadd.f32 %v492, %v628
      %v630 = vpop.f32.mrf.mxu0
      %v631 = vadd.f32 %v494, %v630
      %632 = vmatmul.bf16.gmra.mxu0 %v306
      %v633 = vpop.f32.mrf.mxu0
      %v634 = vadd.f32 %v497, %v633
      %v635 = vpop.f32.mrf.mxu0
      %v636 = vadd.f32 %v499, %v635
      %637 = vmatmul.bf16.gmra.mxu0 %v307
      %v638 = vpop.f32.mrf.mxu0
      %v639 = vadd.f32 %v502, %v638
      %v640 = vpop.f32.mrf.mxu0
      %v641 = vadd.f32 %v504, %v640
      %642 = vmatmul.bf16.gmra.mxu0 %v308
      %v643 = vpop.f32.mrf.mxu0
      %v644 = vadd.f32 %v507, %v643
      %v645 = vpop.f32.mrf.mxu0
      %v646 = vadd.f32 %v509, %v645
      %647 = vmatmul.bf16.gmra.mxu0 %v309
      %v648 = vpop.f32.mrf.mxu0
      %v649 = vadd.f32 %v512, %v648
      %v650 = vpop.f32.mrf.mxu0
      %v651 = vadd.f32 %v514, %v650
      %652 = vmatmul.bf16.gmra.mxu0 %v310
      %v653 = vpop.f32.mrf.mxu0
      %v654 = vadd.f32 %v517, %v653
      %v655 = vpop.f32.mrf.mxu0
      %v656 = vadd.f32 %v519, %v655
      %657 = vmatmul.bf16.gmra.mxu0 %v311
      %v658 = vpop.f32.mrf.mxu0
      %v659 = vadd.f32 %v522, %v658
      %v660 = vpop.f32.mrf.mxu0
      %v661 = vadd.f32 %v524, %v660
      %662 = vmatmul.bf16.gmra.mxu0 %v312
      %v663 = vpop.f32.mrf.mxu0
      %v664 = vadd.f32 %v527, %v663
      %v665 = vpop.f32.mrf.mxu0
      %v666 = vadd.f32 %v529, %v665
      %667 = vdwg.mxu0
      %v668 = vld [vmem:[%s254 + $0x2] sm:$0xff]
      %v669 = vld [vmem:[%s254 + $0xa] sm:$0xff]
      %v670 = vld [vmem:[%s254 + $0x1a] sm:$0xff]
      %v671 = vld [vmem:[%s254 + $0x22] sm:$0xff]
      %v672 = vld [vmem:[%s254 + $0x32] sm:$0xff]
      %v673 = vld [vmem:[%s254 + $0x3a] sm:$0xff]
      %v674 = vld [vmem:[%s254 + $0x4a] sm:$0xff]
      %v675 = vld [vmem:[%s254 + $0x52] sm:$0xff]
      %v676 = vld [vmem:[%s254 + $0x62] sm:$0xff]
      %v677 = vld [vmem:[%s254 + $0x6a] sm:$0xff]
      %v678 = vld [vmem:[%s254 + $0x7a] sm:$0xff]
      %v679 = vld [vmem:[%s254 + $0x82] sm:$0xff]
      %v680 = vld [vmem:[%s254 + $0x92] sm:$0xff]
      %v681 = vld [vmem:[%s254 + $0x9a] sm:$0xff]
      %v682 = vld [vmem:[%s254 + $0xaa] sm:$0xff]
      %v683 = vld [vmem:[%s254 + $0xb2] sm:$0xff]
      %v684 = vld [vmem:[%s254 + $0xc2] sm:$0xff]
      %v685 = vld [vmem:[%s254 + $0xca] sm:$0xff]
      %v686 = vld [vmem:[%s254 + $0xda] sm:$0xff]
      %v687 = vld [vmem:[%s254 + $0xe2] sm:$0xff]
      %v688 = vld [vmem:[%s254 + $0xf2] sm:$0xff]
      %v689 = vld [vmem:[%s254 + $0xfa] sm:$0xff]
      %v690 = vld [vmem:[%s254 + $0x10a] sm:$0xff]
      %v691 = vld [vmem:[%s254 + $0x112] sm:$0xff]
      %v692 = vld [vmem:[%s254 + $0x122] sm:$0xff]
      %v693 = vld [vmem:[%s254 + $0x12a] sm:$0xff]
      %v694 = vld [vmem:[%s254 + $0x13a] sm:$0xff]
      %v695 = vld [vmem:[%s254 + $0x142] sm:$0xff]
      %v696 = vld [vmem:[%s254 + $0x152] sm:$0xff]
      %v697 = vld [vmem:[%s254 + $0x15a] sm:$0xff]
      %v698 = vld [vmem:[%s254 + $0x16a] sm:$0xff]
      %v699 = vld [vmem:[%s254 + $0x172] sm:$0xff]
      %v700 = vpack.c.bf16 %v669, %v668
      %v701 = vpack.c.bf16 %v671, %v670
      %v702 = vpack.c.bf16 %v673, %v672
      %v703 = vpack.c.bf16 %v675, %v674
      %v704 = vpack.c.bf16 %v677, %v676
      %v705 = vpack.c.bf16 %v679, %v678
      %v706 = vpack.c.bf16 %v681, %v680
      %v707 = vpack.c.bf16 %v683, %v682
      %v708 = vpack.c.bf16 %v685, %v684
      %v709 = vpack.c.bf16 %v687, %v686
      %v710 = vpack.c.bf16 %v689, %v688
      %v711 = vpack.c.bf16 %v691, %v690
      %v712 = vpack.c.bf16 %v693, %v692
      %v713 = vpack.c.bf16 %v695, %v694
      %v714 = vpack.c.bf16 %v697, %v696
      %v715 = vpack.c.bf16 %v699, %v698
      %s716 = scalar_lea.vmem %s1, 128
      %v717 = vld [vmem:[%s716] sm:$0xf]
      %v718 = vld [vmem:[%s716 + $0x4] sm:$0xf]
      %v719 = vld [vmem:[%s716 + $0x8] sm:$0xf]
      %v720 = vld [vmem:[%s716 + $0xc] sm:$0xf]
      %v721 = vld [vmem:[%s716 + $0x10] sm:$0xf]
      %v722 = vld [vmem:[%s716 + $0x14] sm:$0xf]
      %v723 = vld [vmem:[%s716 + $0x18] sm:$0xf]
      %v724 = vld [vmem:[%s716 + $0x1c] sm:$0xf]
      %v725 = vld [vmem:[%s716 + $0x20] sm:$0xf]
      %v726 = vld [vmem:[%s716 + $0x24] sm:$0xf]
      %v727 = vld [vmem:[%s716 + $0x28] sm:$0xf]
      %v728 = vld [vmem:[%s716 + $0x2c] sm:$0xf]
      %v729 = vld [vmem:[%s716 + $0x30] sm:$0xf]
      %v730 = vld [vmem:[%s716 + $0x34] sm:$0xf]
      %v731 = vld [vmem:[%s716 + $0x38] sm:$0xf]
      %v732 = vld [vmem:[%s716 + $0x3c] sm:$0xf]
      %v749 = vunpack.c.l.b16 %v717
      %v750 = vunpack.c.l.b16 %v718
      %v751 = vunpack.c.l.b16 %v719
      %v752 = vunpack.c.l.b16 %v720
      %v753 = vunpack.c.l.b16 %v721
      %v754 = vunpack.c.l.b16 %v722
      %v755 = vunpack.c.l.b16 %v723
      %v756 = vunpack.c.l.b16 %v724
      %v757 = vunpack.c.l.b16 %v725
      %v758 = vunpack.c.l.b16 %v726
      %v759 = vunpack.c.l.b16 %v727
      %v760 = vunpack.c.l.b16 %v728
      %v761 = vunpack.c.l.b16 %v729
      %v762 = vunpack.c.l.b16 %v730
      %v763 = vunpack.c.l.b16 %v731
      %v764 = vunpack.c.l.b16 %v732
      %v765 = vpack.c.b16 %v750, %v749
      %v766 = vpack.c.b16 %v752, %v751
      %v767 = vpack.c.b16 %v754, %v753
      %v768 = vpack.c.b16 %v756, %v755
      %v769 = vpack.c.b16 %v758, %v757
      %v770 = vpack.c.b16 %v760, %v759
      %v771 = vpack.c.b16 %v762, %v761
      %v772 = vpack.c.b16 %v764, %v763
      %781 = vmatpush.bf16.msra.mxu0 %v772
      %782 = vmatpush.bf16.msra.mxu0 %v771
      %783 = vmatpush.bf16.msra.mxu0 %v770
      %784 = vmatpush.bf16.msra.mxu0 %v769
      %785 = vmatpush.bf16.msra.mxu0 %v768
      %786 = vmatpush.bf16.msra.mxu0 %v767
      %787 = vmatpush.bf16.msra.mxu0 %v766
      %788 = vmatpush.bf16.msra.mxu0 %v765
      %789 = vmatmul.bf16.gmra.mxu0 %v700
      %v790 = vpop.f32.mrf.mxu0
      %v791 = vadd.f32 0.0, %v790
      %v792 = vpop.f32.mrf.mxu0
      %v793 = vadd.f32 0.0, %v792
      %794 = vmatmul.bf16.gmra.mxu0 %v701
      %v795 = vpop.f32.mrf.mxu0
      %v796 = vadd.f32 0.0, %v795
      %v797 = vpop.f32.mrf.mxu0
      %v798 = vadd.f32 0.0, %v797
      %799 = vmatmul.bf16.gmra.mxu0 %v702
      %v800 = vpop.f32.mrf.mxu0
      %v801 = vadd.f32 0.0, %v800
      %v802 = vpop.f32.mrf.mxu0
      %v803 = vadd.f32 0.0, %v802
      %804 = vmatmul.bf16.gmra.mxu0 %v703
      %v805 = vpop.f32.mrf.mxu0
      %v806 = vadd.f32 0.0, %v805
      %v807 = vpop.f32.mrf.mxu0
      %v808 = vadd.f32 0.0, %v807
      %809 = vmatmul.bf16.gmra.mxu0 %v704
      %v810 = vpop.f32.mrf.mxu0
      %v811 = vadd.f32 0.0, %v810
      %v812 = vpop.f32.mrf.mxu0
      %v813 = vadd.f32 0.0, %v812
      %814 = vmatmul.bf16.gmra.mxu0 %v705
      %v815 = vpop.f32.mrf.mxu0
      %v816 = vadd.f32 0.0, %v815
      %v817 = vpop.f32.mrf.mxu0
      %v818 = vadd.f32 0.0, %v817
      %819 = vmatmul.bf16.gmra.mxu0 %v706
      %v820 = vpop.f32.mrf.mxu0
      %v821 = vadd.f32 0.0, %v820
      %v822 = vpop.f32.mrf.mxu0
      %v823 = vadd.f32 0.0, %v822
      %824 = vmatmul.bf16.gmra.mxu0 %v707
      %v825 = vpop.f32.mrf.mxu0
      %v826 = vadd.f32 0.0, %v825
      %v827 = vpop.f32.mrf.mxu0
      %v828 = vadd.f32 0.0, %v827
      %829 = vmatmul.bf16.gmra.mxu0 %v708
      %v830 = vpop.f32.mrf.mxu0
      %v831 = vadd.f32 0.0, %v830
      %v832 = vpop.f32.mrf.mxu0
      %v833 = vadd.f32 0.0, %v832
      %834 = vmatmul.bf16.gmra.mxu0 %v709
      %v835 = vpop.f32.mrf.mxu0
      %v836 = vadd.f32 0.0, %v835
      %v837 = vpop.f32.mrf.mxu0
      %v838 = vadd.f32 0.0, %v837
      %839 = vmatmul.bf16.gmra.mxu0 %v710
      %v840 = vpop.f32.mrf.mxu0
      %v841 = vadd.f32 0.0, %v840
      %v842 = vpop.f32.mrf.mxu0
      %v843 = vadd.f32 0.0, %v842
      %844 = vmatmul.bf16.gmra.mxu0 %v711
      %v845 = vpop.f32.mrf.mxu0
      %v846 = vadd.f32 0.0, %v845
      %v847 = vpop.f32.mrf.mxu0
      %v848 = vadd.f32 0.0, %v847
      %849 = vmatmul.bf16.gmra.mxu0 %v712
      %v850 = vpop.f32.mrf.mxu0
      %v851 = vadd.f32 0.0, %v850
      %v852 = vpop.f32.mrf.mxu0
      %v853 = vadd.f32 0.0, %v852
      %854 = vmatmul.bf16.gmra.mxu0 %v713
      %v855 = vpop.f32.mrf.mxu0
      %v856 = vadd.f32 0.0, %v855
      %v857 = vpop.f32.mrf.mxu0
      %v858 = vadd.f32 0.0, %v857
      %859 = vmatmul.bf16.gmra.mxu0 %v714
      %v860 = vpop.f32.mrf.mxu0
      %v861 = vadd.f32 0.0, %v860
      %v862 = vpop.f32.mrf.mxu0
      %v863 = vadd.f32 0.0, %v862
      %864 = vmatmul.bf16.gmra.mxu0 %v715
      %v865 = vpop.f32.mrf.mxu0
      %v866 = vadd.f32 0.0, %v865
      %v867 = vpop.f32.mrf.mxu0
      %v868 = vadd.f32 0.0, %v867
      %869 = vdwg.mxu0
      %v870 = vadd.f32 %v589, %v791
      %v871 = vadd.f32 %v591, %v793
      %v872 = vadd.f32 %v594, %v796
      %v873 = vadd.f32 %v596, %v798
      %v874 = vadd.f32 %v599, %v801
      %v875 = vadd.f32 %v601, %v803
      %v876 = vadd.f32 %v604, %v806
      %v877 = vadd.f32 %v606, %v808
      %v878 = vadd.f32 %v609, %v811
      %v879 = vadd.f32 %v611, %v813
      %v880 = vadd.f32 %v614, %v816
      %v881 = vadd.f32 %v616, %v818
      %v882 = vadd.f32 %v619, %v821
      %v883 = vadd.f32 %v621, %v823
      %v884 = vadd.f32 %v624, %v826
      %v885 = vadd.f32 %v626, %v828
      %v886 = vadd.f32 %v629, %v831
      %v887 = vadd.f32 %v631, %v833
      %v888 = vadd.f32 %v634, %v836
      %v889 = vadd.f32 %v636, %v838
      %v890 = vadd.f32 %v639, %v841
      %v891 = vadd.f32 %v641, %v843
      %v892 = vadd.f32 %v644, %v846
      %v893 = vadd.f32 %v646, %v848
      %v894 = vadd.f32 %v649, %v851
      %v895 = vadd.f32 %v651, %v853
      %v896 = vadd.f32 %v654, %v856
      %v897 = vadd.f32 %v656, %v858
      %v898 = vadd.f32 %v659, %v861
      %v899 = vadd.f32 %v661, %v863
      %v900 = vadd.f32 %v664, %v866
      %v901 = vadd.f32 %v666, %v868
      %s902 = scalar_lea.vmem %s254, 24
      %v903 = vld [vmem:[%s902] sm:$0xff]
      %v904 = vld [vmem:[%s902 + $0x8] sm:$0xff]
      %v905 = vld [vmem:[%s902 + $0x18] sm:$0xff]
      %v906 = vld [vmem:[%s902 + $0x20] sm:$0xff]
      %v907 = vld [vmem:[%s902 + $0x30] sm:$0xff]
      %v908 = vld [vmem:[%s902 + $0x38] sm:$0xff]
      %v909 = vld [vmem:[%s902 + $0x48] sm:$0xff]
      %v910 = vld [vmem:[%s902 + $0x50] sm:$0xff]
      %v911 = vld [vmem:[%s902 + $0x60] sm:$0xff]
      %v912 = vld [vmem:[%s902 + $0x68] sm:$0xff]
      %v913 = vld [vmem:[%s902 + $0x78] sm:$0xff]
      %v914 = vld [vmem:[%s902 + $0x80] sm:$0xff]
      %v915 = vld [vmem:[%s902 + $0x90] sm:$0xff]
      %v916 = vld [vmem:[%s902 + $0x98] sm:$0xff]
      %v917 = vld [vmem:[%s902 + $0xa8] sm:$0xff]
      %v918 = vld [vmem:[%s902 + $0xb0] sm:$0xff]
      %v919 = vld [vmem:[%s902 + $0xc0] sm:$0xff]
      %v920 = vld [vmem:[%s902 + $0xc8] sm:$0xff]
      %v921 = vld [vmem:[%s902 + $0xd8] sm:$0xff]
      %v922 = vld [vmem:[%s902 + $0xe0] sm:$0xff]
      %v923 = vld [vmem:[%s902 + $0xf0] sm:$0xff]
      %v924 = vld [vmem:[%s902 + $0xf8] sm:$0xff]
      %v925 = vld [vmem:[%s902 + $0x108] sm:$0xff]
      %v926 = vld [vmem:[%s902 + $0x110] sm:$0xff]
      %v927 = vld [vmem:[%s902 + $0x120] sm:$0xff]
      %v928 = vld [vmem:[%s902 + $0x128] sm:$0xff]
      %v929 = vld [vmem:[%s902 + $0x138] sm:$0xff]
      %v930 = vld [vmem:[%s902 + $0x140] sm:$0xff]
      %v931 = vld [vmem:[%s902 + $0x150] sm:$0xff]
      %v932 = vld [vmem:[%s902 + $0x158] sm:$0xff]
      %v933 = vld [vmem:[%s902 + $0x168] sm:$0xff]
      %v934 = vld [vmem:[%s902 + $0x170] sm:$0xff]
      %v935 = vpack.c.bf16 %v904, %v903
      %v936 = vpack.c.bf16 %v906, %v905
      %v937 = vpack.c.bf16 %v908, %v907
      %v938 = vpack.c.bf16 %v910, %v909
      %v939 = vpack.c.bf16 %v912, %v911
      %v940 = vpack.c.bf16 %v914, %v913
      %v941 = vpack.c.bf16 %v916, %v915
      %v942 = vpack.c.bf16 %v918, %v917
      %v943 = vpack.c.bf16 %v920, %v919
      %v944 = vpack.c.bf16 %v922, %v921
      %v945 = vpack.c.bf16 %v924, %v923
      %v946 = vpack.c.bf16 %v926, %v925
      %v947 = vpack.c.bf16 %v928, %v927
      %v948 = vpack.c.bf16 %v930, %v929
      %v949 = vpack.c.bf16 %v932, %v931
      %v950 = vpack.c.bf16 %v934, %v933
      %s951 = scalar_lea.vmem %s1, 192
      %v952 = vld [vmem:[%s951] sm:$0xf]
      %v953 = vld [vmem:[%s951 + $0x4] sm:$0xf]
      %v954 = vld [vmem:[%s951 + $0x8] sm:$0xf]
      %v955 = vld [vmem:[%s951 + $0xc] sm:$0xf]
      %v956 = vld [vmem:[%s951 + $0x10] sm:$0xf]
      %v957 = vld [vmem:[%s951 + $0x14] sm:$0xf]
      %v958 = vld [vmem:[%s951 + $0x18] sm:$0xf]
      %v959 = vld [vmem:[%s951 + $0x1c] sm:$0xf]
      %v960 = vld [vmem:[%s951 + $0x20] sm:$0xf]
      %v961 = vld [vmem:[%s951 + $0x24] sm:$0xf]
      %v962 = vld [vmem:[%s951 + $0x28] sm:$0xf]
      %v963 = vld [vmem:[%s951 + $0x2c] sm:$0xf]
      %v964 = vld [vmem:[%s951 + $0x30] sm:$0xf]
      %v965 = vld [vmem:[%s951 + $0x34] sm:$0xf]
      %v966 = vld [vmem:[%s951 + $0x38] sm:$0xf]
      %v967 = vld [vmem:[%s951 + $0x3c] sm:$0xf]
      %v984 = vunpack.c.l.b16 %v952
      %v985 = vunpack.c.l.b16 %v953
      %v986 = vunpack.c.l.b16 %v954
      %v987 = vunpack.c.l.b16 %v955
      %v988 = vunpack.c.l.b16 %v956
      %v989 = vunpack.c.l.b16 %v957
      %v990 = vunpack.c.l.b16 %v958
      %v991 = vunpack.c.l.b16 %v959
      %v992 = vunpack.c.l.b16 %v960
      %v993 = vunpack.c.l.b16 %v961
      %v994 = vunpack.c.l.b16 %v962
      %v995 = vunpack.c.l.b16 %v963
      %v996 = vunpack.c.l.b16 %v964
      %v997 = vunpack.c.l.b16 %v965
      %v998 = vunpack.c.l.b16 %v966
      %v999 = vunpack.c.l.b16 %v967
      %v1000 = vpack.c.b16 %v985, %v984
      %v1001 = vpack.c.b16 %v987, %v986
      %v1002 = vpack.c.b16 %v989, %v988
      %v1003 = vpack.c.b16 %v991, %v990
      %v1004 = vpack.c.b16 %v993, %v992
      %v1005 = vpack.c.b16 %v995, %v994
      %v1006 = vpack.c.b16 %v997, %v996
      %v1007 = vpack.c.b16 %v999, %v998
      %1016 = vmatpush.bf16.msra.mxu0 %v1007
      %1017 = vmatpush.bf16.msra.mxu0 %v1006
      %1018 = vmatpush.bf16.msra.mxu0 %v1005
      %1019 = vmatpush.bf16.msra.mxu0 %v1004
      %1020 = vmatpush.bf16.msra.mxu0 %v1003
      %1021 = vmatpush.bf16.msra.mxu0 %v1002
      %1022 = vmatpush.bf16.msra.mxu0 %v1001
      %1023 = vmatpush.bf16.msra.mxu0 %v1000
      %1024 = vmatmul.bf16.gmra.mxu0 %v935
      %v1025 = vpop.f32.mrf.mxu0
      %v1026 = vadd.f32 0.0, %v1025
      %v1027 = vpop.f32.mrf.mxu0
      %v1028 = vadd.f32 0.0, %v1027
      %1029 = vmatmul.bf16.gmra.mxu0 %v936
      %v1030 = vpop.f32.mrf.mxu0
      %v1031 = vadd.f32 0.0, %v1030
      %v1032 = vpop.f32.mrf.mxu0
      %v1033 = vadd.f32 0.0, %v1032
      %1034 = vmatmul.bf16.gmra.mxu0 %v937
      %v1035 = vpop.f32.mrf.mxu0
      %v1036 = vadd.f32 0.0, %v1035
      %v1037 = vpop.f32.mrf.mxu0
      %v1038 = vadd.f32 0.0, %v1037
      %1039 = vmatmul.bf16.gmra.mxu0 %v938
      %v1040 = vpop.f32.mrf.mxu0
      %v1041 = vadd.f32 0.0, %v1040
      %v1042 = vpop.f32.mrf.mxu0
      %v1043 = vadd.f32 0.0, %v1042
      %1044 = vmatmul.bf16.gmra.mxu0 %v939
      %v1045 = vpop.f32.mrf.mxu0
      %v1046 = vadd.f32 0.0, %v1045
      %v1047 = vpop.f32.mrf.mxu0
      %v1048 = vadd.f32 0.0, %v1047
      %1049 = vmatmul.bf16.gmra.mxu0 %v940
      %v1050 = vpop.f32.mrf.mxu0
      %v1051 = vadd.f32 0.0, %v1050
      %v1052 = vpop.f32.mrf.mxu0
      %v1053 = vadd.f32 0.0, %v1052
      %1054 = vmatmul.bf16.gmra.mxu0 %v941
      %v1055 = vpop.f32.mrf.mxu0
      %v1056 = vadd.f32 0.0, %v1055
      %v1057 = vpop.f32.mrf.mxu0
      %v1058 = vadd.f32 0.0, %v1057
      %1059 = vmatmul.bf16.gmra.mxu0 %v942
      %v1060 = vpop.f32.mrf.mxu0
      %v1061 = vadd.f32 0.0, %v1060
      %v1062 = vpop.f32.mrf.mxu0
      %v1063 = vadd.f32 0.0, %v1062
      %1064 = vmatmul.bf16.gmra.mxu0 %v943
      %v1065 = vpop.f32.mrf.mxu0
      %v1066 = vadd.f32 0.0, %v1065
      %v1067 = vpop.f32.mrf.mxu0
      %v1068 = vadd.f32 0.0, %v1067
      %1069 = vmatmul.bf16.gmra.mxu0 %v944
      %v1070 = vpop.f32.mrf.mxu0
      %v1071 = vadd.f32 0.0, %v1070
      %v1072 = vpop.f32.mrf.mxu0
      %v1073 = vadd.f32 0.0, %v1072
      %1074 = vmatmul.bf16.gmra.mxu0 %v945
      %v1075 = vpop.f32.mrf.mxu0
      %v1076 = vadd.f32 0.0, %v1075
      %v1077 = vpop.f32.mrf.mxu0
      %v1078 = vadd.f32 0.0, %v1077
      %1079 = vmatmul.bf16.gmra.mxu0 %v946
      %v1080 = vpop.f32.mrf.mxu0
      %v1081 = vadd.f32 0.0, %v1080
      %v1082 = vpop.f32.mrf.mxu0
      %v1083 = vadd.f32 0.0, %v1082
      %1084 = vmatmul.bf16.gmra.mxu0 %v947
      %v1085 = vpop.f32.mrf.mxu0
      %v1086 = vadd.f32 0.0, %v1085
      %v1087 = vpop.f32.mrf.mxu0
      %v1088 = vadd.f32 0.0, %v1087
      %1089 = vmatmul.bf16.gmra.mxu0 %v948
      %v1090 = vpop.f32.mrf.mxu0
      %v1091 = vadd.f32 0.0, %v1090
      %v1092 = vpop.f32.mrf.mxu0
      %v1093 = vadd.f32 0.0, %v1092
      %1094 = vmatmul.bf16.gmra.mxu0 %v949
      %v1095 = vpop.f32.mrf.mxu0
      %v1096 = vadd.f32 0.0, %v1095
      %v1097 = vpop.f32.mrf.mxu0
      %v1098 = vadd.f32 0.0, %v1097
      %1099 = vmatmul.bf16.gmra.mxu0 %v950
      %v1100 = vpop.f32.mrf.mxu0
      %v1101 = vadd.f32 0.0, %v1100
      %v1102 = vpop.f32.mrf.mxu0
      %v1103 = vadd.f32 0.0, %v1102
      %1104 = vdwg.mxu0
      %v1105 = vadd.f32 %v870, %v1026
      %v1106 = vadd.f32 %v871, %v1028
      %v1107 = vadd.f32 %v872, %v1031
      %v1108 = vadd.f32 %v873, %v1033
      %v1109 = vadd.f32 %v874, %v1036
      %v1110 = vadd.f32 %v875, %v1038
      %v1111 = vadd.f32 %v876, %v1041
      %v1112 = vadd.f32 %v877, %v1043
      %v1113 = vadd.f32 %v878, %v1046
      %v1114 = vadd.f32 %v879, %v1048
      %v1115 = vadd.f32 %v880, %v1051
      %v1116 = vadd.f32 %v881, %v1053
      %v1117 = vadd.f32 %v882, %v1056
      %v1118 = vadd.f32 %v883, %v1058
      %v1119 = vadd.f32 %v884, %v1061
      %v1120 = vadd.f32 %v885, %v1063
      %v1121 = vadd.f32 %v886, %v1066
      %v1122 = vadd.f32 %v887, %v1068
      %v1123 = vadd.f32 %v888, %v1071
      %v1124 = vadd.f32 %v889, %v1073
      %v1125 = vadd.f32 %v890, %v1076
      %v1126 = vadd.f32 %v891, %v1078
      %v1127 = vadd.f32 %v892, %v1081
      %v1128 = vadd.f32 %v893, %v1083
      %v1129 = vadd.f32 %v894, %v1086
      %v1130 = vadd.f32 %v895, %v1088
      %v1131 = vadd.f32 %v896, %v1091
      %v1132 = vadd.f32 %v897, %v1093
      %v1133 = vadd.f32 %v898, %v1096
      %v1134 = vadd.f32 %v899, %v1098
      %v1135 = vadd.f32 %v900, %v1101
      %v1136 = vadd.f32 %v901, %v1103
      %v1137 = vld [vmem:[%s902 + $0x1] sm:$0xff]
      %v1138 = vld [vmem:[%s902 + $0x9] sm:$0xff]
      %v1139 = vld [vmem:[%s902 + $0x19] sm:$0xff]
      %v1140 = vld [vmem:[%s902 + $0x21] sm:$0xff]
      %v1141 = vld [vmem:[%s902 + $0x31] sm:$0xff]
      %v1142 = vld [vmem:[%s902 + $0x39] sm:$0xff]
      %v1143 = vld [vmem:[%s902 + $0x49] sm:$0xff]
      %v1144 = vld [vmem:[%s902 + $0x51] sm:$0xff]
      %v1145 = vld [vmem:[%s902 + $0x61] sm:$0xff]
      %v1146 = vld [vmem:[%s902 + $0x69] sm:$0xff]
      %v1147 = vld [vmem:[%s902 + $0x79] sm:$0xff]
      %v1148 = vld [vmem:[%s902 + $0x81] sm:$0xff]
      %v1149 = vld [vmem:[%s902 + $0x91] sm:$0xff]
      %v1150 = vld [vmem:[%s902 + $0x99] sm:$0xff]
      %v1151 = vld [vmem:[%s902 + $0xa9] sm:$0xff]
      %v1152 = vld [vmem:[%s902 + $0xb1] sm:$0xff]
      %v1153 = vld [vmem:[%s902 + $0xc1] sm:$0xff]
      %v1154 = vld [vmem:[%s902 + $0xc9] sm:$0xff]
      %v1155 = vld [vmem:[%s902 + $0xd9] sm:$0xff]
      %v1156 = vld [vmem:[%s902 + $0xe1] sm:$0xff]
      %v1157 = vld [vmem:[%s902 + $0xf1] sm:$0xff]
      %v1158 = vld [vmem:[%s902 + $0xf9] sm:$0xff]
      %v1159 = vld [vmem:[%s902 + $0x109] sm:$0xff]
      %v1160 = vld [vmem:[%s902 + $0x111] sm:$0xff]
      %v1161 = vld [vmem:[%s902 + $0x121] sm:$0xff]
      %v1162 = vld [vmem:[%s902 + $0x129] sm:$0xff]
      %v1163 = vld [vmem:[%s902 + $0x139] sm:$0xff]
      %v1164 = vld [vmem:[%s902 + $0x141] sm:$0xff]
      %v1165 = vld [vmem:[%s902 + $0x151] sm:$0xff]
      %v1166 = vld [vmem:[%s902 + $0x159] sm:$0xff]
      %v1167 = vld [vmem:[%s902 + $0x169] sm:$0xff]
      %v1168 = vld [vmem:[%s902 + $0x171] sm:$0xff]
      %v1169 = vpack.c.bf16 %v1138, %v1137
      %v1170 = vpack.c.bf16 %v1140, %v1139
      %v1171 = vpack.c.bf16 %v1142, %v1141
      %v1172 = vpack.c.bf16 %v1144, %v1143
      %v1173 = vpack.c.bf16 %v1146, %v1145
      %v1174 = vpack.c.bf16 %v1148, %v1147
      %v1175 = vpack.c.bf16 %v1150, %v1149
      %v1176 = vpack.c.bf16 %v1152, %v1151
      %v1177 = vpack.c.bf16 %v1154, %v1153
      %v1178 = vpack.c.bf16 %v1156, %v1155
      %v1179 = vpack.c.bf16 %v1158, %v1157
      %v1180 = vpack.c.bf16 %v1160, %v1159
      %v1181 = vpack.c.bf16 %v1162, %v1161
      %v1182 = vpack.c.bf16 %v1164, %v1163
      %v1183 = vpack.c.bf16 %v1166, %v1165
      %v1184 = vpack.c.bf16 %v1168, %v1167
      %s1185 = scalar_lea.vmem %s1, 256
      %v1186 = vld [vmem:[%s1185] sm:$0xf]
      %v1187 = vld [vmem:[%s1185 + $0x4] sm:$0xf]
      %v1188 = vld [vmem:[%s1185 + $0x8] sm:$0xf]
      %v1189 = vld [vmem:[%s1185 + $0xc] sm:$0xf]
      %v1190 = vld [vmem:[%s1185 + $0x10] sm:$0xf]
      %v1191 = vld [vmem:[%s1185 + $0x14] sm:$0xf]
      %v1192 = vld [vmem:[%s1185 + $0x18] sm:$0xf]
      %v1193 = vld [vmem:[%s1185 + $0x1c] sm:$0xf]
      %v1194 = vld [vmem:[%s1185 + $0x20] sm:$0xf]
      %v1195 = vld [vmem:[%s1185 + $0x24] sm:$0xf]
      %v1196 = vld [vmem:[%s1185 + $0x28] sm:$0xf]
      %v1197 = vld [vmem:[%s1185 + $0x2c] sm:$0xf]
      %v1198 = vld [vmem:[%s1185 + $0x30] sm:$0xf]
      %v1199 = vld [vmem:[%s1185 + $0x34] sm:$0xf]
      %v1200 = vld [vmem:[%s1185 + $0x38] sm:$0xf]
      %v1201 = vld [vmem:[%s1185 + $0x3c] sm:$0xf]
      %v1218 = vunpack.c.l.b16 %v1186
      %v1219 = vunpack.c.l.b16 %v1187
      %v1220 = vunpack.c.l.b16 %v1188
      %v1221 = vunpack.c.l.b16 %v1189
      %v1222 = vunpack.c.l.b16 %v1190
      %v1223 = vunpack.c.l.b16 %v1191
      %v1224 = vunpack.c.l.b16 %v1192
      %v1225 = vunpack.c.l.b16 %v1193
      %v1226 = vunpack.c.l.b16 %v1194
      %v1227 = vunpack.c.l.b16 %v1195
      %v1228 = vunpack.c.l.b16 %v1196
      %v1229 = vunpack.c.l.b16 %v1197
      %v1230 = vunpack.c.l.b16 %v1198
      %v1231 = vunpack.c.l.b16 %v1199
      %v1232 = vunpack.c.l.b16 %v1200
      %v1233 = vunpack.c.l.b16 %v1201
      %v1234 = vpack.c.b16 %v1219, %v1218
      %v1235 = vpack.c.b16 %v1221, %v1220
      %v1236 = vpack.c.b16 %v1223, %v1222
      %v1237 = vpack.c.b16 %v1225, %v1224
      %v1238 = vpack.c.b16 %v1227, %v1226
      %v1239 = vpack.c.b16 %v1229, %v1228
      %v1240 = vpack.c.b16 %v1231, %v1230
      %v1241 = vpack.c.b16 %v1233, %v1232
      %1250 = vmatpush.bf16.msra.mxu0 %v1241
      %1251 = vmatpush.bf16.msra.mxu0 %v1240
      %1252 = vmatpush.bf16.msra.mxu0 %v1239
      %1253 = vmatpush.bf16.msra.mxu0 %v1238
      %1254 = vmatpush.bf16.msra.mxu0 %v1237
      %1255 = vmatpush.bf16.msra.mxu0 %v1236
      %1256 = vmatpush.bf16.msra.mxu0 %v1235
      %1257 = vmatpush.bf16.msra.mxu0 %v1234
      %1258 = vmatmul.bf16.gmra.mxu0 %v1169
      %v1259 = vpop.f32.mrf.mxu0
      %v1260 = vadd.f32 0.0, %v1259
      %v1261 = vpop.f32.mrf.mxu0
      %v1262 = vadd.f32 0.0, %v1261
      %1263 = vmatmul.bf16.gmra.mxu0 %v1170
      %v1264 = vpop.f32.mrf.mxu0
      %v1265 = vadd.f32 0.0, %v1264
      %v1266 = vpop.f32.mrf.mxu0
      %v1267 = vadd.f32 0.0, %v1266
      %1268 = vmatmul.bf16.gmra.mxu0 %v1171
      %v1269 = vpop.f32.mrf.mxu0
      %v1270 = vadd.f32 0.0, %v1269
      %v1271 = vpop.f32.mrf.mxu0
      %v1272 = vadd.f32 0.0, %v1271
      %1273 = vmatmul.bf16.gmra.mxu0 %v1172
      %v1274 = vpop.f32.mrf.mxu0
      %v1275 = vadd.f32 0.0, %v1274
      %v1276 = vpop.f32.mrf.mxu0
      %v1277 = vadd.f32 0.0, %v1276
      %1278 = vmatmul.bf16.gmra.mxu0 %v1173
      %v1279 = vpop.f32.mrf.mxu0
      %v1280 = vadd.f32 0.0, %v1279
      %v1281 = vpop.f32.mrf.mxu0
      %v1282 = vadd.f32 0.0, %v1281
      %1283 = vmatmul.bf16.gmra.mxu0 %v1174
      %v1284 = vpop.f32.mrf.mxu0
      %v1285 = vadd.f32 0.0, %v1284
      %v1286 = vpop.f32.mrf.mxu0
      %v1287 = vadd.f32 0.0, %v1286
      %1288 = vmatmul.bf16.gmra.mxu0 %v1175
      %v1289 = vpop.f32.mrf.mxu0
      %v1290 = vadd.f32 0.0, %v1289
      %v1291 = vpop.f32.mrf.mxu0
      %v1292 = vadd.f32 0.0, %v1291
      %1293 = vmatmul.bf16.gmra.mxu0 %v1176
      %v1294 = vpop.f32.mrf.mxu0
      %v1295 = vadd.f32 0.0, %v1294
      %v1296 = vpop.f32.mrf.mxu0
      %v1297 = vadd.f32 0.0, %v1296
      %1298 = vmatmul.bf16.gmra.mxu0 %v1177
      %v1299 = vpop.f32.mrf.mxu0
      %v1300 = vadd.f32 0.0, %v1299
      %v1301 = vpop.f32.mrf.mxu0
      %v1302 = vadd.f32 0.0, %v1301
      %1303 = vmatmul.bf16.gmra.mxu0 %v1178
      %v1304 = vpop.f32.mrf.mxu0
      %v1305 = vadd.f32 0.0, %v1304
      %v1306 = vpop.f32.mrf.mxu0
      %v1307 = vadd.f32 0.0, %v1306
      %1308 = vmatmul.bf16.gmra.mxu0 %v1179
      %v1309 = vpop.f32.mrf.mxu0
      %v1310 = vadd.f32 0.0, %v1309
      %v1311 = vpop.f32.mrf.mxu0
      %v1312 = vadd.f32 0.0, %v1311
      %1313 = vmatmul.bf16.gmra.mxu0 %v1180
      %v1314 = vpop.f32.mrf.mxu0
      %v1315 = vadd.f32 0.0, %v1314
      %v1316 = vpop.f32.mrf.mxu0
      %v1317 = vadd.f32 0.0, %v1316
      %1318 = vmatmul.bf16.gmra.mxu0 %v1181
      %v1319 = vpop.f32.mrf.mxu0
      %v1320 = vadd.f32 0.0, %v1319
      %v1321 = vpop.f32.mrf.mxu0
      %v1322 = vadd.f32 0.0, %v1321
      %1323 = vmatmul.bf16.gmra.mxu0 %v1182
      %v1324 = vpop.f32.mrf.mxu0
      %v1325 = vadd.f32 0.0, %v1324
      %v1326 = vpop.f32.mrf.mxu0
      %v1327 = vadd.f32 0.0, %v1326
      %1328 = vmatmul.bf16.gmra.mxu0 %v1183
      %v1329 = vpop.f32.mrf.mxu0
      %v1330 = vadd.f32 0.0, %v1329
      %v1331 = vpop.f32.mrf.mxu0
      %v1332 = vadd.f32 0.0, %v1331
      %1333 = vmatmul.bf16.gmra.mxu0 %v1184
      %v1334 = vpop.f32.mrf.mxu0
      %v1335 = vadd.f32 0.0, %v1334
      %v1336 = vpop.f32.mrf.mxu0
      %v1337 = vadd.f32 0.0, %v1336
      %1338 = vdwg.mxu0
      %v1339 = vadd.f32 %v1105, %v1260
      %v1340 = vadd.f32 %v1106, %v1262
      %v1341 = vadd.f32 %v1107, %v1265
      %v1342 = vadd.f32 %v1108, %v1267
      %v1343 = vadd.f32 %v1109, %v1270
      %v1344 = vadd.f32 %v1110, %v1272
      %v1345 = vadd.f32 %v1111, %v1275
      %v1346 = vadd.f32 %v1112, %v1277
      %v1347 = vadd.f32 %v1113, %v1280
      %v1348 = vadd.f32 %v1114, %v1282
      %v1349 = vadd.f32 %v1115, %v1285
      %v1350 = vadd.f32 %v1116, %v1287
      %v1351 = vadd.f32 %v1117, %v1290
      %v1352 = vadd.f32 %v1118, %v1292
      %v1353 = vadd.f32 %v1119, %v1295
      %v1354 = vadd.f32 %v1120, %v1297
      %v1355 = vadd.f32 %v1121, %v1300
      %v1356 = vadd.f32 %v1122, %v1302
      %v1357 = vadd.f32 %v1123, %v1305
      %v1358 = vadd.f32 %v1124, %v1307
      %v1359 = vadd.f32 %v1125, %v1310
      %v1360 = vadd.f32 %v1126, %v1312
      %v1361 = vadd.f32 %v1127, %v1315
      %v1362 = vadd.f32 %v1128, %v1317
      %v1363 = vadd.f32 %v1129, %v1320
      %v1364 = vadd.f32 %v1130, %v1322
      %v1365 = vadd.f32 %v1131, %v1325
      %v1366 = vadd.f32 %v1132, %v1327
      %v1367 = vadd.f32 %v1133, %v1330
      %v1368 = vadd.f32 %v1134, %v1332
      %v1369 = vadd.f32 %v1135, %v1335
      %v1370 = vadd.f32 %v1136, %v1337
      %v1371 = vld [vmem:[%s902 + $0x2] sm:$0xff]
      %v1372 = vld [vmem:[%s902 + $0xa] sm:$0xff]
      %v1373 = vld [vmem:[%s902 + $0x1a] sm:$0xff]
      %v1374 = vld [vmem:[%s902 + $0x22] sm:$0xff]
      %v1375 = vld [vmem:[%s902 + $0x32] sm:$0xff]
      %v1376 = vld [vmem:[%s902 + $0x3a] sm:$0xff]
      %v1377 = vld [vmem:[%s902 + $0x4a] sm:$0xff]
      %v1378 = vld [vmem:[%s902 + $0x52] sm:$0xff]
      %v1379 = vld [vmem:[%s902 + $0x62] sm:$0xff]
      %v1380 = vld [vmem:[%s902 + $0x6a] sm:$0xff]
      %v1381 = vld [vmem:[%s902 + $0x7a] sm:$0xff]
      %v1382 = vld [vmem:[%s902 + $0x82] sm:$0xff]
      %v1383 = vld [vmem:[%s902 + $0x92] sm:$0xff]
      %v1384 = vld [vmem:[%s902 + $0x9a] sm:$0xff]
      %v1385 = vld [vmem:[%s902 + $0xaa] sm:$0xff]
      %v1386 = vld [vmem:[%s902 + $0xb2] sm:$0xff]
      %v1387 = vld [vmem:[%s902 + $0xc2] sm:$0xff]
      %v1388 = vld [vmem:[%s902 + $0xca] sm:$0xff]
      %v1389 = vld [vmem:[%s902 + $0xda] sm:$0xff]
      %v1390 = vld [vmem:[%s902 + $0xe2] sm:$0xff]
      %v1391 = vld [vmem:[%s902 + $0xf2] sm:$0xff]
      %v1392 = vld [vmem:[%s902 + $0xfa] sm:$0xff]
      %v1393 = vld [vmem:[%s902 + $0x10a] sm:$0xff]
      %v1394 = vld [vmem:[%s902 + $0x112] sm:$0xff]
      %v1395 = vld [vmem:[%s902 + $0x122] sm:$0xff]
      %v1396 = vld [vmem:[%s902 + $0x12a] sm:$0xff]
      %v1397 = vld [vmem:[%s902 + $0x13a] sm:$0xff]
      %v1398 = vld [vmem:[%s902 + $0x142] sm:$0xff]
      %v1399 = vld [vmem:[%s902 + $0x152] sm:$0xff]
      %v1400 = vld [vmem:[%s902 + $0x15a] sm:$0xff]
      %v1401 = vld [vmem:[%s902 + $0x16a] sm:$0xff]
      %v1402 = vld [vmem:[%s902 + $0x172] sm:$0xff]
      %v1403 = vpack.c.bf16 %v1372, %v1371
      %v1404 = vpack.c.bf16 %v1374, %v1373
      %v1405 = vpack.c.bf16 %v1376, %v1375
      %v1406 = vpack.c.bf16 %v1378, %v1377
      %v1407 = vpack.c.bf16 %v1380, %v1379
      %v1408 = vpack.c.bf16 %v1382, %v1381
      %v1409 = vpack.c.bf16 %v1384, %v1383
      %v1410 = vpack.c.bf16 %v1386, %v1385
      %v1411 = vpack.c.bf16 %v1388, %v1387
      %v1412 = vpack.c.bf16 %v1390, %v1389
      %v1413 = vpack.c.bf16 %v1392, %v1391
      %v1414 = vpack.c.bf16 %v1394, %v1393
      %v1415 = vpack.c.bf16 %v1396, %v1395
      %v1416 = vpack.c.bf16 %v1398, %v1397
      %v1417 = vpack.c.bf16 %v1400, %v1399
      %v1418 = vpack.c.bf16 %v1402, %v1401
      %s1419 = scalar_lea.vmem %s1, 320
      %v1420 = vld [vmem:[%s1419] sm:$0xf]
      %v1421 = vld [vmem:[%s1419 + $0x4] sm:$0xf]
      %v1422 = vld [vmem:[%s1419 + $0x8] sm:$0xf]
      %v1423 = vld [vmem:[%s1419 + $0xc] sm:$0xf]
      %v1424 = vld [vmem:[%s1419 + $0x10] sm:$0xf]
      %v1425 = vld [vmem:[%s1419 + $0x14] sm:$0xf]
      %v1426 = vld [vmem:[%s1419 + $0x18] sm:$0xf]
      %v1427 = vld [vmem:[%s1419 + $0x1c] sm:$0xf]
      %v1428 = vld [vmem:[%s1419 + $0x20] sm:$0xf]
      %v1429 = vld [vmem:[%s1419 + $0x24] sm:$0xf]
      %v1430 = vld [vmem:[%s1419 + $0x28] sm:$0xf]
      %v1431 = vld [vmem:[%s1419 + $0x2c] sm:$0xf]
      %v1432 = vld [vmem:[%s1419 + $0x30] sm:$0xf]
      %v1433 = vld [vmem:[%s1419 + $0x34] sm:$0xf]
      %v1434 = vld [vmem:[%s1419 + $0x38] sm:$0xf]
      %v1435 = vld [vmem:[%s1419 + $0x3c] sm:$0xf]
      %v1452 = vunpack.c.l.b16 %v1420
      %v1453 = vunpack.c.l.b16 %v1421
      %v1454 = vunpack.c.l.b16 %v1422
      %v1455 = vunpack.c.l.b16 %v1423
      %v1456 = vunpack.c.l.b16 %v1424
      %v1457 = vunpack.c.l.b16 %v1425
      %v1458 = vunpack.c.l.b16 %v1426
      %v1459 = vunpack.c.l.b16 %v1427
      %v1460 = vunpack.c.l.b16 %v1428
      %v1461 = vunpack.c.l.b16 %v1429
      %v1462 = vunpack.c.l.b16 %v1430
      %v1463 = vunpack.c.l.b16 %v1431
      %v1464 = vunpack.c.l.b16 %v1432
      %v1465 = vunpack.c.l.b16 %v1433
      %v1466 = vunpack.c.l.b16 %v1434
      %v1467 = vunpack.c.l.b16 %v1435
      %v1468 = vpack.c.b16 %v1453, %v1452
      %v1469 = vpack.c.b16 %v1455, %v1454
      %v1470 = vpack.c.b16 %v1457, %v1456
      %v1471 = vpack.c.b16 %v1459, %v1458
      %v1472 = vpack.c.b16 %v1461, %v1460
      %v1473 = vpack.c.b16 %v1463, %v1462
      %v1474 = vpack.c.b16 %v1465, %v1464
      %v1475 = vpack.c.b16 %v1467, %v1466
      %1484 = vmatpush.bf16.msra.mxu0 %v1475
      %1485 = vmatpush.bf16.msra.mxu0 %v1474
      %1486 = vmatpush.bf16.msra.mxu0 %v1473
      %1487 = vmatpush.bf16.msra.mxu0 %v1472
      %1488 = vmatpush.bf16.msra.mxu0 %v1471
      %1489 = vmatpush.bf16.msra.mxu0 %v1470
      %1490 = vmatpush.bf16.msra.mxu0 %v1469
      %1491 = vmatpush.bf16.msra.mxu0 %v1468
      %1492 = vmatmul.bf16.gmra.mxu0 %v1403
      %v1493 = vpop.f32.mrf.mxu0
      %v1494 = vadd.f32 0.0, %v1493
      %v1495 = vpop.f32.mrf.mxu0
      %v1496 = vadd.f32 0.0, %v1495
      %1497 = vmatmul.bf16.gmra.mxu0 %v1404
      %v1498 = vpop.f32.mrf.mxu0
      %v1499 = vadd.f32 0.0, %v1498
      %v1500 = vpop.f32.mrf.mxu0
      %v1501 = vadd.f32 0.0, %v1500
      %1502 = vmatmul.bf16.gmra.mxu0 %v1405
      %v1503 = vpop.f32.mrf.mxu0
      %v1504 = vadd.f32 0.0, %v1503
      %v1505 = vpop.f32.mrf.mxu0
      %v1506 = vadd.f32 0.0, %v1505
      %1507 = vmatmul.bf16.gmra.mxu0 %v1406
      %v1508 = vpop.f32.mrf.mxu0
      %v1509 = vadd.f32 0.0, %v1508
      %v1510 = vpop.f32.mrf.mxu0
      %v1511 = vadd.f32 0.0, %v1510
      %1512 = vmatmul.bf16.gmra.mxu0 %v1407
      %v1513 = vpop.f32.mrf.mxu0
      %v1514 = vadd.f32 0.0, %v1513
      %v1515 = vpop.f32.mrf.mxu0
      %v1516 = vadd.f32 0.0, %v1515
      %1517 = vmatmul.bf16.gmra.mxu0 %v1408
      %v1518 = vpop.f32.mrf.mxu0
      %v1519 = vadd.f32 0.0, %v1518
      %v1520 = vpop.f32.mrf.mxu0
      %v1521 = vadd.f32 0.0, %v1520
      %1522 = vmatmul.bf16.gmra.mxu0 %v1409
      %v1523 = vpop.f32.mrf.mxu0
      %v1524 = vadd.f32 0.0, %v1523
      %v1525 = vpop.f32.mrf.mxu0
      %v1526 = vadd.f32 0.0, %v1525
      %1527 = vmatmul.bf16.gmra.mxu0 %v1410
      %v1528 = vpop.f32.mrf.mxu0
      %v1529 = vadd.f32 0.0, %v1528
      %v1530 = vpop.f32.mrf.mxu0
      %v1531 = vadd.f32 0.0, %v1530
      %1532 = vmatmul.bf16.gmra.mxu0 %v1411
      %v1533 = vpop.f32.mrf.mxu0
      %v1534 = vadd.f32 0.0, %v1533
      %v1535 = vpop.f32.mrf.mxu0
      %v1536 = vadd.f32 0.0, %v1535
      %1537 = vmatmul.bf16.gmra.mxu0 %v1412
      %v1538 = vpop.f32.mrf.mxu0
      %v1539 = vadd.f32 0.0, %v1538
      %v1540 = vpop.f32.mrf.mxu0
      %v1541 = vadd.f32 0.0, %v1540
      %1542 = vmatmul.bf16.gmra.mxu0 %v1413
      %v1543 = vpop.f32.mrf.mxu0
      %v1544 = vadd.f32 0.0, %v1543
      %v1545 = vpop.f32.mrf.mxu0
      %v1546 = vadd.f32 0.0, %v1545
      %1547 = vmatmul.bf16.gmra.mxu0 %v1414
      %v1548 = vpop.f32.mrf.mxu0
      %v1549 = vadd.f32 0.0, %v1548
      %v1550 = vpop.f32.mrf.mxu0
      %v1551 = vadd.f32 0.0, %v1550
      %1552 = vmatmul.bf16.gmra.mxu0 %v1415
      %v1553 = vpop.f32.mrf.mxu0
      %v1554 = vadd.f32 0.0, %v1553
      %v1555 = vpop.f32.mrf.mxu0
      %v1556 = vadd.f32 0.0, %v1555
      %1557 = vmatmul.bf16.gmra.mxu0 %v1416
      %v1558 = vpop.f32.mrf.mxu0
      %v1559 = vadd.f32 0.0, %v1558
      %v1560 = vpop.f32.mrf.mxu0
      %v1561 = vadd.f32 0.0, %v1560
      %1562 = vmatmul.bf16.gmra.mxu0 %v1417
      %v1563 = vpop.f32.mrf.mxu0
      %v1564 = vadd.f32 0.0, %v1563
      %v1565 = vpop.f32.mrf.mxu0
      %v1566 = vadd.f32 0.0, %v1565
      %1567 = vmatmul.bf16.gmra.mxu0 %v1418
      %v1568 = vpop.f32.mrf.mxu0
      %v1569 = vadd.f32 0.0, %v1568
      %v1570 = vpop.f32.mrf.mxu0
      %v1571 = vadd.f32 0.0, %v1570
      %1572 = vdwg.mxu0
      %v1573 = vadd.f32 %v1339, %v1494
      %v1574 = vadd.f32 %v1340, %v1496
      %v1575 = vadd.f32 %v1341, %v1499
      %v1576 = vadd.f32 %v1342, %v1501
      %v1577 = vadd.f32 %v1343, %v1504
      %v1578 = vadd.f32 %v1344, %v1506
      %v1579 = vadd.f32 %v1345, %v1509
      %v1580 = vadd.f32 %v1346, %v1511
      %v1581 = vadd.f32 %v1347, %v1514
      %v1582 = vadd.f32 %v1348, %v1516
      %v1583 = vadd.f32 %v1349, %v1519
      %v1584 = vadd.f32 %v1350, %v1521
      %v1585 = vadd.f32 %v1351, %v1524
      %v1586 = vadd.f32 %v1352, %v1526
      %v1587 = vadd.f32 %v1353, %v1529
      %v1588 = vadd.f32 %v1354, %v1531
      %v1589 = vadd.f32 %v1355, %v1534
      %v1590 = vadd.f32 %v1356, %v1536
      %v1591 = vadd.f32 %v1357, %v1539
      %v1592 = vadd.f32 %v1358, %v1541
      %v1593 = vadd.f32 %v1359, %v1544
      %v1594 = vadd.f32 %v1360, %v1546
      %v1595 = vadd.f32 %v1361, %v1549
      %v1596 = vadd.f32 %v1362, %v1551
      %v1597 = vadd.f32 %v1363, %v1554
      %v1598 = vadd.f32 %v1364, %v1556
      %v1599 = vadd.f32 %v1365, %v1559
      %v1600 = vadd.f32 %v1366, %v1561
      %v1601 = vadd.f32 %v1367, %v1564
      %v1602 = vadd.f32 %v1368, %v1566
      %v1603 = vadd.f32 %v1369, %v1569
      %v1604 = vadd.f32 %v1370, %v1571
      %s1605 = scalar_lea.vmem %s254, 48
      %v1606 = vld [vmem:[%s1605] sm:$0xff]
      %v1607 = vld [vmem:[%s1605 + $0x8] sm:$0xff]
      %v1608 = vld [vmem:[%s1605 + $0x18] sm:$0xff]
      %v1609 = vld [vmem:[%s1605 + $0x20] sm:$0xff]
      %v1610 = vld [vmem:[%s1605 + $0x30] sm:$0xff]
      %v1611 = vld [vmem:[%s1605 + $0x38] sm:$0xff]
      %v1612 = vld [vmem:[%s1605 + $0x48] sm:$0xff]
      %v1613 = vld [vmem:[%s1605 + $0x50] sm:$0xff]
      %v1614 = vld [vmem:[%s1605 + $0x60] sm:$0xff]
      %v1615 = vld [vmem:[%s1605 + $0x68] sm:$0xff]
      %v1616 = vld [vmem:[%s1605 + $0x78] sm:$0xff]
      %v1617 = vld [vmem:[%s1605 + $0x80] sm:$0xff]
      %v1618 = vld [vmem:[%s1605 + $0x90] sm:$0xff]
      %v1619 = vld [vmem:[%s1605 + $0x98] sm:$0xff]
      %v1620 = vld [vmem:[%s1605 + $0xa8] sm:$0xff]
      %v1621 = vld [vmem:[%s1605 + $0xb0] sm:$0xff]
      %v1622 = vld [vmem:[%s1605 + $0xc0] sm:$0xff]
      %v1623 = vld [vmem:[%s1605 + $0xc8] sm:$0xff]
      %v1624 = vld [vmem:[%s1605 + $0xd8] sm:$0xff]
      %v1625 = vld [vmem:[%s1605 + $0xe0] sm:$0xff]
      %v1626 = vld [vmem:[%s1605 + $0xf0] sm:$0xff]
      %v1627 = vld [vmem:[%s1605 + $0xf8] sm:$0xff]
      %v1628 = vld [vmem:[%s1605 + $0x108] sm:$0xff]
      %v1629 = vld [vmem:[%s1605 + $0x110] sm:$0xff]
      %v1630 = vld [vmem:[%s1605 + $0x120] sm:$0xff]
      %v1631 = vld [vmem:[%s1605 + $0x128] sm:$0xff]
      %v1632 = vld [vmem:[%s1605 + $0x138] sm:$0xff]
      %v1633 = vld [vmem:[%s1605 + $0x140] sm:$0xff]
      %v1634 = vld [vmem:[%s1605 + $0x150] sm:$0xff]
      %v1635 = vld [vmem:[%s1605 + $0x158] sm:$0xff]
      %v1636 = vld [vmem:[%s1605 + $0x168] sm:$0xff]
      %v1637 = vld [vmem:[%s1605 + $0x170] sm:$0xff]
      %v1638 = vpack.c.bf16 %v1607, %v1606
      %v1639 = vpack.c.bf16 %v1609, %v1608
      %v1640 = vpack.c.bf16 %v1611, %v1610
      %v1641 = vpack.c.bf16 %v1613, %v1612
      %v1642 = vpack.c.bf16 %v1615, %v1614
      %v1643 = vpack.c.bf16 %v1617, %v1616
      %v1644 = vpack.c.bf16 %v1619, %v1618
      %v1645 = vpack.c.bf16 %v1621, %v1620
      %v1646 = vpack.c.bf16 %v1623, %v1622
      %v1647 = vpack.c.bf16 %v1625, %v1624
      %v1648 = vpack.c.bf16 %v1627, %v1626
      %v1649 = vpack.c.bf16 %v1629, %v1628
      %v1650 = vpack.c.bf16 %v1631, %v1630
      %v1651 = vpack.c.bf16 %v1633, %v1632
      %v1652 = vpack.c.bf16 %v1635, %v1634
      %v1653 = vpack.c.bf16 %v1637, %v1636
      %s1654 = scalar_lea.vmem %s1, 384
      %v1655 = vld [vmem:[%s1654] sm:$0xf]
      %v1656 = vld [vmem:[%s1654 + $0x4] sm:$0xf]
      %v1657 = vld [vmem:[%s1654 + $0x8] sm:$0xf]
      %v1658 = vld [vmem:[%s1654 + $0xc] sm:$0xf]
      %v1659 = vld [vmem:[%s1654 + $0x10] sm:$0xf]
      %v1660 = vld [vmem:[%s1654 + $0x14] sm:$0xf]
      %v1661 = vld [vmem:[%s1654 + $0x18] sm:$0xf]
      %v1662 = vld [vmem:[%s1654 + $0x1c] sm:$0xf]
      %v1663 = vld [vmem:[%s1654 + $0x20] sm:$0xf]
      %v1664 = vld [vmem:[%s1654 + $0x24] sm:$0xf]
      %v1665 = vld [vmem:[%s1654 + $0x28] sm:$0xf]
      %v1666 = vld [vmem:[%s1654 + $0x2c] sm:$0xf]
      %v1667 = vld [vmem:[%s1654 + $0x30] sm:$0xf]
      %v1668 = vld [vmem:[%s1654 + $0x34] sm:$0xf]
      %v1669 = vld [vmem:[%s1654 + $0x38] sm:$0xf]
      %v1670 = vld [vmem:[%s1654 + $0x3c] sm:$0xf]
      %v1687 = vunpack.c.l.b16 %v1655
      %v1688 = vunpack.c.l.b16 %v1656
      %v1689 = vunpack.c.l.b16 %v1657
      %v1690 = vunpack.c.l.b16 %v1658
      %v1691 = vunpack.c.l.b16 %v1659
      %v1692 = vunpack.c.l.b16 %v1660
      %v1693 = vunpack.c.l.b16 %v1661
      %v1694 = vunpack.c.l.b16 %v1662
      %v1695 = vunpack.c.l.b16 %v1663
      %v1696 = vunpack.c.l.b16 %v1664
      %v1697 = vunpack.c.l.b16 %v1665
      %v1698 = vunpack.c.l.b16 %v1666
      %v1699 = vunpack.c.l.b16 %v1667
      %v1700 = vunpack.c.l.b16 %v1668
      %v1701 = vunpack.c.l.b16 %v1669
      %v1702 = vunpack.c.l.b16 %v1670
      %v1703 = vpack.c.b16 %v1688, %v1687
      %v1704 = vpack.c.b16 %v1690, %v1689
      %v1705 = vpack.c.b16 %v1692, %v1691
      %v1706 = vpack.c.b16 %v1694, %v1693
      %v1707 = vpack.c.b16 %v1696, %v1695
      %v1708 = vpack.c.b16 %v1698, %v1697
      %v1709 = vpack.c.b16 %v1700, %v1699
      %v1710 = vpack.c.b16 %v1702, %v1701
      %1719 = vmatpush.bf16.msra.mxu0 %v1710
      %1720 = vmatpush.bf16.msra.mxu0 %v1709
      %1721 = vmatpush.bf16.msra.mxu0 %v1708
      %1722 = vmatpush.bf16.msra.mxu0 %v1707
      %1723 = vmatpush.bf16.msra.mxu0 %v1706
      %1724 = vmatpush.bf16.msra.mxu0 %v1705
      %1725 = vmatpush.bf16.msra.mxu0 %v1704
      %1726 = vmatpush.bf16.msra.mxu0 %v1703
      %1727 = vmatmul.bf16.gmra.mxu0 %v1638
      %v1728 = vpop.f32.mrf.mxu0
      %v1729 = vadd.f32 0.0, %v1728
      %v1730 = vpop.f32.mrf.mxu0
      %v1731 = vadd.f32 0.0, %v1730
      %1732 = vmatmul.bf16.gmra.mxu0 %v1639
      %v1733 = vpop.f32.mrf.mxu0
      %v1734 = vadd.f32 0.0, %v1733
      %v1735 = vpop.f32.mrf.mxu0
      %v1736 = vadd.f32 0.0, %v1735
      %1737 = vmatmul.bf16.gmra.mxu0 %v1640
      %v1738 = vpop.f32.mrf.mxu0
      %v1739 = vadd.f32 0.0, %v1738
      %v1740 = vpop.f32.mrf.mxu0
      %v1741 = vadd.f32 0.0, %v1740
      %1742 = vmatmul.bf16.gmra.mxu0 %v1641
      %v1743 = vpop.f32.mrf.mxu0
      %v1744 = vadd.f32 0.0, %v1743
      %v1745 = vpop.f32.mrf.mxu0
      %v1746 = vadd.f32 0.0, %v1745
      %1747 = vmatmul.bf16.gmra.mxu0 %v1642
      %v1748 = vpop.f32.mrf.mxu0
      %v1749 = vadd.f32 0.0, %v1748
      %v1750 = vpop.f32.mrf.mxu0
      %v1751 = vadd.f32 0.0, %v1750
      %1752 = vmatmul.bf16.gmra.mxu0 %v1643
      %v1753 = vpop.f32.mrf.mxu0
      %v1754 = vadd.f32 0.0, %v1753
      %v1755 = vpop.f32.mrf.mxu0
      %v1756 = vadd.f32 0.0, %v1755
      %1757 = vmatmul.bf16.gmra.mxu0 %v1644
      %v1758 = vpop.f32.mrf.mxu0
      %v1759 = vadd.f32 0.0, %v1758
      %v1760 = vpop.f32.mrf.mxu0
      %v1761 = vadd.f32 0.0, %v1760
      %1762 = vmatmul.bf16.gmra.mxu0 %v1645
      %v1763 = vpop.f32.mrf.mxu0
      %v1764 = vadd.f32 0.0, %v1763
      %v1765 = vpop.f32.mrf.mxu0
      %v1766 = vadd.f32 0.0, %v1765
      %1767 = vmatmul.bf16.gmra.mxu0 %v1646
      %v1768 = vpop.f32.mrf.mxu0
      %v1769 = vadd.f32 0.0, %v1768
      %v1770 = vpop.f32.mrf.mxu0
      %v1771 = vadd.f32 0.0, %v1770
      %1772 = vmatmul.bf16.gmra.mxu0 %v1647
      %v1773 = vpop.f32.mrf.mxu0
      %v1774 = vadd.f32 0.0, %v1773
      %v1775 = vpop.f32.mrf.mxu0
      %v1776 = vadd.f32 0.0, %v1775
      %1777 = vmatmul.bf16.gmra.mxu0 %v1648
      %v1778 = vpop.f32.mrf.mxu0
      %v1779 = vadd.f32 0.0, %v1778
      %v1780 = vpop.f32.mrf.mxu0
      %v1781 = vadd.f32 0.0, %v1780
      %1782 = vmatmul.bf16.gmra.mxu0 %v1649
      %v1783 = vpop.f32.mrf.mxu0
      %v1784 = vadd.f32 0.0, %v1783
      %v1785 = vpop.f32.mrf.mxu0
      %v1786 = vadd.f32 0.0, %v1785
      %1787 = vmatmul.bf16.gmra.mxu0 %v1650
      %v1788 = vpop.f32.mrf.mxu0
      %v1789 = vadd.f32 0.0, %v1788
      %v1790 = vpop.f32.mrf.mxu0
      %v1791 = vadd.f32 0.0, %v1790
      %1792 = vmatmul.bf16.gmra.mxu0 %v1651
      %v1793 = vpop.f32.mrf.mxu0
      %v1794 = vadd.f32 0.0, %v1793
      %v1795 = vpop.f32.mrf.mxu0
      %v1796 = vadd.f32 0.0, %v1795
      %1797 = vmatmul.bf16.gmra.mxu0 %v1652
      %v1798 = vpop.f32.mrf.mxu0
      %v1799 = vadd.f32 0.0, %v1798
      %v1800 = vpop.f32.mrf.mxu0
      %v1801 = vadd.f32 0.0, %v1800
      %1802 = vmatmul.bf16.gmra.mxu0 %v1653
      %v1803 = vpop.f32.mrf.mxu0
      %v1804 = vadd.f32 0.0, %v1803
      %v1805 = vpop.f32.mrf.mxu0
      %v1806 = vadd.f32 0.0, %v1805
      %1807 = vdwg.mxu0
      %v1808 = vadd.f32 %v1573, %v1729
      %v1809 = vadd.f32 %v1574, %v1731
      %v1810 = vadd.f32 %v1575, %v1734
      %v1811 = vadd.f32 %v1576, %v1736
      %v1812 = vadd.f32 %v1577, %v1739
      %v1813 = vadd.f32 %v1578, %v1741
      %v1814 = vadd.f32 %v1579, %v1744
      %v1815 = vadd.f32 %v1580, %v1746
      %v1816 = vadd.f32 %v1581, %v1749
      %v1817 = vadd.f32 %v1582, %v1751
      %v1818 = vadd.f32 %v1583, %v1754
      %v1819 = vadd.f32 %v1584, %v1756
      %v1820 = vadd.f32 %v1585, %v1759
      %v1821 = vadd.f32 %v1586, %v1761
      %v1822 = vadd.f32 %v1587, %v1764
      %v1823 = vadd.f32 %v1588, %v1766
      %v1824 = vadd.f32 %v1589, %v1769
      %v1825 = vadd.f32 %v1590, %v1771
      %v1826 = vadd.f32 %v1591, %v1774
      %v1827 = vadd.f32 %v1592, %v1776
      %v1828 = vadd.f32 %v1593, %v1779
      %v1829 = vadd.f32 %v1594, %v1781
      %v1830 = vadd.f32 %v1595, %v1784
      %v1831 = vadd.f32 %v1596, %v1786
      %v1832 = vadd.f32 %v1597, %v1789
      %v1833 = vadd.f32 %v1598, %v1791
      %v1834 = vadd.f32 %v1599, %v1794
      %v1835 = vadd.f32 %v1600, %v1796
      %v1836 = vadd.f32 %v1601, %v1799
      %v1837 = vadd.f32 %v1602, %v1801
      %v1838 = vadd.f32 %v1603, %v1804
      %v1839 = vadd.f32 %v1604, %v1806
      %v1840 = vld [vmem:[%s1605 + $0x1] sm:$0xff]
      %v1841 = vld [vmem:[%s1605 + $0x9] sm:$0xff]
      %v1842 = vld [vmem:[%s1605 + $0x19] sm:$0xff]
      %v1843 = vld [vmem:[%s1605 + $0x21] sm:$0xff]
      %v1844 = vld [vmem:[%s1605 + $0x31] sm:$0xff]
      %v1845 = vld [vmem:[%s1605 + $0x39] sm:$0xff]
      %v1846 = vld [vmem:[%s1605 + $0x49] sm:$0xff]
      %v1847 = vld [vmem:[%s1605 + $0x51] sm:$0xff]
      %v1848 = vld [vmem:[%s1605 + $0x61] sm:$0xff]
      %v1849 = vld [vmem:[%s1605 + $0x69] sm:$0xff]
      %v1850 = vld [vmem:[%s1605 + $0x79] sm:$0xff]
      %v1851 = vld [vmem:[%s1605 + $0x81] sm:$0xff]
      %v1852 = vld [vmem:[%s1605 + $0x91] sm:$0xff]
      %v1853 = vld [vmem:[%s1605 + $0x99] sm:$0xff]
      %v1854 = vld [vmem:[%s1605 + $0xa9] sm:$0xff]
      %v1855 = vld [vmem:[%s1605 + $0xb1] sm:$0xff]
      %v1856 = vld [vmem:[%s1605 + $0xc1] sm:$0xff]
      %v1857 = vld [vmem:[%s1605 + $0xc9] sm:$0xff]
      %v1858 = vld [vmem:[%s1605 + $0xd9] sm:$0xff]
      %v1859 = vld [vmem:[%s1605 + $0xe1] sm:$0xff]
      %v1860 = vld [vmem:[%s1605 + $0xf1] sm:$0xff]
      %v1861 = vld [vmem:[%s1605 + $0xf9] sm:$0xff]
      %v1862 = vld [vmem:[%s1605 + $0x109] sm:$0xff]
      %v1863 = vld [vmem:[%s1605 + $0x111] sm:$0xff]
      %v1864 = vld [vmem:[%s1605 + $0x121] sm:$0xff]
      %v1865 = vld [vmem:[%s1605 + $0x129] sm:$0xff]
      %v1866 = vld [vmem:[%s1605 + $0x139] sm:$0xff]
      %v1867 = vld [vmem:[%s1605 + $0x141] sm:$0xff]
      %v1868 = vld [vmem:[%s1605 + $0x151] sm:$0xff]
      %v1869 = vld [vmem:[%s1605 + $0x159] sm:$0xff]
      %v1870 = vld [vmem:[%s1605 + $0x169] sm:$0xff]
      %v1871 = vld [vmem:[%s1605 + $0x171] sm:$0xff]
      %v1872 = vpack.c.bf16 %v1841, %v1840
      %v1873 = vpack.c.bf16 %v1843, %v1842
      %v1874 = vpack.c.bf16 %v1845, %v1844
      %v1875 = vpack.c.bf16 %v1847, %v1846
      %v1876 = vpack.c.bf16 %v1849, %v1848
      %v1877 = vpack.c.bf16 %v1851, %v1850
      %v1878 = vpack.c.bf16 %v1853, %v1852
      %v1879 = vpack.c.bf16 %v1855, %v1854
      %v1880 = vpack.c.bf16 %v1857, %v1856
      %v1881 = vpack.c.bf16 %v1859, %v1858
      %v1882 = vpack.c.bf16 %v1861, %v1860
      %v1883 = vpack.c.bf16 %v1863, %v1862
      %v1884 = vpack.c.bf16 %v1865, %v1864
      %v1885 = vpack.c.bf16 %v1867, %v1866
      %v1886 = vpack.c.bf16 %v1869, %v1868
      %v1887 = vpack.c.bf16 %v1871, %v1870
      %s1888 = scalar_lea.vmem %s1, 448
      %v1889 = vld [vmem:[%s1888] sm:$0xf]
      %v1890 = vld [vmem:[%s1888 + $0x4] sm:$0xf]
      %v1891 = vld [vmem:[%s1888 + $0x8] sm:$0xf]
      %v1892 = vld [vmem:[%s1888 + $0xc] sm:$0xf]
      %v1893 = vld [vmem:[%s1888 + $0x10] sm:$0xf]
      %v1894 = vld [vmem:[%s1888 + $0x14] sm:$0xf]
      %v1895 = vld [vmem:[%s1888 + $0x18] sm:$0xf]
      %v1896 = vld [vmem:[%s1888 + $0x1c] sm:$0xf]
      %v1897 = vld [vmem:[%s1888 + $0x20] sm:$0xf]
      %v1898 = vld [vmem:[%s1888 + $0x24] sm:$0xf]
      %v1899 = vld [vmem:[%s1888 + $0x28] sm:$0xf]
      %v1900 = vld [vmem:[%s1888 + $0x2c] sm:$0xf]
      %v1901 = vld [vmem:[%s1888 + $0x30] sm:$0xf]
      %v1902 = vld [vmem:[%s1888 + $0x34] sm:$0xf]
      %v1903 = vld [vmem:[%s1888 + $0x38] sm:$0xf]
      %v1904 = vld [vmem:[%s1888 + $0x3c] sm:$0xf]
      %v1921 = vunpack.c.l.b16 %v1889
      %v1922 = vunpack.c.l.b16 %v1890
      %v1923 = vunpack.c.l.b16 %v1891
      %v1924 = vunpack.c.l.b16 %v1892
      %v1925 = vunpack.c.l.b16 %v1893
      %v1926 = vunpack.c.l.b16 %v1894
      %v1927 = vunpack.c.l.b16 %v1895
      %v1928 = vunpack.c.l.b16 %v1896
      %v1929 = vunpack.c.l.b16 %v1897
      %v1930 = vunpack.c.l.b16 %v1898
      %v1931 = vunpack.c.l.b16 %v1899
      %v1932 = vunpack.c.l.b16 %v1900
      %v1933 = vunpack.c.l.b16 %v1901
      %v1934 = vunpack.c.l.b16 %v1902
      %v1935 = vunpack.c.l.b16 %v1903
      %v1936 = vunpack.c.l.b16 %v1904
      %v1937 = vpack.c.b16 %v1922, %v1921
      %v1938 = vpack.c.b16 %v1924, %v1923
      %v1939 = vpack.c.b16 %v1926, %v1925
      %v1940 = vpack.c.b16 %v1928, %v1927
      %v1941 = vpack.c.b16 %v1930, %v1929
      %v1942 = vpack.c.b16 %v1932, %v1931
      %v1943 = vpack.c.b16 %v1934, %v1933
      %v1944 = vpack.c.b16 %v1936, %v1935
      %1953 = vmatpush.bf16.msra.mxu0 %v1944
      %1954 = vmatpush.bf16.msra.mxu0 %v1943
      %1955 = vmatpush.bf16.msra.mxu0 %v1942
      %1956 = vmatpush.bf16.msra.mxu0 %v1941
      %1957 = vmatpush.bf16.msra.mxu0 %v1940
      %1958 = vmatpush.bf16.msra.mxu0 %v1939
      %1959 = vmatpush.bf16.msra.mxu0 %v1938
      %1960 = vmatpush.bf16.msra.mxu0 %v1937
      %1961 = vmatmul.bf16.gmra.mxu0 %v1872
      %v1962 = vpop.f32.mrf.mxu0
      %v1963 = vadd.f32 0.0, %v1962
      %v1964 = vpop.f32.mrf.mxu0
      %v1965 = vadd.f32 0.0, %v1964
      %1966 = vmatmul.bf16.gmra.mxu0 %v1873
      %v1967 = vpop.f32.mrf.mxu0
      %v1968 = vadd.f32 0.0, %v1967
      %v1969 = vpop.f32.mrf.mxu0
      %v1970 = vadd.f32 0.0, %v1969
      %1971 = vmatmul.bf16.gmra.mxu0 %v1874
      %v1972 = vpop.f32.mrf.mxu0
      %v1973 = vadd.f32 0.0, %v1972
      %v1974 = vpop.f32.mrf.mxu0
      %v1975 = vadd.f32 0.0, %v1974
      %1976 = vmatmul.bf16.gmra.mxu0 %v1875
      %v1977 = vpop.f32.mrf.mxu0
      %v1978 = vadd.f32 0.0, %v1977
      %v1979 = vpop.f32.mrf.mxu0
      %v1980 = vadd.f32 0.0, %v1979
      %1981 = vmatmul.bf16.gmra.mxu0 %v1876
      %v1982 = vpop.f32.mrf.mxu0
      %v1983 = vadd.f32 0.0, %v1982
      %v1984 = vpop.f32.mrf.mxu0
      %v1985 = vadd.f32 0.0, %v1984
      %1986 = vmatmul.bf16.gmra.mxu0 %v1877
      %v1987 = vpop.f32.mrf.mxu0
      %v1988 = vadd.f32 0.0, %v1987
      %v1989 = vpop.f32.mrf.mxu0
      %v1990 = vadd.f32 0.0, %v1989
      %1991 = vmatmul.bf16.gmra.mxu0 %v1878
      %v1992 = vpop.f32.mrf.mxu0
      %v1993 = vadd.f32 0.0, %v1992
      %v1994 = vpop.f32.mrf.mxu0
      %v1995 = vadd.f32 0.0, %v1994
      %1996 = vmatmul.bf16.gmra.mxu0 %v1879
      %v1997 = vpop.f32.mrf.mxu0
      %v1998 = vadd.f32 0.0, %v1997
      %v1999 = vpop.f32.mrf.mxu0
      %v2000 = vadd.f32 0.0, %v1999
      %2001 = vmatmul.bf16.gmra.mxu0 %v1880
      %v2002 = vpop.f32.mrf.mxu0
      %v2003 = vadd.f32 0.0, %v2002
      %v2004 = vpop.f32.mrf.mxu0
      %v2005 = vadd.f32 0.0, %v2004
      %2006 = vmatmul.bf16.gmra.mxu0 %v1881
      %v2007 = vpop.f32.mrf.mxu0
      %v2008 = vadd.f32 0.0, %v2007
      %v2009 = vpop.f32.mrf.mxu0
      %v2010 = vadd.f32 0.0, %v2009
      %2011 = vmatmul.bf16.gmra.mxu0 %v1882
      %v2012 = vpop.f32.mrf.mxu0
      %v2013 = vadd.f32 0.0, %v2012
      %v2014 = vpop.f32.mrf.mxu0
      %v2015 = vadd.f32 0.0, %v2014
      %2016 = vmatmul.bf16.gmra.mxu0 %v1883
      %v2017 = vpop.f32.mrf.mxu0
      %v2018 = vadd.f32 0.0, %v2017
      %v2019 = vpop.f32.mrf.mxu0
      %v2020 = vadd.f32 0.0, %v2019
      %2021 = vmatmul.bf16.gmra.mxu0 %v1884
      %v2022 = vpop.f32.mrf.mxu0
      %v2023 = vadd.f32 0.0, %v2022
      %v2024 = vpop.f32.mrf.mxu0
      %v2025 = vadd.f32 0.0, %v2024
      %2026 = vmatmul.bf16.gmra.mxu0 %v1885
      %v2027 = vpop.f32.mrf.mxu0
      %v2028 = vadd.f32 0.0, %v2027
      %v2029 = vpop.f32.mrf.mxu0
      %v2030 = vadd.f32 0.0, %v2029
      %2031 = vmatmul.bf16.gmra.mxu0 %v1886
      %v2032 = vpop.f32.mrf.mxu0
      %v2033 = vadd.f32 0.0, %v2032
      %v2034 = vpop.f32.mrf.mxu0
      %v2035 = vadd.f32 0.0, %v2034
      %2036 = vmatmul.bf16.gmra.mxu0 %v1887
      %v2037 = vpop.f32.mrf.mxu0
      %v2038 = vadd.f32 0.0, %v2037
      %v2039 = vpop.f32.mrf.mxu0
      %v2040 = vadd.f32 0.0, %v2039
      %2041 = vdwg.mxu0
      %v2042 = vadd.f32 %v1808, %v1963
      %v2043 = vadd.f32 %v1809, %v1965
      %v2044 = vadd.f32 %v1810, %v1968
      %v2045 = vadd.f32 %v1811, %v1970
      %v2046 = vadd.f32 %v1812, %v1973
      %v2047 = vadd.f32 %v1813, %v1975
      %v2048 = vadd.f32 %v1814, %v1978
      %v2049 = vadd.f32 %v1815, %v1980
      %v2050 = vadd.f32 %v1816, %v1983
      %v2051 = vadd.f32 %v1817, %v1985
      %v2052 = vadd.f32 %v1818, %v1988
      %v2053 = vadd.f32 %v1819, %v1990
      %v2054 = vadd.f32 %v1820, %v1993
      %v2055 = vadd.f32 %v1821, %v1995
      %v2056 = vadd.f32 %v1822, %v1998
      %v2057 = vadd.f32 %v1823, %v2000
      %v2058 = vadd.f32 %v1824, %v2003
      %v2059 = vadd.f32 %v1825, %v2005
      %v2060 = vadd.f32 %v1826, %v2008
      %v2061 = vadd.f32 %v1827, %v2010
      %v2062 = vadd.f32 %v1828, %v2013
      %v2063 = vadd.f32 %v1829, %v2015
      %v2064 = vadd.f32 %v1830, %v2018
      %v2065 = vadd.f32 %v1831, %v2020
      %v2066 = vadd.f32 %v1832, %v2023
      %v2067 = vadd.f32 %v1833, %v2025
      %v2068 = vadd.f32 %v1834, %v2028
      %v2069 = vadd.f32 %v1835, %v2030
      %v2070 = vadd.f32 %v1836, %v2033
      %v2071 = vadd.f32 %v1837, %v2035
      %v2072 = vadd.f32 %v1838, %v2038
      %v2073 = vadd.f32 %v1839, %v2040
      %v2074 = vld [vmem:[%s1605 + $0x2] sm:$0xff]
      %v2075 = vld [vmem:[%s1605 + $0xa] sm:$0xff]
      %v2076 = vld [vmem:[%s1605 + $0x1a] sm:$0xff]
      %v2077 = vld [vmem:[%s1605 + $0x22] sm:$0xff]
      %v2078 = vld [vmem:[%s1605 + $0x32] sm:$0xff]
      %v2079 = vld [vmem:[%s1605 + $0x3a] sm:$0xff]
      %v2080 = vld [vmem:[%s1605 + $0x4a] sm:$0xff]
      %v2081 = vld [vmem:[%s1605 + $0x52] sm:$0xff]
      %v2082 = vld [vmem:[%s1605 + $0x62] sm:$0xff]
      %v2083 = vld [vmem:[%s1605 + $0x6a] sm:$0xff]
      %v2084 = vld [vmem:[%s1605 + $0x7a] sm:$0xff]
      %v2085 = vld [vmem:[%s1605 + $0x82] sm:$0xff]
      %v2086 = vld [vmem:[%s1605 + $0x92] sm:$0xff]
      %v2087 = vld [vmem:[%s1605 + $0x9a] sm:$0xff]
      %v2088 = vld [vmem:[%s1605 + $0xaa] sm:$0xff]
      %v2089 = vld [vmem:[%s1605 + $0xb2] sm:$0xff]
      %v2090 = vld [vmem:[%s1605 + $0xc2] sm:$0xff]
      %v2091 = vld [vmem:[%s1605 + $0xca] sm:$0xff]
      %v2092 = vld [vmem:[%s1605 + $0xda] sm:$0xff]
      %v2093 = vld [vmem:[%s1605 + $0xe2] sm:$0xff]
      %v2094 = vld [vmem:[%s1605 + $0xf2] sm:$0xff]
      %v2095 = vld [vmem:[%s1605 + $0xfa] sm:$0xff]
      %v2096 = vld [vmem:[%s1605 + $0x10a] sm:$0xff]
      %v2097 = vld [vmem:[%s1605 + $0x112] sm:$0xff]
      %v2098 = vld [vmem:[%s1605 + $0x122] sm:$0xff]
      %v2099 = vld [vmem:[%s1605 + $0x12a] sm:$0xff]
      %v2100 = vld [vmem:[%s1605 + $0x13a] sm:$0xff]
      %v2101 = vld [vmem:[%s1605 + $0x142] sm:$0xff]
      %v2102 = vld [vmem:[%s1605 + $0x152] sm:$0xff]
      %v2103 = vld [vmem:[%s1605 + $0x15a] sm:$0xff]
      %v2104 = vld [vmem:[%s1605 + $0x16a] sm:$0xff]
      %v2105 = vld [vmem:[%s1605 + $0x172] sm:$0xff]
      %v2106 = vpack.c.bf16 %v2075, %v2074
      %v2107 = vpack.c.bf16 %v2077, %v2076
      %v2108 = vpack.c.bf16 %v2079, %v2078
      %v2109 = vpack.c.bf16 %v2081, %v2080
      %v2110 = vpack.c.bf16 %v2083, %v2082
      %v2111 = vpack.c.bf16 %v2085, %v2084
      %v2112 = vpack.c.bf16 %v2087, %v2086
      %v2113 = vpack.c.bf16 %v2089, %v2088
      %v2114 = vpack.c.bf16 %v2091, %v2090
      %v2115 = vpack.c.bf16 %v2093, %v2092
      %v2116 = vpack.c.bf16 %v2095, %v2094
      %v2117 = vpack.c.bf16 %v2097, %v2096
      %v2118 = vpack.c.bf16 %v2099, %v2098
      %v2119 = vpack.c.bf16 %v2101, %v2100
      %v2120 = vpack.c.bf16 %v2103, %v2102
      %v2121 = vpack.c.bf16 %v2105, %v2104
      %s2122 = scalar_lea.vmem %s1, 512
      %v2123 = vld [vmem:[%s2122] sm:$0xf]
      %v2124 = vld [vmem:[%s2122 + $0x4] sm:$0xf]
      %v2125 = vld [vmem:[%s2122 + $0x8] sm:$0xf]
      %v2126 = vld [vmem:[%s2122 + $0xc] sm:$0xf]
      %v2127 = vld [vmem:[%s2122 + $0x10] sm:$0xf]
      %v2128 = vld [vmem:[%s2122 + $0x14] sm:$0xf]
      %v2129 = vld [vmem:[%s2122 + $0x18] sm:$0xf]
      %v2130 = vld [vmem:[%s2122 + $0x1c] sm:$0xf]
      %v2131 = vld [vmem:[%s2122 + $0x20] sm:$0xf]
      %v2132 = vld [vmem:[%s2122 + $0x24] sm:$0xf]
      %v2133 = vld [vmem:[%s2122 + $0x28] sm:$0xf]
      %v2134 = vld [vmem:[%s2122 + $0x2c] sm:$0xf]
      %v2135 = vld [vmem:[%s2122 + $0x30] sm:$0xf]
      %v2136 = vld [vmem:[%s2122 + $0x34] sm:$0xf]
      %v2137 = vld [vmem:[%s2122 + $0x38] sm:$0xf]
      %v2138 = vld [vmem:[%s2122 + $0x3c] sm:$0xf]
      %v2155 = vunpack.c.l.b16 %v2123
      %v2156 = vunpack.c.l.b16 %v2124
      %v2157 = vunpack.c.l.b16 %v2125
      %v2158 = vunpack.c.l.b16 %v2126
      %v2159 = vunpack.c.l.b16 %v2127
      %v2160 = vunpack.c.l.b16 %v2128
      %v2161 = vunpack.c.l.b16 %v2129
      %v2162 = vunpack.c.l.b16 %v2130
      %v2163 = vunpack.c.l.b16 %v2131
      %v2164 = vunpack.c.l.b16 %v2132
      %v2165 = vunpack.c.l.b16 %v2133
      %v2166 = vunpack.c.l.b16 %v2134
      %v2167 = vunpack.c.l.b16 %v2135
      %v2168 = vunpack.c.l.b16 %v2136
      %v2169 = vunpack.c.l.b16 %v2137
      %v2170 = vunpack.c.l.b16 %v2138
      %v2171 = vpack.c.b16 %v2156, %v2155
      %v2172 = vpack.c.b16 %v2158, %v2157
      %v2173 = vpack.c.b16 %v2160, %v2159
      %v2174 = vpack.c.b16 %v2162, %v2161
      %v2175 = vpack.c.b16 %v2164, %v2163
      %v2176 = vpack.c.b16 %v2166, %v2165
      %v2177 = vpack.c.b16 %v2168, %v2167
      %v2178 = vpack.c.b16 %v2170, %v2169
      %2187 = vmatpush.bf16.msra.mxu0 %v2178
      %2188 = vmatpush.bf16.msra.mxu0 %v2177
      %2189 = vmatpush.bf16.msra.mxu0 %v2176
      %2190 = vmatpush.bf16.msra.mxu0 %v2175
      %2191 = vmatpush.bf16.msra.mxu0 %v2174
      %2192 = vmatpush.bf16.msra.mxu0 %v2173
      %2193 = vmatpush.bf16.msra.mxu0 %v2172
      %2194 = vmatpush.bf16.msra.mxu0 %v2171
      %2195 = vmatmul.bf16.gmra.mxu0 %v2106
      %v2196 = vpop.f32.mrf.mxu0
      %v2197 = vadd.f32 0.0, %v2196
      %v2198 = vpop.f32.mrf.mxu0
      %v2199 = vadd.f32 0.0, %v2198
      %2200 = vmatmul.bf16.gmra.mxu0 %v2107
      %v2201 = vpop.f32.mrf.mxu0
      %v2202 = vadd.f32 0.0, %v2201
      %v2203 = vpop.f32.mrf.mxu0
      %v2204 = vadd.f32 0.0, %v2203
      %2205 = vmatmul.bf16.gmra.mxu0 %v2108
      %v2206 = vpop.f32.mrf.mxu0
      %v2207 = vadd.f32 0.0, %v2206
      %v2208 = vpop.f32.mrf.mxu0
      %v2209 = vadd.f32 0.0, %v2208
      %2210 = vmatmul.bf16.gmra.mxu0 %v2109
      %v2211 = vpop.f32.mrf.mxu0
      %v2212 = vadd.f32 0.0, %v2211
      %v2213 = vpop.f32.mrf.mxu0
      %v2214 = vadd.f32 0.0, %v2213
      %2215 = vmatmul.bf16.gmra.mxu0 %v2110
      %v2216 = vpop.f32.mrf.mxu0
      %v2217 = vadd.f32 0.0, %v2216
      %v2218 = vpop.f32.mrf.mxu0
      %v2219 = vadd.f32 0.0, %v2218
      %2220 = vmatmul.bf16.gmra.mxu0 %v2111
      %v2221 = vpop.f32.mrf.mxu0
      %v2222 = vadd.f32 0.0, %v2221
      %v2223 = vpop.f32.mrf.mxu0
      %v2224 = vadd.f32 0.0, %v2223
      %2225 = vmatmul.bf16.gmra.mxu0 %v2112
      %v2226 = vpop.f32.mrf.mxu0
      %v2227 = vadd.f32 0.0, %v2226
      %v2228 = vpop.f32.mrf.mxu0
      %v2229 = vadd.f32 0.0, %v2228
      %2230 = vmatmul.bf16.gmra.mxu0 %v2113
      %v2231 = vpop.f32.mrf.mxu0
      %v2232 = vadd.f32 0.0, %v2231
      %v2233 = vpop.f32.mrf.mxu0
      %v2234 = vadd.f32 0.0, %v2233
      %2235 = vmatmul.bf16.gmra.mxu0 %v2114
      %v2236 = vpop.f32.mrf.mxu0
      %v2237 = vadd.f32 0.0, %v2236
      %v2238 = vpop.f32.mrf.mxu0
      %v2239 = vadd.f32 0.0, %v2238
      %2240 = vmatmul.bf16.gmra.mxu0 %v2115
      %v2241 = vpop.f32.mrf.mxu0
      %v2242 = vadd.f32 0.0, %v2241
      %v2243 = vpop.f32.mrf.mxu0
      %v2244 = vadd.f32 0.0, %v2243
      %2245 = vmatmul.bf16.gmra.mxu0 %v2116
      %v2246 = vpop.f32.mrf.mxu0
      %v2247 = vadd.f32 0.0, %v2246
      %v2248 = vpop.f32.mrf.mxu0
      %v2249 = vadd.f32 0.0, %v2248
      %2250 = vmatmul.bf16.gmra.mxu0 %v2117
      %v2251 = vpop.f32.mrf.mxu0
      %v2252 = vadd.f32 0.0, %v2251
      %v2253 = vpop.f32.mrf.mxu0
      %v2254 = vadd.f32 0.0, %v2253
      %2255 = vmatmul.bf16.gmra.mxu0 %v2118
      %v2256 = vpop.f32.mrf.mxu0
      %v2257 = vadd.f32 0.0, %v2256
      %v2258 = vpop.f32.mrf.mxu0
      %v2259 = vadd.f32 0.0, %v2258
      %2260 = vmatmul.bf16.gmra.mxu0 %v2119
      %v2261 = vpop.f32.mrf.mxu0
      %v2262 = vadd.f32 0.0, %v2261
      %v2263 = vpop.f32.mrf.mxu0
      %v2264 = vadd.f32 0.0, %v2263
      %2265 = vmatmul.bf16.gmra.mxu0 %v2120
      %v2266 = vpop.f32.mrf.mxu0
      %v2267 = vadd.f32 0.0, %v2266
      %v2268 = vpop.f32.mrf.mxu0
      %v2269 = vadd.f32 0.0, %v2268
      %2270 = vmatmul.bf16.gmra.mxu0 %v2121
      %v2271 = vpop.f32.mrf.mxu0
      %v2272 = vadd.f32 0.0, %v2271
      %v2273 = vpop.f32.mrf.mxu0
      %v2274 = vadd.f32 0.0, %v2273
      %2275 = vdwg.mxu0
      %v2276 = vadd.f32 %v2042, %v2197
      %v2277 = vadd.f32 %v2043, %v2199
      %v2278 = vadd.f32 %v2044, %v2202
      %v2279 = vadd.f32 %v2045, %v2204
      %v2280 = vadd.f32 %v2046, %v2207
      %v2281 = vadd.f32 %v2047, %v2209
      %v2282 = vadd.f32 %v2048, %v2212
      %v2283 = vadd.f32 %v2049, %v2214
      %v2284 = vadd.f32 %v2050, %v2217
      %v2285 = vadd.f32 %v2051, %v2219
      %v2286 = vadd.f32 %v2052, %v2222
      %v2287 = vadd.f32 %v2053, %v2224
      %v2288 = vadd.f32 %v2054, %v2227
      %v2289 = vadd.f32 %v2055, %v2229
      %v2290 = vadd.f32 %v2056, %v2232
      %v2291 = vadd.f32 %v2057, %v2234
      %v2292 = vadd.f32 %v2058, %v2237
      %v2293 = vadd.f32 %v2059, %v2239
      %v2294 = vadd.f32 %v2060, %v2242
      %v2295 = vadd.f32 %v2061, %v2244
      %v2296 = vadd.f32 %v2062, %v2247
      %v2297 = vadd.f32 %v2063, %v2249
      %v2298 = vadd.f32 %v2064, %v2252
      %v2299 = vadd.f32 %v2065, %v2254
      %v2300 = vadd.f32 %v2066, %v2257
      %v2301 = vadd.f32 %v2067, %v2259
      %v2302 = vadd.f32 %v2068, %v2262
      %v2303 = vadd.f32 %v2069, %v2264
      %v2304 = vadd.f32 %v2070, %v2267
      %v2305 = vadd.f32 %v2071, %v2269
      %v2306 = vadd.f32 %v2072, %v2272
      %v2307 = vadd.f32 %v2073, %v2274
      %v2308 = vld [vmem:[%s2] sm:$0x1]
      %v2310 = vperm.slane %v2308, 0
      %v2312 = vadd.f32 %v2276, %v2310
      %v2313 = vadd.f32 %v2277, %v2310
      %v2314 = vadd.f32 %v2278, %v2310
      %v2315 = vadd.f32 %v2279, %v2310
      %v2316 = vadd.f32 %v2280, %v2310
      %v2317 = vadd.f32 %v2281, %v2310
      %v2318 = vadd.f32 %v2282, %v2310
      %v2319 = vadd.f32 %v2283, %v2310
      %v2320 = vadd.f32 %v2284, %v2310
      %v2321 = vadd.f32 %v2285, %v2310
      %v2322 = vadd.f32 %v2286, %v2310
      %v2323 = vadd.f32 %v2287, %v2310
      %v2324 = vadd.f32 %v2288, %v2310
      %v2325 = vadd.f32 %v2289, %v2310
      %v2326 = vadd.f32 %v2290, %v2310
      %v2327 = vadd.f32 %v2291, %v2310
      %v2328 = vadd.f32 %v2292, %v2310
      %v2329 = vadd.f32 %v2293, %v2310
      %v2330 = vadd.f32 %v2294, %v2310
      %v2331 = vadd.f32 %v2295, %v2310
      %v2332 = vadd.f32 %v2296, %v2310
      %v2333 = vadd.f32 %v2297, %v2310
      %v2334 = vadd.f32 %v2298, %v2310
      %v2335 = vadd.f32 %v2299, %v2310
      %v2336 = vadd.f32 %v2300, %v2310
      %v2337 = vadd.f32 %v2301, %v2310
      %v2338 = vadd.f32 %v2302, %v2310
      %v2339 = vadd.f32 %v2303, %v2310
      %v2340 = vadd.f32 %v2304, %v2310
      %v2341 = vadd.f32 %v2305, %v2310
      %v2342 = vadd.f32 %v2306, %v2310
      %v2343 = vadd.f32 %v2307, %v2310
      %v2344 = vmax.f32 %v2312, %v2316
      %v2345 = vmax.f32 %v2313, %v2317
      %v2346 = vmax.f32 %v2314, %v2318
      %v2347 = vmax.f32 %v2315, %v2319
      %v2348 = vmax.f32 %v2344, %v2320
      %v2349 = vmax.f32 %v2345, %v2321
      %v2350 = vmax.f32 %v2346, %v2322
      %v2351 = vmax.f32 %v2347, %v2323
      %v2352 = vmax.f32 %v2348, %v2324
      %v2353 = vmax.f32 %v2349, %v2325
      %v2354 = vmax.f32 %v2350, %v2326
      %v2355 = vmax.f32 %v2351, %v2327
      %v2356 = vmax.f32 %v2352, %v2328
      %v2357 = vmax.f32 %v2353, %v2329
      %v2358 = vmax.f32 %v2354, %v2330
      %v2359 = vmax.f32 %v2355, %v2331
      %v2360 = vmax.f32 %v2356, %v2332
      %v2361 = vmax.f32 %v2357, %v2333
      %v2362 = vmax.f32 %v2358, %v2334
      %v2363 = vmax.f32 %v2359, %v2335
      %v2364 = vmax.f32 %v2360, %v2336
      %v2365 = vmax.f32 %v2361, %v2337
      %v2366 = vmax.f32 %v2362, %v2338
      %v2367 = vmax.f32 %v2363, %v2339
      %v2368 = vmax.f32 %v2364, %v2340
      %v2369 = vmax.f32 %v2365, %v2341
      %v2370 = vmax.f32 %v2366, %v2342
      %v2371 = vmax.f32 %v2367, %v2343
      %v2372 = vmax.f32 %v2368, %v2369
      %v2373 = vmax.f32 %v2370, %v2371
      %v2374 = vmax.f32 %v2372, %v2373
      %v2375 = vrot.slane %v2374, 4
      %v2376 = vmax.f32 %v2374, %v2375
      %v2377 = vrot.slane %v2376, 2
      %v2378 = vmax.f32 %v2376, %v2377
      %v2379 = vrot.slane %v2378, 1
      %v2380 = vmax.f32 %v2378, %v2379
      %v2381 = vsub.f32 %v2312, %v2380
      %v2382 = vsub.f32 %v2313, %v2380
      %v2383 = vsub.f32 %v2314, %v2380
      %v2384 = vsub.f32 %v2315, %v2380
      %v2385 = vsub.f32 %v2316, %v2380
      %v2386 = vsub.f32 %v2317, %v2380
      %v2387 = vsub.f32 %v2318, %v2380
      %v2388 = vsub.f32 %v2319, %v2380
      %v2389 = vsub.f32 %v2320, %v2380
      %v2390 = vsub.f32 %v2321, %v2380
      %v2391 = vsub.f32 %v2322, %v2380
      %v2392 = vsub.f32 %v2323, %v2380
      %v2393 = vsub.f32 %v2324, %v2380
      %v2394 = vsub.f32 %v2325, %v2380
      %v2395 = vsub.f32 %v2326, %v2380
      %v2396 = vsub.f32 %v2327, %v2380
      %v2397 = vsub.f32 %v2328, %v2380
      %v2398 = vsub.f32 %v2329, %v2380
      %v2399 = vsub.f32 %v2330, %v2380
      %v2400 = vsub.f32 %v2331, %v2380
      %v2401 = vsub.f32 %v2332, %v2380
      %v2402 = vsub.f32 %v2333, %v2380
      %v2403 = vsub.f32 %v2334, %v2380
      %v2404 = vsub.f32 %v2335, %v2380
      %v2405 = vsub.f32 %v2336, %v2380
      %v2406 = vsub.f32 %v2337, %v2380
      %v2407 = vsub.f32 %v2338, %v2380
      %v2408 = vsub.f32 %v2339, %v2380
      %v2409 = vsub.f32 %v2340, %v2380
      %v2410 = vsub.f32 %v2341, %v2380
      %v2411 = vsub.f32 %v2342, %v2380
      %v2412 = vsub.f32 %v2343, %v2380
      %v2413 = vmul.f32 %v2381, 1.442695
      %v2414 = vpow.pop %v2413
      %v2415 = vmul.f32 %v2382, 1.442695
      %v2416 = vpow.pop %v2415
      %v2417 = vmul.f32 %v2383, 1.442695
      %v2418 = vpow.pop %v2417
      %v2419 = vmul.f32 %v2384, 1.442695
      %v2420 = vpow.pop %v2419
      %v2421 = vmul.f32 %v2385, 1.442695
      %v2422 = vpow.pop %v2421
      %v2423 = vmul.f32 %v2386, 1.442695
      %v2424 = vpow.pop %v2423
      %v2425 = vmul.f32 %v2387, 1.442695
      %v2426 = vpow.pop %v2425
      %v2427 = vmul.f32 %v2388, 1.442695
      %v2428 = vpow.pop %v2427
      %v2429 = vmul.f32 %v2389, 1.442695
      %v2430 = vpow.pop %v2429
      %v2431 = vmul.f32 %v2390, 1.442695
      %v2432 = vpow.pop %v2431
      %v2433 = vmul.f32 %v2391, 1.442695
      %v2434 = vpow.pop %v2433
      %v2435 = vmul.f32 %v2392, 1.442695
      %v2436 = vpow.pop %v2435
      %v2437 = vmul.f32 %v2393, 1.442695
      %v2438 = vpow.pop %v2437
      %v2439 = vmul.f32 %v2394, 1.442695
      %v2440 = vpow.pop %v2439
      %v2441 = vmul.f32 %v2395, 1.442695
      %v2442 = vpow.pop %v2441
      %v2443 = vmul.f32 %v2396, 1.442695
      %v2444 = vpow.pop %v2443
      %v2445 = vmul.f32 %v2397, 1.442695
      %v2446 = vpow.pop %v2445
      %v2447 = vmul.f32 %v2398, 1.442695
      %v2448 = vpow.pop %v2447
      %v2449 = vmul.f32 %v2399, 1.442695
      %v2450 = vpow.pop %v2449
      %v2451 = vmul.f32 %v2400, 1.442695
      %v2452 = vpow.pop %v2451
      %v2453 = vmul.f32 %v2401, 1.442695
      %v2454 = vpow.pop %v2453
      %v2455 = vmul.f32 %v2402, 1.442695
      %v2456 = vpow.pop %v2455
      %v2457 = vmul.f32 %v2403, 1.442695
      %v2458 = vpow.pop %v2457
      %v2459 = vmul.f32 %v2404, 1.442695
      %v2460 = vpow.pop %v2459
      %v2461 = vmul.f32 %v2405, 1.442695
      %v2462 = vpow.pop %v2461
      %v2463 = vmul.f32 %v2406, 1.442695
      %v2464 = vpow.pop %v2463
      %v2465 = vmul.f32 %v2407, 1.442695
      %v2466 = vpow.pop %v2465
      %v2467 = vmul.f32 %v2408, 1.442695
      %v2468 = vpow.pop %v2467
      %v2469 = vmul.f32 %v2409, 1.442695
      %v2470 = vpow.pop %v2469
      %v2471 = vmul.f32 %v2410, 1.442695
      %v2472 = vpow.pop %v2471
      %v2473 = vmul.f32 %v2411, 1.442695
      %v2474 = vpow.pop %v2473
      %v2475 = vmul.f32 %v2412, 1.442695
      %v2476 = vpow.pop %v2475
      %v2477 = vadd.f32 %v2414, %v2416
      %v2478 = vadd.f32 %v2477, %v2418
      %v2479 = vadd.f32 %v2478, %v2420
      %v2480 = vadd.f32 %v2479, %v2422
      %v2481 = vadd.f32 %v2480, %v2424
      %v2482 = vadd.f32 %v2481, %v2426
      %v2483 = vadd.f32 %v2482, %v2428
      %v2484 = vadd.f32 %v2483, %v2430
      %v2485 = vadd.f32 %v2484, %v2432
      %v2486 = vadd.f32 %v2485, %v2434
      %v2487 = vadd.f32 %v2486, %v2436
      %v2488 = vadd.f32 %v2487, %v2438
      %v2489 = vadd.f32 %v2488, %v2440
      %v2490 = vadd.f32 %v2489, %v2442
      %v2491 = vadd.f32 %v2490, %v2444
      %v2492 = vadd.f32 %v2491, %v2446
      %v2493 = vadd.f32 %v2492, %v2448
      %v2494 = vadd.f32 %v2493, %v2450
      %v2495 = vadd.f32 %v2494, %v2452
      %v2496 = vadd.f32 %v2495, %v2454
      %v2497 = vadd.f32 %v2496, %v2456
      %v2498 = vadd.f32 %v2497, %v2458
      %v2499 = vadd.f32 %v2498, %v2460
      %v2500 = vadd.f32 %v2499, %v2462
      %v2501 = vadd.f32 %v2500, %v2464
      %v2502 = vadd.f32 %v2501, %v2466
      %v2503 = vadd.f32 %v2502, %v2468
      %v2504 = vadd.f32 %v2503, %v2470
      %v2505 = vadd.f32 %v2504, %v2472
      %v2506 = vadd.f32 %v2505, %v2474
      %v2507 = vadd.f32 %v2506, %v2476
      %v2508 = vrot.slane %v2507, 4
      %v2509 = vadd.f32 %v2507, %v2508
      %v2510 = vrot.slane %v2509, 2
      %v2511 = vadd.f32 %v2509, %v2510
      %v2512 = vrot.slane %v2511, 1
      %v2513 = vadd.f32 %v2511, %v2512
      %v2514 = vrcp.pop %v2513
      %v2515 = vmul.f32 %v2513, %v2514
      %v2516 = vsub.f32 1.0, %v2515
      %v2517 = vmul.f32 %v2514, %v2516
      %v2518 = vadd.f32 %v2514, %v2517
      %vm2519 = vweird.f32 %v2513
      %vm2520 = vweird.f32 %v2514
      %vm2521 = vmor %vm2519, %vm2520
      %v2522 = vsel %vm2521, %v2514, %v2518
      %v2523 = vand.u32 2147483647, %v2513
      %vm2524 = vcmp.eq.f32.partialorder %v2523, 8.507059e+37
      %v2525 = vand.u32 %v2513, 2147483648
      %v2526 = vor.u32 1.1754944e-38, %v2525
      %v2527 = vsel %vm2524, %v2526, %v2522
      %v2528 = vmul.f32 %v2414, %v2527
      %v2529 = vmul.f32 %v2416, %v2527
      %v2530 = vmul.f32 %v2418, %v2527
      %v2531 = vmul.f32 %v2420, %v2527
      %v2532 = vmul.f32 %v2422, %v2527
      %v2533 = vmul.f32 %v2424, %v2527
      %v2534 = vmul.f32 %v2426, %v2527
      %v2535 = vmul.f32 %v2428, %v2527
      %v2536 = vmul.f32 %v2430, %v2527
      %v2537 = vmul.f32 %v2432, %v2527
      %v2538 = vmul.f32 %v2434, %v2527
      %v2539 = vmul.f32 %v2436, %v2527
      %v2540 = vmul.f32 %v2438, %v2527
      %v2541 = vmul.f32 %v2440, %v2527
      %v2542 = vmul.f32 %v2442, %v2527
      %v2543 = vmul.f32 %v2444, %v2527
      %v2544 = vmul.f32 %v2446, %v2527
      %v2545 = vmul.f32 %v2448, %v2527
      %v2546 = vmul.f32 %v2450, %v2527
      %v2547 = vmul.f32 %v2452, %v2527
      %v2548 = vmul.f32 %v2454, %v2527
      %v2549 = vmul.f32 %v2456, %v2527
      %v2550 = vmul.f32 %v2458, %v2527
      %v2551 = vmul.f32 %v2460, %v2527
      %v2552 = vmul.f32 %v2462, %v2527
      %v2553 = vmul.f32 %v2464, %v2527
      %v2554 = vmul.f32 %v2466, %v2527
      %v2555 = vmul.f32 %v2468, %v2527
      %v2556 = vmul.f32 %v2470, %v2527
      %v2557 = vmul.f32 %v2472, %v2527
      %v2558 = vmul.f32 %v2474, %v2527
      %v2559 = vmul.f32 %v2476, %v2527
      %2560 = vst [vmem:[%s259] sm:$0xff] %v2528
      %2561 = vst [vmem:[%s259 + $0x8] sm:$0xff] %v2529
      %2562 = vst [vmem:[%s259 + $0x10] sm:$0xff] %v2530
      %2563 = vst [vmem:[%s259 + $0x18] sm:$0xff] %v2531
      %2564 = vst [vmem:[%s259 + $0x20] sm:$0xff] %v2532
      %2565 = vst [vmem:[%s259 + $0x28] sm:$0xff] %v2533
      %2566 = vst [vmem:[%s259 + $0x30] sm:$0xff] %v2534
      %2567 = vst [vmem:[%s259 + $0x38] sm:$0xff] %v2535
      %2568 = vst [vmem:[%s259 + $0x40] sm:$0xff] %v2536
      %2569 = vst [vmem:[%s259 + $0x48] sm:$0xff] %v2537
      %2570 = vst [vmem:[%s259 + $0x50] sm:$0xff] %v2538
      %2571 = vst [vmem:[%s259 + $0x58] sm:$0xff] %v2539
      %2572 = vst [vmem:[%s259 + $0x60] sm:$0xff] %v2540
      %2573 = vst [vmem:[%s259 + $0x68] sm:$0xff] %v2541
      %2574 = vst [vmem:[%s259 + $0x70] sm:$0xff] %v2542
      %2575 = vst [vmem:[%s259 + $0x78] sm:$0xff] %v2543
      %2576 = vst [vmem:[%s259 + $0x80] sm:$0xff] %v2544
      %2577 = vst [vmem:[%s259 + $0x88] sm:$0xff] %v2545
      %2578 = vst [vmem:[%s259 + $0x90] sm:$0xff] %v2546
      %2579 = vst [vmem:[%s259 + $0x98] sm:$0xff] %v2547
      %2580 = vst [vmem:[%s259 + $0xa0] sm:$0xff] %v2548
      %2581 = vst [vmem:[%s259 + $0xa8] sm:$0xff] %v2549
      %2582 = vst [vmem:[%s259 + $0xb0] sm:$0xff] %v2550
      %2583 = vst [vmem:[%s259 + $0xb8] sm:$0xff] %v2551
      %2584 = vst [vmem:[%s259 + $0xc0] sm:$0xff] %v2552
      %2585 = vst [vmem:[%s259 + $0xc8] sm:$0xff] %v2553
      %2586 = vst [vmem:[%s259 + $0xd0] sm:$0xff] %v2554
      %2587 = vst [vmem:[%s259 + $0xd8] sm:$0xff] %v2555
      %2588 = vst [vmem:[%s259 + $0xe0] sm:$0xff] %v2556
      %2589 = vst [vmem:[%s259 + $0xe8] sm:$0xff] %v2557
      %2590 = vst [vmem:[%s259 + $0xf0] sm:$0xff] %v2558
      %2591 = vst [vmem:[%s259 + $0xf8] sm:$0xff] %v2559
      %v2592 = vld [vmem:[%s3] sm:$0x1]
      %v2594 = vperm.slane %v2592, 0
      %v2596 = vmul.f32 %v2528, %v2594
      %v2597 = vmul.f32 %v2529, %v2594
      %v2598 = vmul.f32 %v2530, %v2594
      %v2599 = vmul.f32 %v2531, %v2594
      %v2600 = vmul.f32 %v2532, %v2594
      %v2601 = vmul.f32 %v2533, %v2594
      %v2602 = vmul.f32 %v2534, %v2594
      %v2603 = vmul.f32 %v2535, %v2594
      %v2604 = vmul.f32 %v2536, %v2594
      %v2605 = vmul.f32 %v2537, %v2594
      %v2606 = vmul.f32 %v2538, %v2594
      %v2607 = vmul.f32 %v2539, %v2594
      %v2608 = vmul.f32 %v2540, %v2594
      %v2609 = vmul.f32 %v2541, %v2594
      %v2610 = vmul.f32 %v2542, %v2594
      %v2611 = vmul.f32 %v2543, %v2594
      %v2612 = vmul.f32 %v2544, %v2594
      %v2613 = vmul.f32 %v2545, %v2594
      %v2614 = vmul.f32 %v2546, %v2594
      %v2615 = vmul.f32 %v2547, %v2594
      %v2616 = vmul.f32 %v2548, %v2594
      %v2617 = vmul.f32 %v2549, %v2594
      %v2618 = vmul.f32 %v2550, %v2594
      %v2619 = vmul.f32 %v2551, %v2594
      %v2620 = vmul.f32 %v2552, %v2594
      %v2621 = vmul.f32 %v2553, %v2594
      %v2622 = vmul.f32 %v2554, %v2594
      %v2623 = vmul.f32 %v2555, %v2594
      %v2624 = vmul.f32 %v2556, %v2594
      %v2625 = vmul.f32 %v2557, %v2594
      %v2626 = vmul.f32 %v2558, %v2594
      %v2627 = vmul.f32 %v2559, %v2594
      %2628 = vadd.xlane.f32.xlu0 %v2596
      %v2629 = vpop.xlane.xlu0 %2628
      %2630 = vadd.xlane.f32.xlu0 %v2597
      %v2631 = vpop.xlane.xlu0 %2630
      %2632 = vadd.xlane.f32.xlu0 %v2598
      %v2633 = vpop.xlane.xlu0 %2632
      %2634 = vadd.xlane.f32.xlu0 %v2599
      %v2635 = vpop.xlane.xlu0 %2634
      %2636 = vadd.xlane.f32.xlu0 %v2600
      %v2637 = vpop.xlane.xlu0 %2636
      %2638 = vadd.xlane.f32.xlu0 %v2601
      %v2639 = vpop.xlane.xlu0 %2638
      %2640 = vadd.xlane.f32.xlu0 %v2602
      %v2641 = vpop.xlane.xlu0 %2640
      %2642 = vadd.xlane.f32.xlu0 %v2603
      %v2643 = vpop.xlane.xlu0 %2642
      %2644 = vadd.xlane.f32.xlu0 %v2604
      %v2645 = vpop.xlane.xlu0 %2644
      %2646 = vadd.xlane.f32.xlu0 %v2605
      %v2647 = vpop.xlane.xlu0 %2646
      %2648 = vadd.xlane.f32.xlu0 %v2606
      %v2649 = vpop.xlane.xlu0 %2648
      %2650 = vadd.xlane.f32.xlu0 %v2607
      %v2651 = vpop.xlane.xlu0 %2650
      %2652 = vadd.xlane.f32.xlu0 %v2608
      %v2653 = vpop.xlane.xlu0 %2652
      %2654 = vadd.xlane.f32.xlu0 %v2609
      %v2655 = vpop.xlane.xlu0 %2654
      %2656 = vadd.xlane.f32.xlu0 %v2610
      %v2657 = vpop.xlane.xlu0 %2656
      %2658 = vadd.xlane.f32.xlu0 %v2611
      %v2659 = vpop.xlane.xlu0 %2658
      %2660 = vadd.xlane.f32.xlu0 %v2612
      %v2661 = vpop.xlane.xlu0 %2660
      %2662 = vadd.xlane.f32.xlu0 %v2613
      %v2663 = vpop.xlane.xlu0 %2662
      %2664 = vadd.xlane.f32.xlu0 %v2614
      %v2665 = vpop.xlane.xlu0 %2664
      %2666 = vadd.xlane.f32.xlu0 %v2615
      %v2667 = vpop.xlane.xlu0 %2666
      %2668 = vadd.xlane.f32.xlu0 %v2616
      %v2669 = vpop.xlane.xlu0 %2668
      %2670 = vadd.xlane.f32.xlu0 %v2617
      %v2671 = vpop.xlane.xlu0 %2670
      %2672 = vadd.xlane.f32.xlu0 %v2618
      %v2673 = vpop.xlane.xlu0 %2672
      %2674 = vadd.xlane.f32.xlu0 %v2619
      %v2675 = vpop.xlane.xlu0 %2674
      %2676 = vadd.xlane.f32.xlu0 %v2620
      %v2677 = vpop.xlane.xlu0 %2676
      %2678 = vadd.xlane.f32.xlu0 %v2621
      %v2679 = vpop.xlane.xlu0 %2678
      %2680 = vadd.xlane.f32.xlu0 %v2622
      %v2681 = vpop.xlane.xlu0 %2680
      %2682 = vadd.xlane.f32.xlu0 %v2623
      %v2683 = vpop.xlane.xlu0 %2682
      %2684 = vadd.xlane.f32.xlu0 %v2624
      %v2685 = vpop.xlane.xlu0 %2684
      %2686 = vadd.xlane.f32.xlu0 %v2625
      %v2687 = vpop.xlane.xlu0 %2686
      %2688 = vadd.xlane.f32.xlu0 %v2626
      %v2689 = vpop.xlane.xlu0 %2688
      %2690 = vadd.xlane.f32.xlu0 %v2627
      %v2691 = vpop.xlane.xlu0 %2690
      %v2692 = vld [vmem:[%s4] sm:$0xff]
      %v2693 = vld [vmem:[%s4 + $0x8] sm:$0xff]
      %v2694 = vld [vmem:[%s4 + $0x10] sm:$0xff]
      %v2695 = vld [vmem:[%s4 + $0x18] sm:$0xff]
      %v2696 = vld [vmem:[%s4 + $0x20] sm:$0xff]
      %v2697 = vld [vmem:[%s4 + $0x28] sm:$0xff]
      %v2698 = vld [vmem:[%s4 + $0x30] sm:$0xff]
      %v2699 = vld [vmem:[%s4 + $0x38] sm:$0xff]
      %v2700 = vld [vmem:[%s4 + $0x40] sm:$0xff]
      %v2701 = vld [vmem:[%s4 + $0x48] sm:$0xff]
      %v2702 = vld [vmem:[%s4 + $0x50] sm:$0xff]
      %v2703 = vld [vmem:[%s4 + $0x58] sm:$0xff]
      %v2704 = vld [vmem:[%s4 + $0x60] sm:$0xff]
      %v2705 = vld [vmem:[%s4 + $0x68] sm:$0xff]
      %v2706 = vld [vmem:[%s4 + $0x70] sm:$0xff]
      %v2707 = vld [vmem:[%s4 + $0x78] sm:$0xff]
      %v2708 = vld [vmem:[%s4 + $0x80] sm:$0xff]
      %v2709 = vld [vmem:[%s4 + $0x88] sm:$0xff]
      %v2710 = vld [vmem:[%s4 + $0x90] sm:$0xff]
      %v2711 = vld [vmem:[%s4 + $0x98] sm:$0xff]
      %v2712 = vld [vmem:[%s4 + $0xa0] sm:$0xff]
      %v2713 = vld [vmem:[%s4 + $0xa8] sm:$0xff]
      %v2714 = vld [vmem:[%s4 + $0xb0] sm:$0xff]
      %v2715 = vld [vmem:[%s4 + $0xb8] sm:$0xff]
      %v2716 = vld [vmem:[%s4 + $0xc0] sm:$0xff]
      %v2717 = vld [vmem:[%s4 + $0xc8] sm:$0xff]
      %v2718 = vld [vmem:[%s4 + $0xd0] sm:$0xff]
      %v2719 = vld [vmem:[%s4 + $0xd8] sm:$0xff]
      %v2720 = vld [vmem:[%s4 + $0xe0] sm:$0xff]
      %v2721 = vld [vmem:[%s4 + $0xe8] sm:$0xff]
      %v2722 = vld [vmem:[%s4 + $0xf0] sm:$0xff]
      %v2723 = vld [vmem:[%s4 + $0xf8] sm:$0xff]
      %v2724 = vmul.f32 %v2629, %v2692
      %v2725 = vmul.f32 %v2631, %v2693
      %v2726 = vmul.f32 %v2633, %v2694
      %v2727 = vmul.f32 %v2635, %v2695
      %v2728 = vmul.f32 %v2637, %v2696
      %v2729 = vmul.f32 %v2639, %v2697
      %v2730 = vmul.f32 %v2641, %v2698
      %v2731 = vmul.f32 %v2643, %v2699
      %v2732 = vmul.f32 %v2645, %v2700
      %v2733 = vmul.f32 %v2647, %v2701
      %v2734 = vmul.f32 %v2649, %v2702
      %v2735 = vmul.f32 %v2651, %v2703
      %v2736 = vmul.f32 %v2653, %v2704
      %v2737 = vmul.f32 %v2655, %v2705
      %v2738 = vmul.f32 %v2657, %v2706
      %v2739 = vmul.f32 %v2659, %v2707
      %v2740 = vmul.f32 %v2661, %v2708
      %v2741 = vmul.f32 %v2663, %v2709
      %v2742 = vmul.f32 %v2665, %v2710
      %v2743 = vmul.f32 %v2667, %v2711
      %v2744 = vmul.f32 %v2669, %v2712
      %v2745 = vmul.f32 %v2671, %v2713
      %v2746 = vmul.f32 %v2673, %v2714
      %v2747 = vmul.f32 %v2675, %v2715
      %v2748 = vmul.f32 %v2677, %v2716
      %v2749 = vmul.f32 %v2679, %v2717
      %v2750 = vmul.f32 %v2681, %v2718
      %v2751 = vmul.f32 %v2683, %v2719
      %v2752 = vmul.f32 %v2685, %v2720
      %v2753 = vmul.f32 %v2687, %v2721
      %v2754 = vmul.f32 %v2689, %v2722
      %v2755 = vmul.f32 %v2691, %v2723
      %vm2756 = vcmask 7168
      %2757 = vst.msk [vmem:[%s264] sm:$0xff] %vm2756, %v2724
      %2758 = vst.msk [vmem:[%s264 + $0x8] sm:$0xff] %vm2756, %v2725
      %2759 = vst.msk [vmem:[%s264 + $0x10] sm:$0xff] %vm2756, %v2726
      %2760 = vst.msk [vmem:[%s264 + $0x18] sm:$0xff] %vm2756, %v2727
      %2761 = vst.msk [vmem:[%s264 + $0x20] sm:$0xff] %vm2756, %v2728
      %2762 = vst.msk [vmem:[%s264 + $0x28] sm:$0xff] %vm2756, %v2729
      %2763 = vst.msk [vmem:[%s264 + $0x30] sm:$0xff] %vm2756, %v2730
      %2764 = vst.msk [vmem:[%s264 + $0x38] sm:$0xff] %vm2756, %v2731
      %2765 = vst.msk [vmem:[%s264 + $0x40] sm:$0xff] %vm2756, %v2732
      %2766 = vst.msk [vmem:[%s264 + $0x48] sm:$0xff] %vm2756, %v2733
      %2767 = vst.msk [vmem:[%s264 + $0x50] sm:$0xff] %vm2756, %v2734
      %2768 = vst.msk [vmem:[%s264 + $0x58] sm:$0xff] %vm2756, %v2735
      %2769 = vst.msk [vmem:[%s264 + $0x60] sm:$0xff] %vm2756, %v2736
      %2770 = vst.msk [vmem:[%s264 + $0x68] sm:$0xff] %vm2756, %v2737
      %2771 = vst.msk [vmem:[%s264 + $0x70] sm:$0xff] %vm2756, %v2738
      %2772 = vst.msk [vmem:[%s264 + $0x78] sm:$0xff] %vm2756, %v2739
      %2773 = vst.msk [vmem:[%s264 + $0x80] sm:$0xff] %vm2756, %v2740
      %2774 = vst.msk [vmem:[%s264 + $0x88] sm:$0xff] %vm2756, %v2741
      %2775 = vst.msk [vmem:[%s264 + $0x90] sm:$0xff] %vm2756, %v2742
      %2776 = vst.msk [vmem:[%s264 + $0x98] sm:$0xff] %vm2756, %v2743
      %2777 = vst.msk [vmem:[%s264 + $0xa0] sm:$0xff] %vm2756, %v2744
      %2778 = vst.msk [vmem:[%s264 + $0xa8] sm:$0xff] %vm2756, %v2745
      %2779 = vst.msk [vmem:[%s264 + $0xb0] sm:$0xff] %vm2756, %v2746
      %2780 = vst.msk [vmem:[%s264 + $0xb8] sm:$0xff] %vm2756, %v2747
      %2781 = vst.msk [vmem:[%s264 + $0xc0] sm:$0xff] %vm2756, %v2748
      %2782 = vst.msk [vmem:[%s264 + $0xc8] sm:$0xff] %vm2756, %v2749
      %2783 = vst.msk [vmem:[%s264 + $0xd0] sm:$0xff] %vm2756, %v2750
      %2784 = vst.msk [vmem:[%s264 + $0xd8] sm:$0xff] %vm2756, %v2751
      %2785 = vst.msk [vmem:[%s264 + $0xe0] sm:$0xff] %vm2756, %v2752
      %2786 = vst.msk [vmem:[%s264 + $0xe8] sm:$0xff] %vm2756, %v2753
      %2787 = vst.msk [vmem:[%s264 + $0xf0] sm:$0xff] %vm2756, %v2754
      %2788 = vst.msk [vmem:[%s264 + $0xf8] sm:$0xff] %vm2756, %v2755
      %p2789 = scmp.lt.s32.totalorder %s18, 1
      %s2790 = scalar_select %p2789, %s18, 1
      %s2791 = smul.addr %s2790, 32
      %s2792 = smul.addr %s2791, 8
      %s2793 = scalar_lea.vmem %s5, %s2792
      %p2794 = scmp.lt.s32.totalorder %s18, 1
      %s2795 = scalar_select %p2794, %s18, 1
      %s2796 = smul.addr %s2795, 32
      %s2797 = smul.addr %s2796, 8
      %s2798 = scalar_lea.vmem %s6, %s2797
      // Predicated region
      $region41: #{attention_forward.3} parent=39 // pred_check
        %p2799 = pneg %p146
      $region42: #{attention_forward.3} parent=39 // pred_check_branch
        %2801 = sbr.rel (%p2799) target = $region44
      $region43: #{attention_forward.3} parent=39 // pred_region
        _
      $region44: #{attention_forward.3} parent=39 // pred_fallthru
        _
      // Predicated region
      $region45: #{attention_forward.3} parent=39 // pred_check
        %p2802 = pneg %p172
      $region46: #{attention_forward.3} parent=39 // pred_check_branch
        %2804 = sbr.rel (%p2802) target = $region48
      $region47: #{attention_forward.3} parent=39 // pred_region
        _
      $region48: #{attention_forward.3} parent=39 // pred_fallthru
        _
    $region40: #{attention_forward.3} parent=5 // pred_fallthru
      _
    %p2805 = scmp.le.s32.totalorder 2, %s13
    // Predicated region
    $region49: #{attention_forward.3} parent=5 // pred_check
      %p2806 = pneg %p2805
    $region50: #{attention_forward.3} parent=5 // pred_check_branch
      %2808 = sbr.rel (%p2806) target = $region52
    $region51: #{attention_forward.3} parent=5 // pred_region
      %s2809 = ssub.s32 %s13, 2
      // Predicated region
      $region53: #{attention_forward.3} parent=51 // pred_check
        %p2810 = pneg %p152
      $region54: #{attention_forward.3} parent=51 // pred_check_branch
        %2812 = sbr.rel (%p2810) target = $region56
      $region55: #{attention_forward.3} parent=51 // pred_region
        %p2813 = scmp.lt.s32.totalorder %s19, 1
        %s2814 = scalar_select %p2813, %s19, 1
        %s2815 = smul.addr %s2814, 32
        %s2816 = smul.addr %s2815, 8
        %s2817 = scalar_lea.vmem %s5, %s2816
      $region56: #{attention_forward.3} parent=51 // pred_fallthru
        _
      // Predicated region
      $region57: #{attention_forward.3} parent=51 // pred_check
        %p2818 = pneg %p178
      $region58: #{attention_forward.3} parent=51 // pred_check_branch
        %2820 = sbr.rel (%p2818) target = $region60
      $region59: #{attention_forward.3} parent=51 // pred_region
        %p2821 = scmp.lt.s32.totalorder %s19, 1
        %s2822 = scalar_select %p2821, %s19, 1
        %s2823 = smul.addr %s2822, 32
        %s2824 = smul.addr %s2823, 8
        %s2825 = scalar_lea.vmem %s6, %s2824
      $region60: #{attention_forward.3} parent=51 // pred_fallthru
        _
    $region52: #{attention_forward.3} parent=5 // pred_fallthru
      _
  $region6: #{attention_forward.3} parent=0 // loop_footer
    %s17 = sadd.s32 1, %s13
  $region7: #{attention_forward.3} parent=0 // loop_footer_branch
    %12 = sbr.rel target = $region3
  $region8: #{attention_forward.3} parent=0 // loop_exit
    _

</llo_original>
